<compile_context>
chip_gen: v7x
topology: tpu7x:2x2x1
jax: 0.10.0
libtpu: 0.0.40
codegen_flags: <defaults>
</compile_context>

<pallas_src>
import jax
import jax.numpy as jnp
from jax.experimental import pallas as pl
from jax.experimental.pallas import tpu as pltpu

HIDDEN = 768      # BERT hidden size
ENC = 512         # voice/tex encoder output width
MID = 512         # output_layer hidden width
OUT = 256         # final output width


def _head_kernel(v_ref, t_ref, wv_ref, wt_ref, b1_ref, w2_ref, b2_ref, o_ref):
    # h = relu(v @ Wv' + t @ Wt' + b1')   (encoders fused into output_layer[0]).
    # Inputs arrive bf16 from the producer, so astype is a no-op (kept only as a
    # dtype guard; no wrapper-side cast is added).
    v = v_ref[...].astype(jnp.bfloat16)
    t = t_ref[...].astype(jnp.bfloat16)
    h = (jnp.dot(v, wv_ref[...], preferred_element_type=jnp.float32)
         + jnp.dot(t, wt_ref[...], preferred_element_type=jnp.float32)
         + b1_ref[...])
    h = jnp.maximum(h, 0.0)
    # Dropout(0.1) eval mode -> identity.
    o_ref[...] = (jnp.dot(h.astype(jnp.bfloat16), w2_ref[...],
                          preferred_element_type=jnp.float32)
                  + b2_ref[...]).astype(o_ref.dtype)


def _round_up(x, m):
    return ((x + m - 1) // m) * m


def _choose_tile(B, block_b):
    """Sublane-aligned batch tile; guarantees >=2 grid steps when B > 128 so a
    v7x megacore can split the batch across both TensorCores."""
    tb = min(block_b, _round_up(B, 8))
    if B > 128 and pl.cdiv(B, tb) < 2:
        tb = max(128, _round_up(pl.cdiv(B, 2), 8))
    return tb


def _make_specs(tb, single_buffer_weights):
    act_spec = pl.BlockSpec((tb, HIDDEN), lambda i: (i, 0))
    # Constant block index -> weights/biases are DMA'd once and stay
    # VMEM-resident for every grid step; single-buffer them to save VMEM.
    kwargs = dict(pipeline_mode=pl.Buffered(1)) if single_buffer_weights else {}

    def const_spec(shape):
        return pl.BlockSpec(shape, lambda i: (0, 0), **kwargs)

    in_specs = [
        act_spec, act_spec,
        const_spec((HIDDEN, MID)),   # wv'
        const_spec((HIDDEN, MID)),   # wt'
        const_spec((1, MID)),        # b1'
        const_spec((MID, OUT)),      # w2
        const_spec((1, OUT)),        # b2
    ]
    out_spec = pl.BlockSpec((tb, OUT), lambda i: (i, 0))
    return in_specs, out_spec


def math_video_head(voice_cls, tex_cls, params, *, block_b=512):
    """voice_cls, tex_cls: [B, 768] [CLS] features (preferably bf16 straight
    from the producer).  Returns [B, 256] f32."""
    B = voice_cls.shape[0]
    tb = _choose_tile(B, block_b)
    grid = (pl.cdiv(B, tb),)   # ragged boundary block: output rows masked on store

    # Advisory cost estimate so XLA can overlap this small call with BERT ops.
    weight_bytes = sum(int(params[k].size) * params[k].dtype.itemsize
                       for k in ("wv", "wt", "b1", "w2", "b2"))
    bytes_accessed = (int(voice_cls.size) * voice_cls.dtype.itemsize
                      + int(tex_cls.size) * tex_cls.dtype.itemsize
                      + weight_bytes
                      + B * OUT * 4)
    cost = pl.CostEstimate(flops=2 * B * (HIDDEN * MID * 2 + MID * OUT),
                           transcendentals=0,
                           bytes_accessed=bytes_accessed)

    def call(single_buffer_weights):
        in_specs, out_spec = _make_specs(tb, single_buffer_weights)
        return pl.pallas_call(
            _head_kernel,
            out_shape=jax.ShapeDtypeStruct((B, OUT), jnp.float32),
            grid=grid,
            in_specs=in_specs,
            out_specs=out_spec,
            compiler_params=pltpu.CompilerParams(
                dimension_semantics=("parallel",)),
            cost_estimate=cost,
        )(voice_cls, tex_cls,
          params["wv"], params["wt"], params["b1"], params["w2"], params["b2"])

    try:
        return call(True)
    except Exception:
        # Installed jax/Mosaic rejects Buffered(1): fall back to default buffering.
        return call(False)


def init_raw_params(key):
    """torch.nn.Linear-style init U(-1/sqrt(fan_in), 1/sqrt(fan_in)); weights [in, out]."""
    def linear(k, fan_in, fan_out):
        kw, kb = jax.random.split(k)
        bound = 1.0 / jnp.sqrt(float(fan_in))
        w = jax.random.uniform(kw, (fan_in, fan_out), jnp.float32, -bound, bound)
        b = jax.random.uniform(kb, (1, fan_out), jnp.float32, -bound, bound)
        return w, b

    kv, kt, k1, k2 = jax.random.split(key, 4)
    wv, bv = linear(kv, HIDDEN, ENC)        # voice_encoder
    wt, bt = linear(kt, HIDDEN, ENC)        # tex_encoder
    w1, b1 = linear(k1, 2 * ENC, MID)       # output_layer[0]
    w2, b2 = linear(k2, MID, OUT)           # output_layer[3]
    return dict(wv=wv, bv=bv, wt=wt, bt=bt, w1=w1, b1=b1, w2=w2, b2=b2)


def fuse_params(raw):
    """Fold the encoders into output_layer[0] (exact: no nonlinearity between)
    and cast streamed weights to bf16 for the MXU.  Biases stay f32."""
    w1v, w1t = raw["w1"][:ENC], raw["w1"][ENC:]
    wv_f = raw["wv"] @ w1v                                   # (768, 512)
    wt_f = raw["wt"] @ w1t                                   # (768, 512)
    b1_f = raw["b1"] + raw["bv"] @ w1v + raw["bt"] @ w1t     # (1, 512)
    return {
        "wv": wv_f.astype(jnp.bfloat16),
        "wt": wt_f.astype(jnp.bfloat16),
        "b1": b1_f,                                          # f32
        "w2": raw["w2"].astype(jnp.bfloat16),
        "b2": raw["b2"],                                     # f32
    }


def reference_original(voice_cls_f32, tex_cls_f32, raw):
    """Full-precision math of the original PyTorch module (eval mode)."""
    vf = voice_cls_f32 @ raw["wv"] + raw["bv"]
    tf = tex_cls_f32 @ raw["wt"] + raw["bt"]
    combined = jnp.concatenate([vf, tf], axis=1)
    h = jnp.maximum(combined @ raw["w1"] + raw["b1"], 0.0)
    return h @ raw["w2"] + raw["b2"]


def reference_fused(v_bf16, t_bf16, fused):
    """Same fused / bf16 math as the kernel, in plain jnp."""
    h = (jnp.dot(v_bf16, fused["wv"], preferred_element_type=jnp.float32)
         + jnp.dot(t_bf16, fused["wt"], preferred_element_type=jnp.float32)
         + fused["b1"])
    h = jnp.maximum(h, 0.0)
    return (jnp.dot(h.astype(jnp.bfloat16), fused["w2"],
                    preferred_element_type=jnp.float32) + fused["b2"])


if __name__ == "__main__":
    key = jax.random.PRNGKey(0)
    kp, kv, kt = jax.random.split(key, 3)

    raw = init_raw_params(kp)
    fused = fuse_params(raw)

    # Small-batch check (stand-ins for bert(...).last_hidden_state[:, 0, :]).
    # The producer (BERT head) emits bf16 activations; keep an f32 master copy
    # only for the full-precision reference.
    B = 2
    voice_f32 = jax.random.normal(kv, (B, HIDDEN), jnp.float32)
    tex_f32 = jax.random.normal(kt, (B, HIDDEN), jnp.float32)
    voice_cls = voice_f32.astype(jnp.bfloat16)
    tex_cls = tex_f32.astype(jnp.bfloat16)

    out = jax.block_until_ready(math_video_head(voice_cls, tex_cls, fused))
    assert out.shape == (B, OUT), out.shape

    ref_bf16 = reference_fused(voice_cls, tex_cls, fused)
    ref_f32 = reference_original(voice_f32, tex_f32, raw)
    assert jnp.allclose(out, ref_bf16, atol=5e-3, rtol=5e-3), \
        "mismatch vs fused bf16 reference"
    assert jnp.allclose(out, ref_f32, atol=3e-2, rtol=3e-2), \
        "mismatch vs original f32 module math"

    # Larger batch: exercises the ragged cdiv grid (no jnp.pad), the >=2-step
    # batch split and the VMEM-resident weights (constant index_map).
    B2 = 300
    kv2, kt2 = jax.random.split(jax.random.PRNGKey(1))
    v2_f32 = jax.random.normal(kv2, (B2, HIDDEN), jnp.float32)
    t2_f32 = jax.random.normal(kt2, (B2, HIDDEN), jnp.float32)
    out2 = jax.block_until_ready(
        math_video_head(v2_f32.astype(jnp.bfloat16), t2_f32.astype(jnp.bfloat16), fused))
    assert out2.shape == (B2, OUT), out2.shape
    assert jnp.allclose(out2, reference_original(v2_f32, t2_f32, raw),
                        atol=3e-2, rtol=3e-2), \
        "mismatch vs original f32 module math (ragged batched path)"

    print("KERNEL_OK")
</pallas_src>

<mosaic_0001>
module attributes {stable_mosaic.version = 11 : i64} {
  func.func @_head_kernel(%arg0: i32, %arg1: memref<8x768xbf16, #tpu.memory_space<vmem>>, %arg2: memref<8x768xbf16, #tpu.memory_space<vmem>>, %arg3: memref<768x512xbf16, #tpu.memory_space<vmem>>, %arg4: memref<768x512xbf16, #tpu.memory_space<vmem>>, %arg5: memref<1x512xf32, #tpu.memory_space<vmem>>, %arg6: memref<512x256xbf16, #tpu.memory_space<vmem>>, %arg7: memref<1x256xf32, #tpu.memory_space<vmem>>, %arg8: memref<8x256xf32, #tpu.memory_space<vmem>>) attributes {dimension_semantics = [#tpu.dimension_semantics<parallel>], iteration_bounds = array<i64: 1>, scalar_prefetch = 0 : i64, scratch_operands = 0 : i64, tpu.core_type = #tpu.core_type<tc>, window_params = [{transform_indices = @transform_0, window_bounds = array<i64: 8, 768>}, {transform_indices = @transform_1, window_bounds = array<i64: 8, 768>}, {pipeline_mode = #tpu.pipeline_mode<synchronous>, transform_indices = @transform_2, window_bounds = array<i64: 768, 512>}, {pipeline_mode = #tpu.pipeline_mode<synchronous>, transform_indices = @transform_3, window_bounds = array<i64: 768, 512>}, {pipeline_mode = #tpu.pipeline_mode<synchronous>, transform_indices = @transform_4, window_bounds = array<i64: 1, 512>}, {pipeline_mode = #tpu.pipeline_mode<synchronous>, transform_indices = @transform_5, window_bounds = array<i64: 512, 256>}, {pipeline_mode = #tpu.pipeline_mode<synchronous>, transform_indices = @transform_6, window_bounds = array<i64: 1, 256>}, {transform_indices = @transform_7, window_bounds = array<i64: 8, 256>}]} {
    %c0 = arith.constant 0 : index
    %c0_0 = arith.constant 0 : index
    %0 = vector.load %arg1[%c0, %c0_0] : memref<8x768xbf16, #tpu.memory_space<vmem>>, vector<8x768xbf16>
    %c0_1 = arith.constant 0 : index
    %c0_2 = arith.constant 0 : index
    %1 = vector.load %arg2[%c0_1, %c0_2] : memref<8x768xbf16, #tpu.memory_space<vmem>>, vector<8x768xbf16>
    %c0_3 = arith.constant 0 : index
    %c0_4 = arith.constant 0 : index
    %2 = vector.load %arg3[%c0_3, %c0_4] : memref<768x512xbf16, #tpu.memory_space<vmem>>, vector<768x512xbf16>
    %cst = arith.constant dense<0.000000e+00> : vector<8x512xf32>
    %3 = tpu.matmul %0, %2, %cst {dimension_numbers = #tpu.dot_dimension_numbers<[1], [0], [0], [1], [0, 0, 1, 1], [], []>} : vector<8x768xbf16>, vector<768x512xbf16>, vector<8x512xf32> -> vector<8x512xf32>
    %c0_5 = arith.constant 0 : index
    %c0_6 = arith.constant 0 : index
    %4 = vector.load %arg4[%c0_5, %c0_6] : memref<768x512xbf16, #tpu.memory_space<vmem>>, vector<768x512xbf16>
    %cst_7 = arith.constant dense<0.000000e+00> : vector<8x512xf32>
    %5 = tpu.matmul %1, %4, %cst_7 {dimension_numbers = #tpu.dot_dimension_numbers<[1], [0], [0], [1], [0, 0, 1, 1], [], []>} : vector<8x768xbf16>, vector<768x512xbf16>, vector<8x512xf32> -> vector<8x512xf32>
    %6 = arith.addf %3, %5 : vector<8x512xf32>
    %c0_8 = arith.constant 0 : index
    %c0_9 = arith.constant 0 : index
    %7 = vector.load %arg5[%c0_8, %c0_9] : memref<1x512xf32, #tpu.memory_space<vmem>>, vector<1x512xf32>
    %8 = vector.broadcast %7 : vector<1x512xf32> to vector<8x512xf32>
    %9 = arith.addf %6, %8 : vector<8x512xf32>
    %cst_10 = arith.constant 0.000000e+00 : f32
    %10 = vector.broadcast %cst_10 : f32 to vector<8x512xf32>
    %11 = arith.maximumf %9, %10 : vector<8x512xf32>
    %12 = arith.truncf %11 : vector<8x512xf32> to vector<8x512xbf16>
    %c0_11 = arith.constant 0 : index
    %c0_12 = arith.constant 0 : index
    %13 = vector.load %arg6[%c0_11, %c0_12] : memref<512x256xbf16, #tpu.memory_space<vmem>>, vector<512x256xbf16>
    %cst_13 = arith.constant dense<0.000000e+00> : vector<8x256xf32>
    %14 = tpu.matmul %12, %13, %cst_13 {dimension_numbers = #tpu.dot_dimension_numbers<[1], [0], [0], [1], [0, 0, 1, 1], [], []>} : vector<8x512xbf16>, vector<512x256xbf16>, vector<8x256xf32> -> vector<8x256xf32>
    %c0_14 = arith.constant 0 : index
    %c0_15 = arith.constant 0 : index
    %15 = vector.load %arg7[%c0_14, %c0_15] : memref<1x256xf32, #tpu.memory_space<vmem>>, vector<1x256xf32>
    %16 = vector.broadcast %15 : vector<1x256xf32> to vector<8x256xf32>
    %17 = arith.addf %14, %16 : vector<8x256xf32>
    %c0_16 = arith.constant 0 : index
    %c0_17 = arith.constant 0 : index
    %18 = vector.load %arg8[%c0_16, %c0_17] : memref<8x256xf32, #tpu.memory_space<vmem>>, vector<8x256xf32>
    tpu.vector_store %arg8[%c0_16, %c0_17], %17 {strides = array<i32>} : memref<8x256xf32, #tpu.memory_space<vmem>>, vector<8x256xf32>,
    return
  }
  func.func @transform_0(%arg0: i32) -> (i32, i32) {
    %c0_i32 = arith.constant 0 : i32
    %c0_i32_0 = arith.constant 0 : i32
    return %arg0, %c0_i32 : i32, i32
  }
  func.func @transform_1(%arg0: i32) -> (i32, i32) {
    %c0_i32 = arith.constant 0 : i32
    %c0_i32_0 = arith.constant 0 : i32
    return %arg0, %c0_i32 : i32, i32
  }
  func.func @transform_2(%arg0: i32) -> (i32, i32) {
    %c0_i32 = arith.constant 0 : i32
    %c0_i32_0 = arith.constant 0 : i32
    %c0_i32_1 = arith.constant 0 : i32
    return %c0_i32, %c0_i32_0 : i32, i32
  }
  func.func @transform_3(%arg0: i32) -> (i32, i32) {
    %c0_i32 = arith.constant 0 : i32
    %c0_i32_0 = arith.constant 0 : i32
    %c0_i32_1 = arith.constant 0 : i32
    return %c0_i32, %c0_i32_0 : i32, i32
  }
  func.func @transform_4(%arg0: i32) -> (i32, i32) {
    %c0_i32 = arith.constant 0 : i32
    %c0_i32_0 = arith.constant 0 : i32
    %c0_i32_1 = arith.constant 0 : i32
    return %c0_i32, %c0_i32_0 : i32, i32
  }
  func.func @transform_5(%arg0: i32) -> (i32, i32) {
    %c0_i32 = arith.constant 0 : i32
    %c0_i32_0 = arith.constant 0 : i32
    %c0_i32_1 = arith.constant 0 : i32
    return %c0_i32, %c0_i32_0 : i32, i32
  }
  func.func @transform_6(%arg0: i32) -> (i32, i32) {
    %c0_i32 = arith.constant 0 : i32
    %c0_i32_0 = arith.constant 0 : i32
    %c0_i32_1 = arith.constant 0 : i32
    return %c0_i32, %c0_i32_0 : i32, i32
  }
  func.func @transform_7(%arg0: i32) -> (i32, i32) {
    %c0_i32 = arith.constant 0 : i32
    %c0_i32_0 = arith.constant 0 : i32
    return %arg0, %c0_i32 : i32, i32
  }
}

module attributes {stable_mosaic.version = 11 : i64} {
  func.func @_head_kernel(%arg0: i32, %arg1: memref<8x768xbf16, #tpu.memory_space<vmem>>, %arg2: memref<8x768xbf16, #tpu.memory_space<vmem>>, %arg3: memref<768x512xbf16, #tpu.memory_space<vmem>>, %arg4: memref<768x512xbf16, #tpu.memory_space<vmem>>, %arg5: memref<1x512xf32, #tpu.memory_space<vmem>>, %arg6: memref<512x256xbf16, #tpu.memory_space<vmem>>, %arg7: memref<1x256xf32, #tpu.memory_space<vmem>>, %arg8: memref<8x256xf32, #tpu.memory_space<vmem>>) attributes {dimension_semantics = [#tpu.dimension_semantics<parallel>], iteration_bounds = array<i64: 1>, scalar_prefetch = 0 : i64, scratch_operands = 0 : i64, tpu.core_type = #tpu.core_type<tc>, window_params = [{transform_indices = @transform_0, window_bounds = array<i64: 8, 768>}, {transform_indices = @transform_1, window_bounds = array<i64: 8, 768>}, {pipeline_mode = #tpu.pipeline_mode<synchronous>, transform_indices = @transform_2, window_bounds = array<i64: 768, 512>}, {pipeline_mode = #tpu.pipeline_mode<synchronous>, transform_indices = @transform_3, window_bounds = array<i64: 768, 512>}, {pipeline_mode = #tpu.pipeline_mode<synchronous>, transform_indices = @transform_4, window_bounds = array<i64: 1, 512>}, {pipeline_mode = #tpu.pipeline_mode<synchronous>, transform_indices = @transform_5, window_bounds = array<i64: 512, 256>}, {pipeline_mode = #tpu.pipeline_mode<synchronous>, transform_indices = @transform_6, window_bounds = array<i64: 1, 256>}, {transform_indices = @transform_7, window_bounds = array<i64: 8, 256>}]} {
    %c0 = arith.constant 0 : index
    %c0_0 = arith.constant 0 : index
    %0 = vector.load %arg1[%c0, %c0_0] : memref<8x768xbf16, #tpu.memory_space<vmem>>, vector<8x768xbf16>
    %c0_1 = arith.constant 0 : index
    %c0_2 = arith.constant 0 : index
    %1 = vector.load %arg2[%c0_1, %c0_2] : memref<8x768xbf16, #tpu.memory_space<vmem>>, vector<8x768xbf16>
    %c0_3 = arith.constant 0 : index
    %c0_4 = arith.constant 0 : index
    %2 = vector.load %arg3[%c0_3, %c0_4] : memref<768x512xbf16, #tpu.memory_space<vmem>>, vector<768x512xbf16>
    %cst = arith.constant dense<0.000000e+00> : vector<8x512xf32>
    %3 = tpu.matmul %0, %2, %cst {dimension_numbers = #tpu.dot_dimension_numbers<[1], [0], [0], [1], [0, 0, 1, 1], [], []>} : vector<8x768xbf16>, vector<768x512xbf16>, vector<8x512xf32> -> vector<8x512xf32>
    %c0_5 = arith.constant 0 : index
    %c0_6 = arith.constant 0 : index
    %4 = vector.load %arg4[%c0_5, %c0_6] : memref<768x512xbf16, #tpu.memory_space<vmem>>, vector<768x512xbf16>
    %cst_7 = arith.constant dense<0.000000e+00> : vector<8x512xf32>
    %5 = tpu.matmul %1, %4, %cst_7 {dimension_numbers = #tpu.dot_dimension_numbers<[1], [0], [0], [1], [0, 0, 1, 1], [], []>} : vector<8x768xbf16>, vector<768x512xbf16>, vector<8x512xf32> -> vector<8x512xf32>
    %6 = arith.addf %3, %5 : vector<8x512xf32>
    %c0_8 = arith.constant 0 : index
    %c0_9 = arith.constant 0 : index
    %7 = vector.load %arg5[%c0_8, %c0_9] : memref<1x512xf32, #tpu.memory_space<vmem>>, vector<1x512xf32>
    %8 = vector.broadcast %7 : vector<1x512xf32> to vector<8x512xf32>
    %9 = arith.addf %6, %8 : vector<8x512xf32>
    %cst_10 = arith.constant 0.000000e+00 : f32
    %10 = vector.broadcast %cst_10 : f32 to vector<8x512xf32>
    %11 = arith.maximumf %9, %10 : vector<8x512xf32>
    %12 = arith.truncf %11 : vector<8x512xf32> to vector<8x512xbf16>
    %c0_11 = arith.constant 0 : index
    %c0_12 = arith.constant 0 : index
    %13 = vector.load %arg6[%c0_11, %c0_12] : memref<512x256xbf16, #tpu.memory_space<vmem>>, vector<512x256xbf16>
    %cst_13 = arith.constant dense<0.000000e+00> : vector<8x256xf32>
    %14 = tpu.matmul %12, %13, %cst_13 {dimension_numbers = #tpu.dot_dimension_numbers<[1], [0], [0], [1], [0, 0, 1, 1], [], []>} : vector<8x512xbf16>, vector<512x256xbf16>, vector<8x256xf32> -> vector<8x256xf32>
    %c0_14 = arith.constant 0 : index
    %c0_15 = arith.constant 0 : index
    %15 = vector.load %arg7[%c0_14, %c0_15] : memref<1x256xf32, #tpu.memory_space<vmem>>, vector<1x256xf32>
    %16 = vector.broadcast %15 : vector<1x256xf32> to vector<8x256xf32>
    %17 = arith.addf %14, %16 : vector<8x256xf32>
    %c0_16 = arith.constant 0 : index
    %c0_17 = arith.constant 0 : index
    %18 = vector.load %arg8[%c0_16, %c0_17] : memref<8x256xf32, #tpu.memory_space<vmem>>, vector<8x256xf32>
    tpu.vector_store %arg8[%c0_16, %c0_17], %17 {strides = array<i32>} : memref<8x256xf32, #tpu.memory_space<vmem>>, vector<8x256xf32>,
    return
  }
  func.func @transform_0(%arg0: i32) -> (i32, i32) {
    %c0_i32 = arith.constant 0 : i32
    %c0_i32_0 = arith.constant 0 : i32
    return %arg0, %c0_i32 : i32, i32
  }
  func.func @transform_1(%arg0: i32) -> (i32, i32) {
    %c0_i32 = arith.constant 0 : i32
    %c0_i32_0 = arith.constant 0 : i32
    return %arg0, %c0_i32 : i32, i32
  }
  func.func @transform_2(%arg0: i32) -> (i32, i32) {
    %c0_i32 = arith.constant 0 : i32
    %c0_i32_0 = arith.constant 0 : i32
    %c0_i32_1 = arith.constant 0 : i32
    return %c0_i32, %c0_i32_0 : i32, i32
  }
  func.func @transform_3(%arg0: i32) -> (i32, i32) {
    %c0_i32 = arith.constant 0 : i32
    %c0_i32_0 = arith.constant 0 : i32
    %c0_i32_1 = arith.constant 0 : i32
    return %c0_i32, %c0_i32_0 : i32, i32
  }
  func.func @transform_4(%arg0: i32) -> (i32, i32) {
    %c0_i32 = arith.constant 0 : i32
    %c0_i32_0 = arith.constant 0 : i32
    %c0_i32_1 = arith.constant 0 : i32
    return %c0_i32, %c0_i32_0 : i32, i32
  }
  func.func @transform_5(%arg0: i32) -> (i32, i32) {
    %c0_i32 = arith.constant 0 : i32
    %c0_i32_0 = arith.constant 0 : i32
    %c0_i32_1 = arith.constant 0 : i32
    return %c0_i32, %c0_i32_0 : i32, i32
  }
  func.func @transform_6(%arg0: i32) -> (i32, i32) {
    %c0_i32 = arith.constant 0 : i32
    %c0_i32_0 = arith.constant 0 : i32
    %c0_i32_1 = arith.constant 0 : i32
    return %c0_i32, %c0_i32_0 : i32, i32
  }
  func.func @transform_7(%arg0: i32) -> (i32, i32) {
    %c0_i32 = arith.constant 0 : i32
    %c0_i32_0 = arith.constant 0 : i32
    return %arg0, %c0_i32 : i32, i32
  }
}

</mosaic_0001>

<llo_original>
// kernel: tpu_custom_call.1
$region0: #{tpu_custom_call.1}
  #allocation0 [shape = 'u32[]', space=smem, size = 0x4, offset = 0x4, fixed_abs, tag = 'smem constant byte address 0x4 - core index']
  #allocation1 [shape = 'u32[144,128]{1,0:T(1,128)}', space=vmem, size = 0x12000, scoped, tag = 'internal scratch']
  %s0 = inlined_call_operand.hbm [shape: bf16[2,768], index: 0, kind: input, shape index: {}]
  %s1 = inlined_call_operand.hbm [shape: bf16[2,768], index: 1, kind: input, shape index: {}]
  %s2 = inlined_call_operand.hbm [shape: bf16[768,512], index: 2, kind: input, shape index: {}]
  %s3 = inlined_call_operand.hbm [shape: bf16[768,512], index: 3, kind: input, shape index: {}]
  %s4 = inlined_call_operand.vmem [shape: f32[1,512], index: 4, kind: input, shape index: {}]
  %s5 = inlined_call_operand.hbm [shape: bf16[512,256], index: 5, kind: input, shape index: {}]
  %s6 = inlined_call_operand.vmem [shape: f32[1,256], index: 6, kind: input, shape index: {}]
  %s7 = inlined_call_operand.hbm [shape: f32[2,256], index: 7, kind: output, shape index: {}]
  %s8 = sld [smem:[#allocation0]]
  $region58: #{tpu_custom_call.1} parent=0
    _
  %s10 = ssub.s32 1, %s8
  %s11 = scalar_select 0, %s10, %s8
  $region1: #{tpu_custom_call.1} parent=0
    #allocation2 [shape = 'u8[12288]{0}', space=vmem, size = 0x3000, scoped, tag = 'input window, operand 0, single buffered']
    #allocation3 [shape = 's32[1]{0}', space=sflag, size = 0x4, scoped, tag = 'scoped memory for tpu_custom_call.1']
    #allocation4 [shape = 's32[1]{0}', space=sflag, size = 0x4, scoped, tag = 'scoped memory for tpu_custom_call.1']
    #allocation5 [shape = 'u8[12288]{0}', space=vmem, size = 0x3000, scoped, tag = 'input window, operand 1, single buffered']
    #allocation6 [shape = 's32[1]{0}', space=sflag, size = 0x4, scoped, tag = 'scoped memory for tpu_custom_call.1']
    #allocation7 [shape = 'u8[786432]{0}', space=vmem, size = 0xc0000, scoped, tag = 'input window, operand 2, single buffered']
    #allocation8 [shape = 'u8[786432]{0}', space=vmem, size = 0xc0000, scoped, tag = 'input window, operand 3, single buffered']
    #allocation9 [shape = 's32[1]{0}', space=sflag, size = 0x4, scoped, tag = 'scoped memory for tpu_custom_call.1']
    #allocation10 [shape = 'u8[262144]{0}', space=vmem, size = 0x40000, scoped, tag = 'input window, operand 5, single buffered']
    #allocation11 [shape = 'u8[8192]{0}', space=vmem, size = 0x2000, scoped, tag = 'output window, operand 0, single buffered']
    %12 = vsyncpa [#allocation3], 0
    %13 = vsyncpa [#allocation6], 0
    %14 = vsyncpa [#allocation9], 0
    %15 = vsyncpa [#allocation4], 0
    // Predicated region
    $region2: #{tpu_custom_call.1} parent=1 // pred_check
      _
    $region3: #{tpu_custom_call.1} parent=1 // pred_check_branch
      %17 = sbr.rel (0) target = $region5
    $region4: #{tpu_custom_call.1} parent=1 // pred_region
      %s19 = ssub.s32 384, 96
      %20 = vsyncadd [#allocation3], %s19
      %s21 = sshll.u32 [#allocation2], 4
      %s22 = int_to_ptr.vmem [resolvable:$true] %s21
      %27 = dma.hbm_to_vmem [thread:$0]  %s0, 96, %s22, [#allocation3], 96, 96, 6
    $region5: #{tpu_custom_call.1} parent=1 // pred_fallthru
      _
    // Predicated region
    $region6: #{tpu_custom_call.1} parent=1 // pred_check
      _
    $region7: #{tpu_custom_call.1} parent=1 // pred_check_branch
      %29 = sbr.rel (0) target = $region9
    $region8: #{tpu_custom_call.1} parent=1 // pred_region
      %s31 = ssub.s32 384, 96
      %32 = vsyncadd [#allocation6], %s31
      %s33 = sshll.u32 [#allocation5], 4
      %s34 = int_to_ptr.vmem [resolvable:$true] %s33
      %39 = dma.hbm_to_vmem [thread:$0]  %s1, 96, %s34, [#allocation6], 96, 96, 6
    $region9: #{tpu_custom_call.1} parent=1 // pred_fallthru
      _
    // Predicated region
    $region10: #{tpu_custom_call.1} parent=1 // pred_check
      _
    $region11: #{tpu_custom_call.1} parent=1 // pred_check_branch
      %41 = sbr.rel (0) target = $region13
    $region12: #{tpu_custom_call.1} parent=1 // pred_region
      %s43 = ssub.s32 24576, 24576
      %44 = vsyncadd [#allocation6], %s43
      %s45 = sshll.u32 [#allocation7], 4
      %s46 = int_to_ptr.vmem [resolvable:$true] %s45
      %51 = dma.hbm_to_vmem [thread:$0]  %s2, 24576, %s46, [#allocation6], 256, 256, 16
    $region13: #{tpu_custom_call.1} parent=1 // pred_fallthru
      _
    // Predicated region
    $region14: #{tpu_custom_call.1} parent=1 // pred_check
      _
    $region15: #{tpu_custom_call.1} parent=1 // pred_check_branch
      %53 = sbr.rel (0) target = $region17
    $region16: #{tpu_custom_call.1} parent=1 // pred_region
      %s55 = ssub.s32 24576, 24576
      %56 = vsyncadd [#allocation9], %s55
      %s57 = sshll.u32 [#allocation8], 4
      %s58 = int_to_ptr.vmem [resolvable:$true] %s57
      %63 = dma.hbm_to_vmem [thread:$0]  %s3, 24576, %s58, [#allocation9], 256, 256, 16
    $region17: #{tpu_custom_call.1} parent=1 // pred_fallthru
      _
    // Predicated region
    $region18: #{tpu_custom_call.1} parent=1 // pred_check
      _
    $region19: #{tpu_custom_call.1} parent=1 // pred_check_branch
      %65 = sbr.rel (0) target = $region21
    $region20: #{tpu_custom_call.1} parent=1 // pred_region
      _
    $region21: #{tpu_custom_call.1} parent=1 // pred_fallthru
      _
    // Predicated region
    $region22: #{tpu_custom_call.1} parent=1 // pred_check
      _
    $region23: #{tpu_custom_call.1} parent=1 // pred_check_branch
      %67 = sbr.rel (0) target = $region25
    $region24: #{tpu_custom_call.1} parent=1 // pred_region
      %s69 = ssub.s32 8192, 8192
      %70 = vsyncadd [#allocation9], %s69
      %s71 = sshll.u32 [#allocation10], 4
      %s72 = int_to_ptr.vmem [resolvable:$true] %s71
      %77 = dma.hbm_to_vmem [thread:$0]  %s5, 8192, %s72, [#allocation9], 128, 128, 8
    $region25: #{tpu_custom_call.1} parent=1 // pred_fallthru
      _
    // Predicated region
    $region26: #{tpu_custom_call.1} parent=1 // pred_check
      _
    $region27: #{tpu_custom_call.1} parent=1 // pred_check_branch
      %79 = sbr.rel (0) target = $region29
    $region28: #{tpu_custom_call.1} parent=1 // pred_region
      _
    $region29: #{tpu_custom_call.1} parent=1 // pred_fallthru
      _
    // Predicated region
    $region30: #{tpu_custom_call.1} parent=1 // pred_check
      _
    $region31: #{tpu_custom_call.1} parent=1 // pred_check_branch
      %81 = sbr.rel (0) target = $region33
    $region32: #{tpu_custom_call.1} parent=1 // pred_region
      %82 = dma.done [#allocation3], 384
    $region33: #{tpu_custom_call.1} parent=1 // pred_fallthru
      _
    // Predicated region
    $region34: #{tpu_custom_call.1} parent=1 // pred_check
      _
    $region35: #{tpu_custom_call.1} parent=1 // pred_check_branch
      %84 = sbr.rel (0) target = $region37
    $region36: #{tpu_custom_call.1} parent=1 // pred_region
      %85 = dma.done [#allocation6], 384
    $region37: #{tpu_custom_call.1} parent=1 // pred_fallthru
      _
    // Predicated region
    $region38: #{tpu_custom_call.1} parent=1 // pred_check
      _
    $region39: #{tpu_custom_call.1} parent=1 // pred_check_branch
      %87 = sbr.rel (0) target = $region41
    $region40: #{tpu_custom_call.1} parent=1 // pred_region
      %88 = dma.done [#allocation6], 24576
    $region41: #{tpu_custom_call.1} parent=1 // pred_fallthru
      _
    // Predicated region
    $region42: #{tpu_custom_call.1} parent=1 // pred_check
      _
    $region43: #{tpu_custom_call.1} parent=1 // pred_check_branch
      %90 = sbr.rel (0) target = $region45
    $region44: #{tpu_custom_call.1} parent=1 // pred_region
      %91 = dma.done [#allocation9], 24576
    $region45: #{tpu_custom_call.1} parent=1 // pred_fallthru
      _
    // Predicated region
    $region46: #{tpu_custom_call.1} parent=1 // pred_check
      _
    $region47: #{tpu_custom_call.1} parent=1 // pred_check_branch
      %93 = sbr.rel (0) target = $region49
    $region48: #{tpu_custom_call.1} parent=1 // pred_region
      %94 = dma.done [#allocation9], 8192
    $region49: #{tpu_custom_call.1} parent=1 // pred_fallthru
      _
    %v95 = vld [vmem:[#allocation2] sm:$0x3f]
    %v96 = vld [vmem:[#allocation2 + $0x6] sm:$0x3f]
    %v97 = vld [vmem:[#allocation2 + $0xc] sm:$0x3f]
    %v98 = vld [vmem:[#allocation2 + $0x12] sm:$0x3f]
    %v99 = vld [vmem:[#allocation5] sm:$0x3f]
    %v100 = vld [vmem:[#allocation5 + $0x6] sm:$0x3f]
    %v101 = vld [vmem:[#allocation5 + $0xc] sm:$0x3f]
    %v102 = vld [vmem:[#allocation5 + $0x12] sm:$0x3f]
    %v103 = vld [vmem:[#allocation7] sm:$0xff]
    %v104 = vld [vmem:[#allocation7 + $0x8] sm:$0xff]
    %v105 = vld [vmem:[#allocation7 + $0x10] sm:$0xff]
    %v106 = vld [vmem:[#allocation7 + $0x18] sm:$0xff]
    %v107 = vld [vmem:[#allocation7 + $0x20] sm:$0xff]
    %v108 = vld [vmem:[#allocation7 + $0x28] sm:$0xff]
    %v109 = vld [vmem:[#allocation7 + $0x30] sm:$0xff]
    %v110 = vld [vmem:[#allocation7 + $0x38] sm:$0xff]
    %v111 = vld [vmem:[#allocation7 + $0x40] sm:$0xff]
    %v112 = vld [vmem:[#allocation7 + $0x48] sm:$0xff]
    %v113 = vld [vmem:[#allocation7 + $0x50] sm:$0xff]
    %v114 = vld [vmem:[#allocation7 + $0x58] sm:$0xff]
    %v115 = vld [vmem:[#allocation7 + $0x60] sm:$0xff]
    %v116 = vld [vmem:[#allocation7 + $0x68] sm:$0xff]
    %v117 = vld [vmem:[#allocation7 + $0x70] sm:$0xff]
    %v118 = vld [vmem:[#allocation7 + $0x78] sm:$0xff]
    %v119 = vld [vmem:[#allocation7 + $0x80] sm:$0xff]
    %v120 = vld [vmem:[#allocation7 + $0x88] sm:$0xff]
    %v121 = vld [vmem:[#allocation7 + $0x90] sm:$0xff]
    %v122 = vld [vmem:[#allocation7 + $0x98] sm:$0xff]
    %v123 = vld [vmem:[#allocation7 + $0xa0] sm:$0xff]
    %v124 = vld [vmem:[#allocation7 + $0xa8] sm:$0xff]
    %v125 = vld [vmem:[#allocation7 + $0xb0] sm:$0xff]
    %v126 = vld [vmem:[#allocation7 + $0xb8] sm:$0xff]
    %v127 = vld [vmem:[#allocation7 + $0xc0] sm:$0xff]
    %v128 = vld [vmem:[#allocation7 + $0xc8] sm:$0xff]
    %v129 = vld [vmem:[#allocation7 + $0xd0] sm:$0xff]
    %v130 = vld [vmem:[#allocation7 + $0xd8] sm:$0xff]
    %v131 = vld [vmem:[#allocation7 + $0xe0] sm:$0xff]
    %v132 = vld [vmem:[#allocation7 + $0xe8] sm:$0xff]
    %v133 = vld [vmem:[#allocation7 + $0xf0] sm:$0xff]
    %v134 = vld [vmem:[#allocation7 + $0xf8] sm:$0xff]
    %v135 = vld [vmem:[#allocation7 + $0x100] sm:$0xff]
    %v136 = vld [vmem:[#allocation7 + $0x108] sm:$0xff]
    %v137 = vld [vmem:[#allocation7 + $0x110] sm:$0xff]
    %v138 = vld [vmem:[#allocation7 + $0x118] sm:$0xff]
    %v139 = vld [vmem:[#allocation7 + $0x120] sm:$0xff]
    %v140 = vld [vmem:[#allocation7 + $0x128] sm:$0xff]
    %v141 = vld [vmem:[#allocation7 + $0x130] sm:$0xff]
    %v142 = vld [vmem:[#allocation7 + $0x138] sm:$0xff]
    %v143 = vld [vmem:[#allocation7 + $0x140] sm:$0xff]
    %v144 = vld [vmem:[#allocation7 + $0x148] sm:$0xff]
    %v145 = vld [vmem:[#allocation7 + $0x150] sm:$0xff]
    %v146 = vld [vmem:[#allocation7 + $0x158] sm:$0xff]
    %v147 = vld [vmem:[#allocation7 + $0x160] sm:$0xff]
    %v148 = vld [vmem:[#allocation7 + $0x168] sm:$0xff]
    %v149 = vld [vmem:[#allocation7 + $0x170] sm:$0xff]
    %v150 = vld [vmem:[#allocation7 + $0x178] sm:$0xff]
    %v151 = vld [vmem:[#allocation7 + $0x180] sm:$0xff]
    %v152 = vld [vmem:[#allocation7 + $0x188] sm:$0xff]
    %v153 = vld [vmem:[#allocation7 + $0x190] sm:$0xff]
    %v154 = vld [vmem:[#allocation7 + $0x198] sm:$0xff]
    %v155 = vld [vmem:[#allocation7 + $0x1a0] sm:$0xff]
    %v156 = vld [vmem:[#allocation7 + $0x1a8] sm:$0xff]
    %v157 = vld [vmem:[#allocation7 + $0x1b0] sm:$0xff]
    %v158 = vld [vmem:[#allocation7 + $0x1b8] sm:$0xff]
    %v159 = vld [vmem:[#allocation7 + $0x1c0] sm:$0xff]
    %v160 = vld [vmem:[#allocation7 + $0x1c8] sm:$0xff]
    %v161 = vld [vmem:[#allocation7 + $0x1d0] sm:$0xff]
    %v162 = vld [vmem:[#allocation7 + $0x1d8] sm:$0xff]
    %v163 = vld [vmem:[#allocation7 + $0x1e0] sm:$0xff]
    %v164 = vld [vmem:[#allocation7 + $0x1e8] sm:$0xff]
    %v165 = vld [vmem:[#allocation7 + $0x1f0] sm:$0xff]
    %v166 = vld [vmem:[#allocation7 + $0x1f8] sm:$0xff]
    %v167 = vld [vmem:[#allocation7 + $0x200] sm:$0xff]
    %v168 = vld [vmem:[#allocation7 + $0x208] sm:$0xff]
    %v169 = vld [vmem:[#allocation7 + $0x210] sm:$0xff]
    %v170 = vld [vmem:[#allocation7 + $0x218] sm:$0xff]
    %v171 = vld [vmem:[#allocation7 + $0x220] sm:$0xff]
    %v172 = vld [vmem:[#allocation7 + $0x228] sm:$0xff]
    %v173 = vld [vmem:[#allocation7 + $0x230] sm:$0xff]
    %v174 = vld [vmem:[#allocation7 + $0x238] sm:$0xff]
    %v175 = vld [vmem:[#allocation7 + $0x240] sm:$0xff]
    %v176 = vld [vmem:[#allocation7 + $0x248] sm:$0xff]
    %v177 = vld [vmem:[#allocation7 + $0x250] sm:$0xff]
    %v178 = vld [vmem:[#allocation7 + $0x258] sm:$0xff]
    %v179 = vld [vmem:[#allocation7 + $0x260] sm:$0xff]
    %v180 = vld [vmem:[#allocation7 + $0x268] sm:$0xff]
    %v181 = vld [vmem:[#allocation7 + $0x270] sm:$0xff]
    %v182 = vld [vmem:[#allocation7 + $0x278] sm:$0xff]
    %v183 = vld [vmem:[#allocation7 + $0x280] sm:$0xff]
    %v184 = vld [vmem:[#allocation7 + $0x288] sm:$0xff]
    %v185 = vld [vmem:[#allocation7 + $0x290] sm:$0xff]
    %v186 = vld [vmem:[#allocation7 + $0x298] sm:$0xff]
    %v187 = vld [vmem:[#allocation7 + $0x2a0] sm:$0xff]
    %v188 = vld [vmem:[#allocation7 + $0x2a8] sm:$0xff]
    %v189 = vld [vmem:[#allocation7 + $0x2b0] sm:$0xff]
    %v190 = vld [vmem:[#allocation7 + $0x2b8] sm:$0xff]
    %v191 = vld [vmem:[#allocation7 + $0x2c0] sm:$0xff]
    %v192 = vld [vmem:[#allocation7 + $0x2c8] sm:$0xff]
    %v193 = vld [vmem:[#allocation7 + $0x2d0] sm:$0xff]
    %v194 = vld [vmem:[#allocation7 + $0x2d8] sm:$0xff]
    %v195 = vld [vmem:[#allocation7 + $0x2e0] sm:$0xff]
    %v196 = vld [vmem:[#allocation7 + $0x2e8] sm:$0xff]
    %v197 = vld [vmem:[#allocation7 + $0x2f0] sm:$0xff]
    %v198 = vld [vmem:[#allocation7 + $0x2f8] sm:$0xff]
    %v199 = vld [vmem:[#allocation7 + $0x300] sm:$0xff]
    %v200 = vld [vmem:[#allocation7 + $0x308] sm:$0xff]
    %v201 = vld [vmem:[#allocation7 + $0x310] sm:$0xff]
    %v202 = vld [vmem:[#allocation7 + $0x318] sm:$0xff]
    %v203 = vld [vmem:[#allocation7 + $0x320] sm:$0xff]
    %v204 = vld [vmem:[#allocation7 + $0x328] sm:$0xff]
    %v205 = vld [vmem:[#allocation7 + $0x330] sm:$0xff]
    %v206 = vld [vmem:[#allocation7 + $0x338] sm:$0xff]
    %v207 = vld [vmem:[#allocation7 + $0x340] sm:$0xff]
    %v208 = vld [vmem:[#allocation7 + $0x348] sm:$0xff]
    %v209 = vld [vmem:[#allocation7 + $0x350] sm:$0xff]
    %v210 = vld [vmem:[#allocation7 + $0x358] sm:$0xff]
    %v211 = vld [vmem:[#allocation7 + $0x360] sm:$0xff]
    %v212 = vld [vmem:[#allocation7 + $0x368] sm:$0xff]
    %v213 = vld [vmem:[#allocation7 + $0x370] sm:$0xff]
    %v214 = vld [vmem:[#allocation7 + $0x378] sm:$0xff]
    %v215 = vld [vmem:[#allocation7 + $0x380] sm:$0xff]
    %v216 = vld [vmem:[#allocation7 + $0x388] sm:$0xff]
    %v217 = vld [vmem:[#allocation7 + $0x390] sm:$0xff]
    %v218 = vld [vmem:[#allocation7 + $0x398] sm:$0xff]
    %v219 = vld [vmem:[#allocation7 + $0x3a0] sm:$0xff]
    %v220 = vld [vmem:[#allocation7 + $0x3a8] sm:$0xff]
    %v221 = vld [vmem:[#allocation7 + $0x3b0] sm:$0xff]
    %v222 = vld [vmem:[#allocation7 + $0x3b8] sm:$0xff]
    %v223 = vld [vmem:[#allocation7 + $0x3c0] sm:$0xff]
    %v224 = vld [vmem:[#allocation7 + $0x3c8] sm:$0xff]
    %v225 = vld [vmem:[#allocation7 + $0x3d0] sm:$0xff]
    %v226 = vld [vmem:[#allocation7 + $0x3d8] sm:$0xff]
    %v227 = vld [vmem:[#allocation7 + $0x3e0] sm:$0xff]
    %v228 = vld [vmem:[#allocation7 + $0x3e8] sm:$0xff]
    %v229 = vld [vmem:[#allocation7 + $0x3f0] sm:$0xff]
    %v230 = vld [vmem:[#allocation7 + $0x3f8] sm:$0xff]
    %v231 = vld [vmem:[#allocation7 + $0x400] sm:$0xff]
    %v232 = vld [vmem:[#allocation7 + $0x408] sm:$0xff]
    %v233 = vld [vmem:[#allocation7 + $0x410] sm:$0xff]
    %v234 = vld [vmem:[#allocation7 + $0x418] sm:$0xff]
    %v235 = vld [vmem:[#allocation7 + $0x420] sm:$0xff]
    %v236 = vld [vmem:[#allocation7 + $0x428] sm:$0xff]
    %v237 = vld [vmem:[#allocation7 + $0x430] sm:$0xff]
    %v238 = vld [vmem:[#allocation7 + $0x438] sm:$0xff]
    %v239 = vld [vmem:[#allocation7 + $0x440] sm:$0xff]
    %v240 = vld [vmem:[#allocation7 + $0x448] sm:$0xff]
    %v241 = vld [vmem:[#allocation7 + $0x450] sm:$0xff]
    %v242 = vld [vmem:[#allocation7 + $0x458] sm:$0xff]
    %v243 = vld [vmem:[#allocation7 + $0x460] sm:$0xff]
    %v244 = vld [vmem:[#allocation7 + $0x468] sm:$0xff]
    %v245 = vld [vmem:[#allocation7 + $0x470] sm:$0xff]
    %v246 = vld [vmem:[#allocation7 + $0x478] sm:$0xff]
    %v247 = vld [vmem:[#allocation7 + $0x480] sm:$0xff]
    %v248 = vld [vmem:[#allocation7 + $0x488] sm:$0xff]
    %v249 = vld [vmem:[#allocation7 + $0x490] sm:$0xff]
    %v250 = vld [vmem:[#allocation7 + $0x498] sm:$0xff]
    %v251 = vld [vmem:[#allocation7 + $0x4a0] sm:$0xff]
    %v252 = vld [vmem:[#allocation7 + $0x4a8] sm:$0xff]
    %v253 = vld [vmem:[#allocation7 + $0x4b0] sm:$0xff]
    %v254 = vld [vmem:[#allocation7 + $0x4b8] sm:$0xff]
    %v255 = vld [vmem:[#allocation7 + $0x4c0] sm:$0xff]
    %v256 = vld [vmem:[#allocation7 + $0x4c8] sm:$0xff]
    %v257 = vld [vmem:[#allocation7 + $0x4d0] sm:$0xff]
    %v258 = vld [vmem:[#allocation7 + $0x4d8] sm:$0xff]
    %v259 = vld [vmem:[#allocation7 + $0x4e0] sm:$0xff]
    %v260 = vld [vmem:[#allocation7 + $0x4e8] sm:$0xff]
    %v261 = vld [vmem:[#allocation7 + $0x4f0] sm:$0xff]
    %v262 = vld [vmem:[#allocation7 + $0x4f8] sm:$0xff]
    %v263 = vld [vmem:[#allocation7 + $0x500] sm:$0xff]
    %v264 = vld [vmem:[#allocation7 + $0x508] sm:$0xff]
    %v265 = vld [vmem:[#allocation7 + $0x510] sm:$0xff]
    %v266 = vld [vmem:[#allocation7 + $0x518] sm:$0xff]
    %v267 = vld [vmem:[#allocation7 + $0x520] sm:$0xff]
    %v268 = vld [vmem:[#allocation7 + $0x528] sm:$0xff]
    %v269 = vld [vmem:[#allocation7 + $0x530] sm:$0xff]
    %v270 = vld [vmem:[#allocation7 + $0x538] sm:$0xff]
    %v271 = vld [vmem:[#allocation7 + $0x540] sm:$0xff]
    %v272 = vld [vmem:[#allocation7 + $0x548] sm:$0xff]
    %v273 = vld [vmem:[#allocation7 + $0x550] sm:$0xff]
    %v274 = vld [vmem:[#allocation7 + $0x558] sm:$0xff]
    %v275 = vld [vmem:[#allocation7 + $0x560] sm:$0xff]
    %v276 = vld [vmem:[#allocation7 + $0x568] sm:$0xff]
    %v277 = vld [vmem:[#allocation7 + $0x570] sm:$0xff]
    %v278 = vld [vmem:[#allocation7 + $0x578] sm:$0xff]
    %v279 = vld [vmem:[#allocation7 + $0x580] sm:$0xff]
    %v280 = vld [vmem:[#allocation7 + $0x588] sm:$0xff]
    %v281 = vld [vmem:[#allocation7 + $0x590] sm:$0xff]
    %v282 = vld [vmem:[#allocation7 + $0x598] sm:$0xff]
    %v283 = vld [vmem:[#allocation7 + $0x5a0] sm:$0xff]
    %v284 = vld [vmem:[#allocation7 + $0x5a8] sm:$0xff]
    %v285 = vld [vmem:[#allocation7 + $0x5b0] sm:$0xff]
    %v286 = vld [vmem:[#allocation7 + $0x5b8] sm:$0xff]
    %v287 = vld [vmem:[#allocation7 + $0x5c0] sm:$0xff]
    %v288 = vld [vmem:[#allocation7 + $0x5c8] sm:$0xff]
    %v289 = vld [vmem:[#allocation7 + $0x5d0] sm:$0xff]
    %v290 = vld [vmem:[#allocation7 + $0x5d8] sm:$0xff]
    %v291 = vld [vmem:[#allocation7 + $0x5e0] sm:$0xff]
    %v292 = vld [vmem:[#allocation7 + $0x5e8] sm:$0xff]
    %v293 = vld [vmem:[#allocation7 + $0x5f0] sm:$0xff]
    %v294 = vld [vmem:[#allocation7 + $0x5f8] sm:$0xff]
    %v295 = vld [vmem:[#allocation8] sm:$0xff]
    %v296 = vld [vmem:[#allocation8 + $0x8] sm:$0xff]
    %v297 = vld [vmem:[#allocation8 + $0x10] sm:$0xff]
    %v298 = vld [vmem:[#allocation8 + $0x18] sm:$0xff]
    %v299 = vld [vmem:[#allocation8 + $0x20] sm:$0xff]
    %v300 = vld [vmem:[#allocation8 + $0x28] sm:$0xff]
    %v301 = vld [vmem:[#allocation8 + $0x30] sm:$0xff]
    %v302 = vld [vmem:[#allocation8 + $0x38] sm:$0xff]
    %v303 = vld [vmem:[#allocation8 + $0x40] sm:$0xff]
    %v304 = vld [vmem:[#allocation8 + $0x48] sm:$0xff]
    %v305 = vld [vmem:[#allocation8 + $0x50] sm:$0xff]
    %v306 = vld [vmem:[#allocation8 + $0x58] sm:$0xff]
    %v307 = vld [vmem:[#allocation8 + $0x60] sm:$0xff]
    %v308 = vld [vmem:[#allocation8 + $0x68] sm:$0xff]
    %v309 = vld [vmem:[#allocation8 + $0x70] sm:$0xff]
    %v310 = vld [vmem:[#allocation8 + $0x78] sm:$0xff]
    %v311 = vld [vmem:[#allocation8 + $0x80] sm:$0xff]
    %v312 = vld [vmem:[#allocation8 + $0x88] sm:$0xff]
    %v313 = vld [vmem:[#allocation8 + $0x90] sm:$0xff]
    %v314 = vld [vmem:[#allocation8 + $0x98] sm:$0xff]
    %v315 = vld [vmem:[#allocation8 + $0xa0] sm:$0xff]
    %v316 = vld [vmem:[#allocation8 + $0xa8] sm:$0xff]
    %v317 = vld [vmem:[#allocation8 + $0xb0] sm:$0xff]
    %v318 = vld [vmem:[#allocation8 + $0xb8] sm:$0xff]
    %v319 = vld [vmem:[#allocation8 + $0xc0] sm:$0xff]
    %v320 = vld [vmem:[#allocation8 + $0xc8] sm:$0xff]
    %v321 = vld [vmem:[#allocation8 + $0xd0] sm:$0xff]
    %v322 = vld [vmem:[#allocation8 + $0xd8] sm:$0xff]
    %v323 = vld [vmem:[#allocation8 + $0xe0] sm:$0xff]
    %v324 = vld [vmem:[#allocation8 + $0xe8] sm:$0xff]
    %v325 = vld [vmem:[#allocation8 + $0xf0] sm:$0xff]
    %v326 = vld [vmem:[#allocation8 + $0xf8] sm:$0xff]
    %v327 = vld [vmem:[#allocation8 + $0x100] sm:$0xff]
    %v328 = vld [vmem:[#allocation8 + $0x108] sm:$0xff]
    %v329 = vld [vmem:[#allocation8 + $0x110] sm:$0xff]
    %v330 = vld [vmem:[#allocation8 + $0x118] sm:$0xff]
    %v331 = vld [vmem:[#allocation8 + $0x120] sm:$0xff]
    %v332 = vld [vmem:[#allocation8 + $0x128] sm:$0xff]
    %v333 = vld [vmem:[#allocation8 + $0x130] sm:$0xff]
    %v334 = vld [vmem:[#allocation8 + $0x138] sm:$0xff]
    %v335 = vld [vmem:[#allocation8 + $0x140] sm:$0xff]
    %v336 = vld [vmem:[#allocation8 + $0x148] sm:$0xff]
    %v337 = vld [vmem:[#allocation8 + $0x150] sm:$0xff]
    %v338 = vld [vmem:[#allocation8 + $0x158] sm:$0xff]
    %v339 = vld [vmem:[#allocation8 + $0x160] sm:$0xff]
    %v340 = vld [vmem:[#allocation8 + $0x168] sm:$0xff]
    %v341 = vld [vmem:[#allocation8 + $0x170] sm:$0xff]
    %v342 = vld [vmem:[#allocation8 + $0x178] sm:$0xff]
    %v343 = vld [vmem:[#allocation8 + $0x180] sm:$0xff]
    %v344 = vld [vmem:[#allocation8 + $0x188] sm:$0xff]
    %v345 = vld [vmem:[#allocation8 + $0x190] sm:$0xff]
    %v346 = vld [vmem:[#allocation8 + $0x198] sm:$0xff]
    %v347 = vld [vmem:[#allocation8 + $0x1a0] sm:$0xff]
    %v348 = vld [vmem:[#allocation8 + $0x1a8] sm:$0xff]
    %v349 = vld [vmem:[#allocation8 + $0x1b0] sm:$0xff]
    %v350 = vld [vmem:[#allocation8 + $0x1b8] sm:$0xff]
    %v351 = vld [vmem:[#allocation8 + $0x1c0] sm:$0xff]
    %v352 = vld [vmem:[#allocation8 + $0x1c8] sm:$0xff]
    %v353 = vld [vmem:[#allocation8 + $0x1d0] sm:$0xff]
    %v354 = vld [vmem:[#allocation8 + $0x1d8] sm:$0xff]
    %v355 = vld [vmem:[#allocation8 + $0x1e0] sm:$0xff]
    %v356 = vld [vmem:[#allocation8 + $0x1e8] sm:$0xff]
    %v357 = vld [vmem:[#allocation8 + $0x1f0] sm:$0xff]
    %v358 = vld [vmem:[#allocation8 + $0x1f8] sm:$0xff]
    %v359 = vld [vmem:[#allocation8 + $0x200] sm:$0xff]
    %v360 = vld [vmem:[#allocation8 + $0x208] sm:$0xff]
    %v361 = vld [vmem:[#allocation8 + $0x210] sm:$0xff]
    %v362 = vld [vmem:[#allocation8 + $0x218] sm:$0xff]
    %v363 = vld [vmem:[#allocation8 + $0x220] sm:$0xff]
    %v364 = vld [vmem:[#allocation8 + $0x228] sm:$0xff]
    %v365 = vld [vmem:[#allocation8 + $0x230] sm:$0xff]
    %v366 = vld [vmem:[#allocation8 + $0x238] sm:$0xff]
    %v367 = vld [vmem:[#allocation8 + $0x240] sm:$0xff]
    %v368 = vld [vmem:[#allocation8 + $0x248] sm:$0xff]
    %v369 = vld [vmem:[#allocation8 + $0x250] sm:$0xff]
    %v370 = vld [vmem:[#allocation8 + $0x258] sm:$0xff]
    %v371 = vld [vmem:[#allocation8 + $0x260] sm:$0xff]
    %v372 = vld [vmem:[#allocation8 + $0x268] sm:$0xff]
    %v373 = vld [vmem:[#allocation8 + $0x270] sm:$0xff]
    %v374 = vld [vmem:[#allocation8 + $0x278] sm:$0xff]
    %v375 = vld [vmem:[#allocation8 + $0x280] sm:$0xff]
    %v376 = vld [vmem:[#allocation8 + $0x288] sm:$0xff]
    %v377 = vld [vmem:[#allocation8 + $0x290] sm:$0xff]
    %v378 = vld [vmem:[#allocation8 + $0x298] sm:$0xff]
    %v379 = vld [vmem:[#allocation8 + $0x2a0] sm:$0xff]
    %v380 = vld [vmem:[#allocation8 + $0x2a8] sm:$0xff]
    %v381 = vld [vmem:[#allocation8 + $0x2b0] sm:$0xff]
    %v382 = vld [vmem:[#allocation8 + $0x2b8] sm:$0xff]
    %v383 = vld [vmem:[#allocation8 + $0x2c0] sm:$0xff]
    %v384 = vld [vmem:[#allocation8 + $0x2c8] sm:$0xff]
    %v385 = vld [vmem:[#allocation8 + $0x2d0] sm:$0xff]
    %v386 = vld [vmem:[#allocation8 + $0x2d8] sm:$0xff]
    %v387 = vld [vmem:[#allocation8 + $0x2e0] sm:$0xff]
    %v388 = vld [vmem:[#allocation8 + $0x2e8] sm:$0xff]
    %v389 = vld [vmem:[#allocation8 + $0x2f0] sm:$0xff]
    %v390 = vld [vmem:[#allocation8 + $0x2f8] sm:$0xff]
    %v391 = vld [vmem:[#allocation8 + $0x300] sm:$0xff]
    %v392 = vld [vmem:[#allocation8 + $0x308] sm:$0xff]
    %v393 = vld [vmem:[#allocation8 + $0x310] sm:$0xff]
    %v394 = vld [vmem:[#allocation8 + $0x318] sm:$0xff]
    %v395 = vld [vmem:[#allocation8 + $0x320] sm:$0xff]
    %v396 = vld [vmem:[#allocation8 + $0x328] sm:$0xff]
    %v397 = vld [vmem:[#allocation8 + $0x330] sm:$0xff]
    %v398 = vld [vmem:[#allocation8 + $0x338] sm:$0xff]
    %v399 = vld [vmem:[#allocation8 + $0x340] sm:$0xff]
    %v400 = vld [vmem:[#allocation8 + $0x348] sm:$0xff]
    %v401 = vld [vmem:[#allocation8 + $0x350] sm:$0xff]
    %v402 = vld [vmem:[#allocation8 + $0x358] sm:$0xff]
    %v403 = vld [vmem:[#allocation8 + $0x360] sm:$0xff]
    %v404 = vld [vmem:[#allocation8 + $0x368] sm:$0xff]
    %v405 = vld [vmem:[#allocation8 + $0x370] sm:$0xff]
    %v406 = vld [vmem:[#allocation8 + $0x378] sm:$0xff]
    %v407 = vld [vmem:[#allocation8 + $0x380] sm:$0xff]
    %v408 = vld [vmem:[#allocation8 + $0x388] sm:$0xff]
    %v409 = vld [vmem:[#allocation8 + $0x390] sm:$0xff]
    %v410 = vld [vmem:[#allocation8 + $0x398] sm:$0xff]
    %v411 = vld [vmem:[#allocation8 + $0x3a0] sm:$0xff]
    %v412 = vld [vmem:[#allocation8 + $0x3a8] sm:$0xff]
    %v413 = vld [vmem:[#allocation8 + $0x3b0] sm:$0xff]
    %v414 = vld [vmem:[#allocation8 + $0x3b8] sm:$0xff]
    %v415 = vld [vmem:[#allocation8 + $0x3c0] sm:$0xff]
    %v416 = vld [vmem:[#allocation8 + $0x3c8] sm:$0xff]
    %v417 = vld [vmem:[#allocation8 + $0x3d0] sm:$0xff]
    %v418 = vld [vmem:[#allocation8 + $0x3d8] sm:$0xff]
    %v419 = vld [vmem:[#allocation8 + $0x3e0] sm:$0xff]
    %v420 = vld [vmem:[#allocation8 + $0x3e8] sm:$0xff]
    %v421 = vld [vmem:[#allocation8 + $0x3f0] sm:$0xff]
    %v422 = vld [vmem:[#allocation8 + $0x3f8] sm:$0xff]
    %v423 = vld [vmem:[#allocation8 + $0x400] sm:$0xff]
    %v424 = vld [vmem:[#allocation8 + $0x408] sm:$0xff]
    %v425 = vld [vmem:[#allocation8 + $0x410] sm:$0xff]
    %v426 = vld [vmem:[#allocation8 + $0x418] sm:$0xff]
    %v427 = vld [vmem:[#allocation8 + $0x420] sm:$0xff]
    %v428 = vld [vmem:[#allocation8 + $0x428] sm:$0xff]
    %v429 = vld [vmem:[#allocation8 + $0x430] sm:$0xff]
    %v430 = vld [vmem:[#allocation8 + $0x438] sm:$0xff]
    %v431 = vld [vmem:[#allocation8 + $0x440] sm:$0xff]
    %v432 = vld [vmem:[#allocation8 + $0x448] sm:$0xff]
    %v433 = vld [vmem:[#allocation8 + $0x450] sm:$0xff]
    %v434 = vld [vmem:[#allocation8 + $0x458] sm:$0xff]
    %v435 = vld [vmem:[#allocation8 + $0x460] sm:$0xff]
    %v436 = vld [vmem:[#allocation8 + $0x468] sm:$0xff]
    %v437 = vld [vmem:[#allocation8 + $0x470] sm:$0xff]
    %v438 = vld [vmem:[#allocation8 + $0x478] sm:$0xff]
    %v439 = vld [vmem:[#allocation8 + $0x480] sm:$0xff]
    %v440 = vld [vmem:[#allocation8 + $0x488] sm:$0xff]
    %v441 = vld [vmem:[#allocation8 + $0x490] sm:$0xff]
    %v442 = vld [vmem:[#allocation8 + $0x498] sm:$0xff]
    %v443 = vld [vmem:[#allocation8 + $0x4a0] sm:$0xff]
    %v444 = vld [vmem:[#allocation8 + $0x4a8] sm:$0xff]
    %v445 = vld [vmem:[#allocation8 + $0x4b0] sm:$0xff]
    %v446 = vld [vmem:[#allocation8 + $0x4b8] sm:$0xff]
    %v447 = vld [vmem:[#allocation8 + $0x4c0] sm:$0xff]
    %v448 = vld [vmem:[#allocation8 + $0x4c8] sm:$0xff]
    %v449 = vld [vmem:[#allocation8 + $0x4d0] sm:$0xff]
    %v450 = vld [vmem:[#allocation8 + $0x4d8] sm:$0xff]
    %v451 = vld [vmem:[#allocation8 + $0x4e0] sm:$0xff]
    %v452 = vld [vmem:[#allocation8 + $0x4e8] sm:$0xff]
    %v453 = vld [vmem:[#allocation8 + $0x4f0] sm:$0xff]
    %v454 = vld [vmem:[#allocation8 + $0x4f8] sm:$0xff]
    %v455 = vld [vmem:[#allocation8 + $0x500] sm:$0xff]
    %v456 = vld [vmem:[#allocation8 + $0x508] sm:$0xff]
    %v457 = vld [vmem:[#allocation8 + $0x510] sm:$0xff]
    %v458 = vld [vmem:[#allocation8 + $0x518] sm:$0xff]
    %v459 = vld [vmem:[#allocation8 + $0x520] sm:$0xff]
    %v460 = vld [vmem:[#allocation8 + $0x528] sm:$0xff]
    %v461 = vld [vmem:[#allocation8 + $0x530] sm:$0xff]
    %v462 = vld [vmem:[#allocation8 + $0x538] sm:$0xff]
    %v463 = vld [vmem:[#allocation8 + $0x540] sm:$0xff]
    %v464 = vld [vmem:[#allocation8 + $0x548] sm:$0xff]
    %v465 = vld [vmem:[#allocation8 + $0x550] sm:$0xff]
    %v466 = vld [vmem:[#allocation8 + $0x558] sm:$0xff]
    %v467 = vld [vmem:[#allocation8 + $0x560] sm:$0xff]
    %v468 = vld [vmem:[#allocation8 + $0x568] sm:$0xff]
    %v469 = vld [vmem:[#allocation8 + $0x570] sm:$0xff]
    %v470 = vld [vmem:[#allocation8 + $0x578] sm:$0xff]
    %v471 = vld [vmem:[#allocation8 + $0x580] sm:$0xff]
    %v472 = vld [vmem:[#allocation8 + $0x588] sm:$0xff]
    %v473 = vld [vmem:[#allocation8 + $0x590] sm:$0xff]
    %v474 = vld [vmem:[#allocation8 + $0x598] sm:$0xff]
    %v475 = vld [vmem:[#allocation8 + $0x5a0] sm:$0xff]
    %v476 = vld [vmem:[#allocation8 + $0x5a8] sm:$0xff]
    %v477 = vld [vmem:[#allocation8 + $0x5b0] sm:$0xff]
    %v478 = vld [vmem:[#allocation8 + $0x5b8] sm:$0xff]
    %v479 = vld [vmem:[#allocation8 + $0x5c0] sm:$0xff]
    %v480 = vld [vmem:[#allocation8 + $0x5c8] sm:$0xff]
    %v481 = vld [vmem:[#allocation8 + $0x5d0] sm:$0xff]
    %v482 = vld [vmem:[#allocation8 + $0x5d8] sm:$0xff]
    %v483 = vld [vmem:[#allocation8 + $0x5e0] sm:$0xff]
    %v484 = vld [vmem:[#allocation8 + $0x5e8] sm:$0xff]
    %v485 = vld [vmem:[#allocation8 + $0x5f0] sm:$0xff]
    %v486 = vld [vmem:[#allocation8 + $0x5f8] sm:$0xff]
    %v491 = vcombine.low %v99, %v100
    %v492 = vcombine.high %v99, %v100
    %v493 = vcombine.low %v101, %v102
    %v494 = vcombine.high %v101, %v102
    %v496 = vunpack.c.l.s4 1966171168
    %v497 = vunpack.c.0.s8 %v496
    %v498 = vlaneseq
    %v499 = vshrl.u32 %v498, 7
    %v500 = vsub.s32 %v497, %v499
    %v501 = vrot.slane %v491, %v500
    %v503 = vunpack.c.l.s4 1966171168
    %v504 = vunpack.c.0.s8 %v503
    %v505 = vlaneseq
    %v506 = vshrl.u32 %v505, 7
    %v507 = vsub.s32 %v504, %v506
    %v508 = vrot.slane %v492, %v507
    %v510 = vunpack.c.l.s4 1966171168
    %v511 = vunpack.c.0.s8 %v510
    %v512 = vlaneseq
    %v513 = vshrl.u32 %v512, 7
    %v514 = vsub.s32 %v511, %v513
    %v515 = vrot.slane %v493, %v514
    %v517 = vunpack.c.l.s4 1966171168
    %v518 = vunpack.c.0.s8 %v517
    %v519 = vlaneseq
    %v520 = vshrl.u32 %v519, 7
    %v521 = vsub.s32 %v518, %v520
    %v522 = vrot.slane %v494, %v521
    %v523 = vcombine.low %v501, %v515
    %v524 = vcombine.high %v501, %v515
    %v525 = vcombine.low %v508, %v522
    %v526 = vcombine.high %v508, %v522
    %v528 = vunpack.c.l.s4 1966171168
    %v529 = vunpack.c.0.s8 %v528
    %v530 = vlaneseq
    %v531 = vshrl.u32 %v530, 7
    %v532 = vsub.s32 %v529, %v531
    %v533 = vrot.slane %v523, %v532
    %v535 = vunpack.c.l.s4 1966171168
    %v536 = vunpack.c.0.s8 %v535
    %v537 = vlaneseq
    %v538 = vshrl.u32 %v537, 7
    %v539 = vsub.s32 %v536, %v538
    %v540 = vrot.slane %v525, %v539
    %v542 = vunpack.c.l.s4 1966171168
    %v543 = vunpack.c.0.s8 %v542
    %v544 = vlaneseq
    %v545 = vshrl.u32 %v544, 7
    %v546 = vsub.s32 %v543, %v545
    %v547 = vrot.slane %v524, %v546
    %v549 = vunpack.c.l.s4 1966171168
    %v550 = vunpack.c.0.s8 %v549
    %v551 = vlaneseq
    %v552 = vshrl.u32 %v551, 7
    %v553 = vsub.s32 %v550, %v552
    %v554 = vrot.slane %v526, %v553
    %v555 = vcombine.high %v533, %v533
    %v556 = vcombine.high %v547, %v547
    %v755 = vunpack.c.l.b16 %v295
    %v756 = vunpack.c.h.b16 %v295
    %v757 = vunpack.c.l.b16 %v296
    %v758 = vunpack.c.h.b16 %v296
    %v759 = vunpack.c.l.b16 %v297
    %v760 = vunpack.c.h.b16 %v297
    %v761 = vunpack.c.l.b16 %v298
    %v762 = vunpack.c.h.b16 %v298
    %v763 = vunpack.c.l.b16 %v299
    %v764 = vunpack.c.h.b16 %v299
    %v765 = vunpack.c.l.b16 %v300
    %v766 = vunpack.c.h.b16 %v300
    %v767 = vunpack.c.l.b16 %v301
    %v768 = vunpack.c.h.b16 %v301
    %v769 = vunpack.c.l.b16 %v302
    %v770 = vunpack.c.h.b16 %v302
    %v771 = vunpack.c.l.b16 %v303
    %v772 = vunpack.c.h.b16 %v303
    %v773 = vunpack.c.l.b16 %v304
    %v774 = vunpack.c.h.b16 %v304
    %v775 = vunpack.c.l.b16 %v305
    %v776 = vunpack.c.h.b16 %v305
    %v777 = vunpack.c.l.b16 %v306
    %v778 = vunpack.c.h.b16 %v306
    %v779 = vunpack.c.l.b16 %v307
    %v780 = vunpack.c.h.b16 %v307
    %v781 = vunpack.c.l.b16 %v308
    %v782 = vunpack.c.h.b16 %v308
    %v783 = vunpack.c.l.b16 %v309
    %v784 = vunpack.c.h.b16 %v309
    %v785 = vunpack.c.l.b16 %v310
    %v786 = vunpack.c.h.b16 %v310
    %v787 = vunpack.c.l.b16 %v311
    %v788 = vunpack.c.h.b16 %v311
    %v789 = vunpack.c.l.b16 %v312
    %v790 = vunpack.c.h.b16 %v312
    %v791 = vunpack.c.l.b16 %v313
    %v792 = vunpack.c.h.b16 %v313
    %v793 = vunpack.c.l.b16 %v314
    %v794 = vunpack.c.h.b16 %v314
    %v795 = vunpack.c.l.b16 %v315
    %v796 = vunpack.c.h.b16 %v315
    %v797 = vunpack.c.l.b16 %v316
    %v798 = vunpack.c.h.b16 %v316
    %v799 = vunpack.c.l.b16 %v317
    %v800 = vunpack.c.h.b16 %v317
    %v801 = vunpack.c.l.b16 %v318
    %v802 = vunpack.c.h.b16 %v318
    %v803 = vunpack.c.l.b16 %v319
    %v804 = vunpack.c.h.b16 %v319
    %v805 = vunpack.c.l.b16 %v320
    %v806 = vunpack.c.h.b16 %v320
    %v807 = vunpack.c.l.b16 %v321
    %v808 = vunpack.c.h.b16 %v321
    %v809 = vunpack.c.l.b16 %v322
    %v810 = vunpack.c.h.b16 %v322
    %v811 = vunpack.c.l.b16 %v323
    %v812 = vunpack.c.h.b16 %v323
    %v813 = vunpack.c.l.b16 %v324
    %v814 = vunpack.c.h.b16 %v324
    %v815 = vunpack.c.l.b16 %v325
    %v816 = vunpack.c.h.b16 %v325
    %v817 = vunpack.c.l.b16 %v326
    %v818 = vunpack.c.h.b16 %v326
    %v819 = vunpack.c.l.b16 %v327
    %v820 = vunpack.c.h.b16 %v327
    %v821 = vunpack.c.l.b16 %v328
    %v822 = vunpack.c.h.b16 %v328
    %v823 = vunpack.c.l.b16 %v329
    %v824 = vunpack.c.h.b16 %v329
    %v825 = vunpack.c.l.b16 %v330
    %v826 = vunpack.c.h.b16 %v330
    %v827 = vunpack.c.l.b16 %v331
    %v828 = vunpack.c.h.b16 %v331
    %v829 = vunpack.c.l.b16 %v332
    %v830 = vunpack.c.h.b16 %v332
    %v831 = vunpack.c.l.b16 %v333
    %v832 = vunpack.c.h.b16 %v333
    %v833 = vunpack.c.l.b16 %v334
    %v834 = vunpack.c.h.b16 %v334
    %v835 = vunpack.c.l.b16 %v335
    %v836 = vunpack.c.h.b16 %v335
    %v837 = vunpack.c.l.b16 %v336
    %v838 = vunpack.c.h.b16 %v336
    %v839 = vunpack.c.l.b16 %v337
    %v840 = vunpack.c.h.b16 %v337
    %v841 = vunpack.c.l.b16 %v338
    %v842 = vunpack.c.h.b16 %v338
    %v843 = vunpack.c.l.b16 %v339
    %v844 = vunpack.c.h.b16 %v339
    %v845 = vunpack.c.l.b16 %v340
    %v846 = vunpack.c.h.b16 %v340
    %v847 = vunpack.c.l.b16 %v341
    %v848 = vunpack.c.h.b16 %v341
    %v849 = vunpack.c.l.b16 %v342
    %v850 = vunpack.c.h.b16 %v342
    %v851 = vunpack.c.l.b16 %v343
    %v852 = vunpack.c.h.b16 %v343
    %v853 = vunpack.c.l.b16 %v344
    %v854 = vunpack.c.h.b16 %v344
    %v855 = vunpack.c.l.b16 %v345
    %v856 = vunpack.c.h.b16 %v345
    %v857 = vunpack.c.l.b16 %v346
    %v858 = vunpack.c.h.b16 %v346
    %v859 = vunpack.c.l.b16 %v347
    %v860 = vunpack.c.h.b16 %v347
    %v861 = vunpack.c.l.b16 %v348
    %v862 = vunpack.c.h.b16 %v348
    %v863 = vunpack.c.l.b16 %v349
    %v864 = vunpack.c.h.b16 %v349
    %v865 = vunpack.c.l.b16 %v350
    %v866 = vunpack.c.h.b16 %v350
    %v867 = vunpack.c.l.b16 %v351
    %v868 = vunpack.c.h.b16 %v351
    %v869 = vunpack.c.l.b16 %v352
    %v870 = vunpack.c.h.b16 %v352
    %v871 = vunpack.c.l.b16 %v353
    %v872 = vunpack.c.h.b16 %v353
    %v873 = vunpack.c.l.b16 %v354
    %v874 = vunpack.c.h.b16 %v354
    %v875 = vunpack.c.l.b16 %v355
    %v876 = vunpack.c.h.b16 %v355
    %v877 = vunpack.c.l.b16 %v356
    %v878 = vunpack.c.h.b16 %v356
    %v879 = vunpack.c.l.b16 %v357
    %v880 = vunpack.c.h.b16 %v357
    %v881 = vunpack.c.l.b16 %v358
    %v882 = vunpack.c.h.b16 %v358
    %v883 = vunpack.c.l.b16 %v359
    %v884 = vunpack.c.h.b16 %v359
    %v885 = vunpack.c.l.b16 %v360
    %v886 = vunpack.c.h.b16 %v360
    %v887 = vunpack.c.l.b16 %v361
    %v888 = vunpack.c.h.b16 %v361
    %v889 = vunpack.c.l.b16 %v362
    %v890 = vunpack.c.h.b16 %v362
    %v891 = vunpack.c.l.b16 %v363
    %v892 = vunpack.c.h.b16 %v363
    %v893 = vunpack.c.l.b16 %v364
    %v894 = vunpack.c.h.b16 %v364
    %v895 = vunpack.c.l.b16 %v365
    %v896 = vunpack.c.h.b16 %v365
    %v897 = vunpack.c.l.b16 %v366
    %v898 = vunpack.c.h.b16 %v366
    %v899 = vunpack.c.l.b16 %v367
    %v900 = vunpack.c.h.b16 %v367
    %v901 = vunpack.c.l.b16 %v368
    %v902 = vunpack.c.h.b16 %v368
    %v903 = vunpack.c.l.b16 %v369
    %v904 = vunpack.c.h.b16 %v369
    %v905 = vunpack.c.l.b16 %v370
    %v906 = vunpack.c.h.b16 %v370
    %v907 = vunpack.c.l.b16 %v371
    %v908 = vunpack.c.h.b16 %v371
    %v909 = vunpack.c.l.b16 %v372
    %v910 = vunpack.c.h.b16 %v372
    %v911 = vunpack.c.l.b16 %v373
    %v912 = vunpack.c.h.b16 %v373
    %v913 = vunpack.c.l.b16 %v374
    %v914 = vunpack.c.h.b16 %v374
    %v915 = vunpack.c.l.b16 %v375
    %v916 = vunpack.c.h.b16 %v375
    %v917 = vunpack.c.l.b16 %v376
    %v918 = vunpack.c.h.b16 %v376
    %v919 = vunpack.c.l.b16 %v377
    %v920 = vunpack.c.h.b16 %v377
    %v921 = vunpack.c.l.b16 %v378
    %v922 = vunpack.c.h.b16 %v378
    %v923 = vunpack.c.l.b16 %v379
    %v924 = vunpack.c.h.b16 %v379
    %v925 = vunpack.c.l.b16 %v380
    %v926 = vunpack.c.h.b16 %v380
    %v927 = vunpack.c.l.b16 %v381
    %v928 = vunpack.c.h.b16 %v381
    %v929 = vunpack.c.l.b16 %v382
    %v930 = vunpack.c.h.b16 %v382
    %v931 = vunpack.c.l.b16 %v383
    %v932 = vunpack.c.h.b16 %v383
    %v933 = vunpack.c.l.b16 %v384
    %v934 = vunpack.c.h.b16 %v384
    %v935 = vunpack.c.l.b16 %v385
    %v936 = vunpack.c.h.b16 %v385
    %v937 = vunpack.c.l.b16 %v386
    %v938 = vunpack.c.h.b16 %v386
    %v939 = vunpack.c.l.b16 %v387
    %v940 = vunpack.c.h.b16 %v387
    %v941 = vunpack.c.l.b16 %v388
    %v942 = vunpack.c.h.b16 %v388
    %v943 = vunpack.c.l.b16 %v389
    %v944 = vunpack.c.h.b16 %v389
    %v945 = vunpack.c.l.b16 %v390
    %v946 = vunpack.c.h.b16 %v390
    %v947 = vunpack.c.l.b16 %v391
    %v948 = vunpack.c.h.b16 %v391
    %v949 = vunpack.c.l.b16 %v392
    %v950 = vunpack.c.h.b16 %v392
    %v951 = vunpack.c.l.b16 %v393
    %v952 = vunpack.c.h.b16 %v393
    %v953 = vunpack.c.l.b16 %v394
    %v954 = vunpack.c.h.b16 %v394
    %v955 = vunpack.c.l.b16 %v395
    %v956 = vunpack.c.h.b16 %v395
    %v957 = vunpack.c.l.b16 %v396
    %v958 = vunpack.c.h.b16 %v396
    %v959 = vunpack.c.l.b16 %v397
    %v960 = vunpack.c.h.b16 %v397
    %v961 = vunpack.c.l.b16 %v398
    %v962 = vunpack.c.h.b16 %v398
    %v963 = vunpack.c.l.b16 %v399
    %v964 = vunpack.c.h.b16 %v399
    %v965 = vunpack.c.l.b16 %v400
    %v966 = vunpack.c.h.b16 %v400
    %v967 = vunpack.c.l.b16 %v401
    %v968 = vunpack.c.h.b16 %v401
    %v969 = vunpack.c.l.b16 %v402
    %v970 = vunpack.c.h.b16 %v402
    %v971 = vunpack.c.l.b16 %v403
    %v972 = vunpack.c.h.b16 %v403
    %v973 = vunpack.c.l.b16 %v404
    %v974 = vunpack.c.h.b16 %v404
    %v975 = vunpack.c.l.b16 %v405
    %v976 = vunpack.c.h.b16 %v405
    %v977 = vunpack.c.l.b16 %v406
    %v978 = vunpack.c.h.b16 %v406
    %v979 = vunpack.c.l.b16 %v407
    %v980 = vunpack.c.h.b16 %v407
    %v981 = vunpack.c.l.b16 %v408
    %v982 = vunpack.c.h.b16 %v408
    %v983 = vunpack.c.l.b16 %v409
    %v984 = vunpack.c.h.b16 %v409
    %v985 = vunpack.c.l.b16 %v410
    %v986 = vunpack.c.h.b16 %v410
    %v987 = vunpack.c.l.b16 %v411
    %v988 = vunpack.c.h.b16 %v411
    %v989 = vunpack.c.l.b16 %v412
    %v990 = vunpack.c.h.b16 %v412
    %v991 = vunpack.c.l.b16 %v413
    %v992 = vunpack.c.h.b16 %v413
    %v993 = vunpack.c.l.b16 %v414
    %v994 = vunpack.c.h.b16 %v414
    %v995 = vunpack.c.l.b16 %v415
    %v996 = vunpack.c.h.b16 %v415
    %v997 = vunpack.c.l.b16 %v416
    %v998 = vunpack.c.h.b16 %v416
    %v999 = vunpack.c.l.b16 %v417
    %v1000 = vunpack.c.h.b16 %v417
    %v1001 = vunpack.c.l.b16 %v418
    %v1002 = vunpack.c.h.b16 %v418
    %v1003 = vunpack.c.l.b16 %v419
    %v1004 = vunpack.c.h.b16 %v419
    %v1005 = vunpack.c.l.b16 %v420
    %v1006 = vunpack.c.h.b16 %v420
    %v1007 = vunpack.c.l.b16 %v421
    %v1008 = vunpack.c.h.b16 %v421
    %v1009 = vunpack.c.l.b16 %v422
    %v1010 = vunpack.c.h.b16 %v422
    %v1011 = vunpack.c.l.b16 %v423
    %v1012 = vunpack.c.h.b16 %v423
    %v1013 = vunpack.c.l.b16 %v424
    %v1014 = vunpack.c.h.b16 %v424
    %v1015 = vunpack.c.l.b16 %v425
    %v1016 = vunpack.c.h.b16 %v425
    %v1017 = vunpack.c.l.b16 %v426
    %v1018 = vunpack.c.h.b16 %v426
    %v1019 = vunpack.c.l.b16 %v427
    %v1020 = vunpack.c.h.b16 %v427
    %v1021 = vunpack.c.l.b16 %v428
    %v1022 = vunpack.c.h.b16 %v428
    %v1023 = vunpack.c.l.b16 %v429
    %v1024 = vunpack.c.h.b16 %v429
    %v1025 = vunpack.c.l.b16 %v430
    %v1026 = vunpack.c.h.b16 %v430
    %v1027 = vunpack.c.l.b16 %v431
    %v1028 = vunpack.c.h.b16 %v431
    %v1029 = vunpack.c.l.b16 %v432
    %v1030 = vunpack.c.h.b16 %v432
    %v1031 = vunpack.c.l.b16 %v433
    %v1032 = vunpack.c.h.b16 %v433
    %v1033 = vunpack.c.l.b16 %v434
    %v1034 = vunpack.c.h.b16 %v434
    %v1035 = vunpack.c.l.b16 %v435
    %v1036 = vunpack.c.h.b16 %v435
    %v1037 = vunpack.c.l.b16 %v436
    %v1038 = vunpack.c.h.b16 %v436
    %v1039 = vunpack.c.l.b16 %v437
    %v1040 = vunpack.c.h.b16 %v437
    %v1041 = vunpack.c.l.b16 %v438
    %v1042 = vunpack.c.h.b16 %v438
    %v1043 = vunpack.c.l.b16 %v439
    %v1044 = vunpack.c.h.b16 %v439
    %v1045 = vunpack.c.l.b16 %v440
    %v1046 = vunpack.c.h.b16 %v440
    %v1047 = vunpack.c.l.b16 %v441
    %v1048 = vunpack.c.h.b16 %v441
    %v1049 = vunpack.c.l.b16 %v442
    %v1050 = vunpack.c.h.b16 %v442
    %v1051 = vunpack.c.l.b16 %v443
    %v1052 = vunpack.c.h.b16 %v443
    %v1053 = vunpack.c.l.b16 %v444
    %v1054 = vunpack.c.h.b16 %v444
    %v1055 = vunpack.c.l.b16 %v445
    %v1056 = vunpack.c.h.b16 %v445
    %v1057 = vunpack.c.l.b16 %v446
    %v1058 = vunpack.c.h.b16 %v446
    %v1059 = vunpack.c.l.b16 %v447
    %v1060 = vunpack.c.h.b16 %v447
    %v1061 = vunpack.c.l.b16 %v448
    %v1062 = vunpack.c.h.b16 %v448
    %v1063 = vunpack.c.l.b16 %v449
    %v1064 = vunpack.c.h.b16 %v449
    %v1065 = vunpack.c.l.b16 %v450
    %v1066 = vunpack.c.h.b16 %v450
    %v1067 = vunpack.c.l.b16 %v451
    %v1068 = vunpack.c.h.b16 %v451
    %v1069 = vunpack.c.l.b16 %v452
    %v1070 = vunpack.c.h.b16 %v452
    %v1071 = vunpack.c.l.b16 %v453
    %v1072 = vunpack.c.h.b16 %v453
    %v1073 = vunpack.c.l.b16 %v454
    %v1074 = vunpack.c.h.b16 %v454
    %v1075 = vunpack.c.l.b16 %v455
    %v1076 = vunpack.c.h.b16 %v455
    %v1077 = vunpack.c.l.b16 %v456
    %v1078 = vunpack.c.h.b16 %v456
    %v1079 = vunpack.c.l.b16 %v457
    %v1080 = vunpack.c.h.b16 %v457
    %v1081 = vunpack.c.l.b16 %v458
    %v1082 = vunpack.c.h.b16 %v458
    %v1083 = vunpack.c.l.b16 %v459
    %v1084 = vunpack.c.h.b16 %v459
    %v1085 = vunpack.c.l.b16 %v460
    %v1086 = vunpack.c.h.b16 %v460
    %v1087 = vunpack.c.l.b16 %v461
    %v1088 = vunpack.c.h.b16 %v461
    %v1089 = vunpack.c.l.b16 %v462
    %v1090 = vunpack.c.h.b16 %v462
    %v1091 = vunpack.c.l.b16 %v463
    %v1092 = vunpack.c.h.b16 %v463
    %v1093 = vunpack.c.l.b16 %v464
    %v1094 = vunpack.c.h.b16 %v464
    %v1095 = vunpack.c.l.b16 %v465
    %v1096 = vunpack.c.h.b16 %v465
    %v1097 = vunpack.c.l.b16 %v466
    %v1098 = vunpack.c.h.b16 %v466
    %v1099 = vunpack.c.l.b16 %v467
    %v1100 = vunpack.c.h.b16 %v467
    %v1101 = vunpack.c.l.b16 %v468
    %v1102 = vunpack.c.h.b16 %v468
    %v1103 = vunpack.c.l.b16 %v469
    %v1104 = vunpack.c.h.b16 %v469
    %v1105 = vunpack.c.l.b16 %v470
    %v1106 = vunpack.c.h.b16 %v470
    %v1107 = vunpack.c.l.b16 %v471
    %v1108 = vunpack.c.h.b16 %v471
    %v1109 = vunpack.c.l.b16 %v472
    %v1110 = vunpack.c.h.b16 %v472
    %v1111 = vunpack.c.l.b16 %v473
    %v1112 = vunpack.c.h.b16 %v473
    %v1113 = vunpack.c.l.b16 %v474
    %v1114 = vunpack.c.h.b16 %v474
    %v1115 = vunpack.c.l.b16 %v475
    %v1116 = vunpack.c.h.b16 %v475
    %v1117 = vunpack.c.l.b16 %v476
    %v1118 = vunpack.c.h.b16 %v476
    %v1119 = vunpack.c.l.b16 %v477
    %v1120 = vunpack.c.h.b16 %v477
    %v1121 = vunpack.c.l.b16 %v478
    %v1122 = vunpack.c.h.b16 %v478
    %v1123 = vunpack.c.l.b16 %v479
    %v1124 = vunpack.c.h.b16 %v479
    %v1125 = vunpack.c.l.b16 %v480
    %v1126 = vunpack.c.h.b16 %v480
    %v1127 = vunpack.c.l.b16 %v481
    %v1128 = vunpack.c.h.b16 %v481
    %v1129 = vunpack.c.l.b16 %v482
    %v1130 = vunpack.c.h.b16 %v482
    %v1131 = vunpack.c.l.b16 %v483
    %v1132 = vunpack.c.h.b16 %v483
    %v1133 = vunpack.c.l.b16 %v484
    %v1134 = vunpack.c.h.b16 %v484
    %v1135 = vunpack.c.l.b16 %v485
    %v1136 = vunpack.c.h.b16 %v485
    %v1137 = vunpack.c.l.b16 %v486
    %v1138 = vunpack.c.h.b16 %v486
    %v1139 = vpack.c.b16 %v759, %v755
    %v1140 = vpack.c.b16 %v760, %v756
    %v1141 = vpack.c.b16 %v761, %v757
    %v1142 = vpack.c.b16 %v762, %v758
    %v1143 = vpack.c.b16 %v767, %v763
    %v1144 = vpack.c.b16 %v768, %v764
    %v1145 = vpack.c.b16 %v769, %v765
    %v1146 = vpack.c.b16 %v770, %v766
    %v1147 = vpack.c.b16 %v775, %v771
    %v1148 = vpack.c.b16 %v776, %v772
    %v1149 = vpack.c.b16 %v777, %v773
    %v1150 = vpack.c.b16 %v778, %v774
    %v1151 = vpack.c.b16 %v783, %v779
    %v1152 = vpack.c.b16 %v784, %v780
    %v1153 = vpack.c.b16 %v785, %v781
    %v1154 = vpack.c.b16 %v786, %v782
    %v1155 = vpack.c.b16 %v791, %v787
    %v1156 = vpack.c.b16 %v792, %v788
    %v1157 = vpack.c.b16 %v793, %v789
    %v1158 = vpack.c.b16 %v794, %v790
    %v1159 = vpack.c.b16 %v799, %v795
    %v1160 = vpack.c.b16 %v800, %v796
    %v1161 = vpack.c.b16 %v801, %v797
    %v1162 = vpack.c.b16 %v802, %v798
    %v1163 = vpack.c.b16 %v807, %v803
    %v1164 = vpack.c.b16 %v808, %v804
    %v1165 = vpack.c.b16 %v809, %v805
    %v1166 = vpack.c.b16 %v810, %v806
    %v1167 = vpack.c.b16 %v815, %v811
    %v1168 = vpack.c.b16 %v816, %v812
    %v1169 = vpack.c.b16 %v817, %v813
    %v1170 = vpack.c.b16 %v818, %v814
    %v1171 = vpack.c.b16 %v823, %v819
    %v1172 = vpack.c.b16 %v824, %v820
    %v1173 = vpack.c.b16 %v825, %v821
    %v1174 = vpack.c.b16 %v826, %v822
    %v1175 = vpack.c.b16 %v831, %v827
    %v1176 = vpack.c.b16 %v832, %v828
    %v1177 = vpack.c.b16 %v833, %v829
    %v1178 = vpack.c.b16 %v834, %v830
    %v1179 = vpack.c.b16 %v839, %v835
    %v1180 = vpack.c.b16 %v840, %v836
    %v1181 = vpack.c.b16 %v841, %v837
    %v1182 = vpack.c.b16 %v842, %v838
    %v1183 = vpack.c.b16 %v847, %v843
    %v1184 = vpack.c.b16 %v848, %v844
    %v1185 = vpack.c.b16 %v849, %v845
    %v1186 = vpack.c.b16 %v850, %v846
    %v1187 = vpack.c.b16 %v855, %v851
    %v1188 = vpack.c.b16 %v856, %v852
    %v1189 = vpack.c.b16 %v857, %v853
    %v1190 = vpack.c.b16 %v858, %v854
    %v1191 = vpack.c.b16 %v863, %v859
    %v1192 = vpack.c.b16 %v864, %v860
    %v1193 = vpack.c.b16 %v865, %v861
    %v1194 = vpack.c.b16 %v866, %v862
    %v1195 = vpack.c.b16 %v871, %v867
    %v1196 = vpack.c.b16 %v872, %v868
    %v1197 = vpack.c.b16 %v873, %v869
    %v1198 = vpack.c.b16 %v874, %v870
    %v1199 = vpack.c.b16 %v879, %v875
    %v1200 = vpack.c.b16 %v880, %v876
    %v1201 = vpack.c.b16 %v881, %v877
    %v1202 = vpack.c.b16 %v882, %v878
    %v1203 = vpack.c.b16 %v887, %v883
    %v1204 = vpack.c.b16 %v888, %v884
    %v1205 = vpack.c.b16 %v889, %v885
    %v1206 = vpack.c.b16 %v890, %v886
    %v1207 = vpack.c.b16 %v895, %v891
    %v1208 = vpack.c.b16 %v896, %v892
    %v1209 = vpack.c.b16 %v897, %v893
    %v1210 = vpack.c.b16 %v898, %v894
    %v1211 = vpack.c.b16 %v903, %v899
    %v1212 = vpack.c.b16 %v904, %v900
    %v1213 = vpack.c.b16 %v905, %v901
    %v1214 = vpack.c.b16 %v906, %v902
    %v1215 = vpack.c.b16 %v911, %v907
    %v1216 = vpack.c.b16 %v912, %v908
    %v1217 = vpack.c.b16 %v913, %v909
    %v1218 = vpack.c.b16 %v914, %v910
    %v1219 = vpack.c.b16 %v919, %v915
    %v1220 = vpack.c.b16 %v920, %v916
    %v1221 = vpack.c.b16 %v921, %v917
    %v1222 = vpack.c.b16 %v922, %v918
    %v1223 = vpack.c.b16 %v927, %v923
    %v1224 = vpack.c.b16 %v928, %v924
    %v1225 = vpack.c.b16 %v929, %v925
    %v1226 = vpack.c.b16 %v930, %v926
    %v1227 = vpack.c.b16 %v935, %v931
    %v1228 = vpack.c.b16 %v936, %v932
    %v1229 = vpack.c.b16 %v937, %v933
    %v1230 = vpack.c.b16 %v938, %v934
    %v1231 = vpack.c.b16 %v943, %v939
    %v1232 = vpack.c.b16 %v944, %v940
    %v1233 = vpack.c.b16 %v945, %v941
    %v1234 = vpack.c.b16 %v946, %v942
    %v1235 = vpack.c.b16 %v951, %v947
    %v1236 = vpack.c.b16 %v952, %v948
    %v1237 = vpack.c.b16 %v953, %v949
    %v1238 = vpack.c.b16 %v954, %v950
    %v1239 = vpack.c.b16 %v959, %v955
    %v1240 = vpack.c.b16 %v960, %v956
    %v1241 = vpack.c.b16 %v961, %v957
    %v1242 = vpack.c.b16 %v962, %v958
    %v1243 = vpack.c.b16 %v967, %v963
    %v1244 = vpack.c.b16 %v968, %v964
    %v1245 = vpack.c.b16 %v969, %v965
    %v1246 = vpack.c.b16 %v970, %v966
    %v1247 = vpack.c.b16 %v975, %v971
    %v1248 = vpack.c.b16 %v976, %v972
    %v1249 = vpack.c.b16 %v977, %v973
    %v1250 = vpack.c.b16 %v978, %v974
    %v1251 = vpack.c.b16 %v983, %v979
    %v1252 = vpack.c.b16 %v984, %v980
    %v1253 = vpack.c.b16 %v985, %v981
    %v1254 = vpack.c.b16 %v986, %v982
    %v1255 = vpack.c.b16 %v991, %v987
    %v1256 = vpack.c.b16 %v992, %v988
    %v1257 = vpack.c.b16 %v993, %v989
    %v1258 = vpack.c.b16 %v994, %v990
    %v1259 = vpack.c.b16 %v999, %v995
    %v1260 = vpack.c.b16 %v1000, %v996
    %v1261 = vpack.c.b16 %v1001, %v997
    %v1262 = vpack.c.b16 %v1002, %v998
    %v1263 = vpack.c.b16 %v1007, %v1003
    %v1264 = vpack.c.b16 %v1008, %v1004
    %v1265 = vpack.c.b16 %v1009, %v1005
    %v1266 = vpack.c.b16 %v1010, %v1006
    %v1267 = vpack.c.b16 %v1015, %v1011
    %v1268 = vpack.c.b16 %v1016, %v1012
    %v1269 = vpack.c.b16 %v1017, %v1013
    %v1270 = vpack.c.b16 %v1018, %v1014
    %v1271 = vpack.c.b16 %v1023, %v1019
    %v1272 = vpack.c.b16 %v1024, %v1020
    %v1273 = vpack.c.b16 %v1025, %v1021
    %v1274 = vpack.c.b16 %v1026, %v1022
    %v1275 = vpack.c.b16 %v1031, %v1027
    %v1276 = vpack.c.b16 %v1032, %v1028
    %v1277 = vpack.c.b16 %v1033, %v1029
    %v1278 = vpack.c.b16 %v1034, %v1030
    %v1279 = vpack.c.b16 %v1039, %v1035
    %v1280 = vpack.c.b16 %v1040, %v1036
    %v1281 = vpack.c.b16 %v1041, %v1037
    %v1282 = vpack.c.b16 %v1042, %v1038
    %v1283 = vpack.c.b16 %v1047, %v1043
    %v1284 = vpack.c.b16 %v1048, %v1044
    %v1285 = vpack.c.b16 %v1049, %v1045
    %v1286 = vpack.c.b16 %v1050, %v1046
    %v1287 = vpack.c.b16 %v1055, %v1051
    %v1288 = vpack.c.b16 %v1056, %v1052
    %v1289 = vpack.c.b16 %v1057, %v1053
    %v1290 = vpack.c.b16 %v1058, %v1054
    %v1291 = vpack.c.b16 %v1063, %v1059
    %v1292 = vpack.c.b16 %v1064, %v1060
    %v1293 = vpack.c.b16 %v1065, %v1061
    %v1294 = vpack.c.b16 %v1066, %v1062
    %v1295 = vpack.c.b16 %v1071, %v1067
    %v1296 = vpack.c.b16 %v1072, %v1068
    %v1297 = vpack.c.b16 %v1073, %v1069
    %v1298 = vpack.c.b16 %v1074, %v1070
    %v1299 = vpack.c.b16 %v1079, %v1075
    %v1300 = vpack.c.b16 %v1080, %v1076
    %v1301 = vpack.c.b16 %v1081, %v1077
    %v1302 = vpack.c.b16 %v1082, %v1078
    %v1303 = vpack.c.b16 %v1087, %v1083
    %v1304 = vpack.c.b16 %v1088, %v1084
    %v1305 = vpack.c.b16 %v1089, %v1085
    %v1306 = vpack.c.b16 %v1090, %v1086
    %v1307 = vpack.c.b16 %v1095, %v1091
    %v1308 = vpack.c.b16 %v1096, %v1092
    %v1309 = vpack.c.b16 %v1097, %v1093
    %v1310 = vpack.c.b16 %v1098, %v1094
    %v1311 = vpack.c.b16 %v1103, %v1099
    %v1312 = vpack.c.b16 %v1104, %v1100
    %v1313 = vpack.c.b16 %v1105, %v1101
    %v1314 = vpack.c.b16 %v1106, %v1102
    %v1315 = vpack.c.b16 %v1111, %v1107
    %v1316 = vpack.c.b16 %v1112, %v1108
    %v1317 = vpack.c.b16 %v1113, %v1109
    %v1318 = vpack.c.b16 %v1114, %v1110
    %v1319 = vpack.c.b16 %v1119, %v1115
    %v1320 = vpack.c.b16 %v1120, %v1116
    %v1321 = vpack.c.b16 %v1121, %v1117
    %v1322 = vpack.c.b16 %v1122, %v1118
    %v1323 = vpack.c.b16 %v1127, %v1123
    %v1324 = vpack.c.b16 %v1128, %v1124
    %v1325 = vpack.c.b16 %v1129, %v1125
    %v1326 = vpack.c.b16 %v1130, %v1126
    %v1327 = vpack.c.b16 %v1135, %v1131
    %v1328 = vpack.c.b16 %v1136, %v1132
    %v1329 = vpack.c.b16 %v1137, %v1133
    %v1330 = vpack.c.b16 %v1138, %v1134
    %1523 = vmatprep.subr.bf16.mxu0 %v1140
    %1524 = vmatpush1.bf16.msra.mxu0 %v1139
    %1525 = vmatprep.subr.bf16.mxu0 %v1144
    %1526 = vmatpush1.bf16.msra.mxu0 %v1143
    %1527 = vmatprep.subr.bf16.mxu0 %v1148
    %1528 = vmatpush1.bf16.msra.mxu0 %v1147
    %1529 = vmatprep.subr.bf16.mxu0 %v1152
    %1530 = vmatpush1.bf16.msra.mxu0 %v1151
    %1531 = vmatprep.subr.bf16.mxu0 %v1156
    %1532 = vmatpush1.bf16.msra.mxu0 %v1155
    %1533 = vmatprep.subr.bf16.mxu0 %v1160
    %1534 = vmatpush1.bf16.msra.mxu0 %v1159
    %1535 = vmatprep.subr.bf16.mxu0 %v1164
    %1536 = vmatpush1.bf16.msra.mxu0 %v1163
    %1537 = vmatprep.subr.bf16.mxu0 %v1168
    %1538 = vmatpush1.bf16.msra.mxu0 %v1167
    %1539 = vmatprep.subr.bf16.mxu0 %v1172
    %1540 = vmatpush1.bf16.msra.mxu0 %v1171
    %1541 = vmatprep.subr.bf16.mxu0 %v1176
    %1542 = vmatpush1.bf16.msra.mxu0 %v1175
    %1543 = vmatprep.subr.bf16.mxu0 %v1180
    %1544 = vmatpush1.bf16.msra.mxu0 %v1179
    %1545 = vmatprep.subr.bf16.mxu0 %v1184
    %1546 = vmatpush1.bf16.msra.mxu0 %v1183
    %1547 = vmatprep.subr.bf16.mxu0 %v1188
    %1548 = vmatpush1.bf16.msra.mxu0 %v1187
    %1549 = vmatprep.subr.bf16.mxu0 %v1192
    %1550 = vmatpush1.bf16.msra.mxu0 %v1191
    %1551 = vmatprep.subr.bf16.mxu0 %v1196
    %1552 = vmatpush1.bf16.msra.mxu0 %v1195
    %1553 = vmatprep.subr.bf16.mxu0 %v1200
    %1554 = vmatpush1.bf16.msra.mxu0 %v1199
    %1555 = vmatprep.mubr.bf16.mxu0 %v547
    %1556 = vmatmul.mubr.bf16.gmra.mrb[0].mxu0 %v533
    %v1557 = vpop.f32.mrb[0].mxu0
    %v1558 = vadd.f32 0.0, %v1557
    %v1559 = vpop.f32.mrb[0].mxu0
    %v1560 = vadd.f32 0.0, %v1559
    %v1561 = vpop.f32.mrb[0].mxu0
    %v1562 = vpop.f32.mrb[0].mxu0
    %1563 = vdwg.mxu0
    %1564 = vmatprep.subr.bf16.mxu0 %v1204
    %1565 = vmatpush1.bf16.msra.mxu0 %v1203
    %1566 = vmatprep.subr.bf16.mxu0 %v1208
    %1567 = vmatpush1.bf16.msra.mxu0 %v1207
    %1568 = vmatprep.subr.bf16.mxu0 %v1212
    %1569 = vmatpush1.bf16.msra.mxu0 %v1211
    %1570 = vmatprep.subr.bf16.mxu0 %v1216
    %1571 = vmatpush1.bf16.msra.mxu0 %v1215
    %1572 = vmatprep.subr.bf16.mxu0 %v1220
    %1573 = vmatpush1.bf16.msra.mxu0 %v1219
    %1574 = vmatprep.subr.bf16.mxu0 %v1224
    %1575 = vmatpush1.bf16.msra.mxu0 %v1223
    %1576 = vmatprep.subr.bf16.mxu0 %v1228
    %1577 = vmatpush1.bf16.msra.mxu0 %v1227
    %1578 = vmatprep.subr.bf16.mxu0 %v1232
    %1579 = vmatpush1.bf16.msra.mxu0 %v1231
    %1580 = vmatprep.subr.bf16.mxu0 %v1236
    %1581 = vmatpush1.bf16.msra.mxu0 %v1235
    %1582 = vmatprep.subr.bf16.mxu0 %v1240
    %1583 = vmatpush1.bf16.msra.mxu0 %v1239
    %1584 = vmatprep.subr.bf16.mxu0 %v1244
    %1585 = vmatpush1.bf16.msra.mxu0 %v1243
    %1586 = vmatprep.subr.bf16.mxu0 %v1248
    %1587 = vmatpush1.bf16.msra.mxu0 %v1247
    %1588 = vmatprep.subr.bf16.mxu0 %v1252
    %1589 = vmatpush1.bf16.msra.mxu0 %v1251
    %1590 = vmatprep.subr.bf16.mxu0 %v1256
    %1591 = vmatpush1.bf16.msra.mxu0 %v1255
    %1592 = vmatprep.subr.bf16.mxu0 %v1260
    %1593 = vmatpush1.bf16.msra.mxu0 %v1259
    %1594 = vmatprep.subr.bf16.mxu0 %v1264
    %1595 = vmatpush1.bf16.msra.mxu0 %v1263
    %1596 = vmatprep.mubr.bf16.mxu0 %v556
    %1597 = vmatmul.mubr.bf16.gmra.mrb[0].mxu0 %v555
    %v1598 = vpop.f32.mrb[0].mxu0
    %v1599 = vadd.f32 %v1558, %v1598
    %v1600 = vpop.f32.mrb[0].mxu0
    %v1601 = vadd.f32 %v1560, %v1600
    %v1602 = vpop.f32.mrb[0].mxu0
    %v1603 = vpop.f32.mrb[0].mxu0
    %1604 = vdwg.mxu0
    %1605 = vmatprep.subr.bf16.mxu0 %v1268
    %1606 = vmatpush1.bf16.msra.mxu0 %v1267
    %1607 = vmatprep.subr.bf16.mxu0 %v1272
    %1608 = vmatpush1.bf16.msra.mxu0 %v1271
    %1609 = vmatprep.subr.bf16.mxu0 %v1276
    %1610 = vmatpush1.bf16.msra.mxu0 %v1275
    %1611 = vmatprep.subr.bf16.mxu0 %v1280
    %1612 = vmatpush1.bf16.msra.mxu0 %v1279
    %1613 = vmatprep.subr.bf16.mxu0 %v1284
    %1614 = vmatpush1.bf16.msra.mxu0 %v1283
    %1615 = vmatprep.subr.bf16.mxu0 %v1288
    %1616 = vmatpush1.bf16.msra.mxu0 %v1287
    %1617 = vmatprep.subr.bf16.mxu0 %v1292
    %1618 = vmatpush1.bf16.msra.mxu0 %v1291
    %1619 = vmatprep.subr.bf16.mxu0 %v1296
    %1620 = vmatpush1.bf16.msra.mxu0 %v1295
    %1621 = vmatprep.subr.bf16.mxu0 %v1300
    %1622 = vmatpush1.bf16.msra.mxu0 %v1299
    %1623 = vmatprep.subr.bf16.mxu0 %v1304
    %1624 = vmatpush1.bf16.msra.mxu0 %v1303
    %1625 = vmatprep.subr.bf16.mxu0 %v1308
    %1626 = vmatpush1.bf16.msra.mxu0 %v1307
    %1627 = vmatprep.subr.bf16.mxu0 %v1312
    %1628 = vmatpush1.bf16.msra.mxu0 %v1311
    %1629 = vmatprep.subr.bf16.mxu0 %v1316
    %1630 = vmatpush1.bf16.msra.mxu0 %v1315
    %1631 = vmatprep.subr.bf16.mxu0 %v1320
    %1632 = vmatpush1.bf16.msra.mxu0 %v1319
    %1633 = vmatprep.subr.bf16.mxu0 %v1324
    %1634 = vmatpush1.bf16.msra.mxu0 %v1323
    %1635 = vmatprep.subr.bf16.mxu0 %v1328
    %1636 = vmatpush1.bf16.msra.mxu0 %v1327
    %1637 = vmatprep.mubr.bf16.mxu0 %v554
    %1638 = vmatmul.mubr.bf16.gmra.mrb[0].mxu0 %v540
    %v1639 = vpop.f32.mrb[0].mxu0
    %v1640 = vadd.f32 %v1599, %v1639
    %v1641 = vpop.f32.mrb[0].mxu0
    %v1642 = vadd.f32 %v1601, %v1641
    %v1643 = vpop.f32.mrb[0].mxu0
    %v1644 = vpop.f32.mrb[0].mxu0
    %1645 = vdwg.mxu0
    %1646 = vmatprep.subr.bf16.mxu0 %v1142
    %1647 = vmatpush1.bf16.msra.mxu0 %v1141
    %1648 = vmatprep.subr.bf16.mxu0 %v1146
    %1649 = vmatpush1.bf16.msra.mxu0 %v1145
    %1650 = vmatprep.subr.bf16.mxu0 %v1150
    %1651 = vmatpush1.bf16.msra.mxu0 %v1149
    %1652 = vmatprep.subr.bf16.mxu0 %v1154
    %1653 = vmatpush1.bf16.msra.mxu0 %v1153
    %1654 = vmatprep.subr.bf16.mxu0 %v1158
    %1655 = vmatpush1.bf16.msra.mxu0 %v1157
    %1656 = vmatprep.subr.bf16.mxu0 %v1162
    %1657 = vmatpush1.bf16.msra.mxu0 %v1161
    %1658 = vmatprep.subr.bf16.mxu0 %v1166
    %1659 = vmatpush1.bf16.msra.mxu0 %v1165
    %1660 = vmatprep.subr.bf16.mxu0 %v1170
    %1661 = vmatpush1.bf16.msra.mxu0 %v1169
    %1662 = vmatprep.subr.bf16.mxu0 %v1174
    %1663 = vmatpush1.bf16.msra.mxu0 %v1173
    %1664 = vmatprep.subr.bf16.mxu0 %v1178
    %1665 = vmatpush1.bf16.msra.mxu0 %v1177
    %1666 = vmatprep.subr.bf16.mxu0 %v1182
    %1667 = vmatpush1.bf16.msra.mxu0 %v1181
    %1668 = vmatprep.subr.bf16.mxu0 %v1186
    %1669 = vmatpush1.bf16.msra.mxu0 %v1185
    %1670 = vmatprep.subr.bf16.mxu0 %v1190
    %1671 = vmatpush1.bf16.msra.mxu0 %v1189
    %1672 = vmatprep.subr.bf16.mxu0 %v1194
    %1673 = vmatpush1.bf16.msra.mxu0 %v1193
    %1674 = vmatprep.subr.bf16.mxu0 %v1198
    %1675 = vmatpush1.bf16.msra.mxu0 %v1197
    %1676 = vmatprep.subr.bf16.mxu0 %v1202
    %1677 = vmatpush1.bf16.msra.mxu0 %v1201
    %1678 = vmatprep.mubr.bf16.mxu0 %v547
    %1679 = vmatmul.mubr.bf16.gmra.mrb[0].mxu0 %v533
    %v1680 = vpop.f32.mrb[0].mxu0
    %v1681 = vadd.f32 0.0, %v1680
    %v1682 = vpop.f32.mrb[0].mxu0
    %v1683 = vadd.f32 0.0, %v1682
    %v1684 = vpop.f32.mrb[0].mxu0
    %v1685 = vpop.f32.mrb[0].mxu0
    %1686 = vdwg.mxu0
    %1687 = vmatprep.subr.bf16.mxu0 %v1206
    %1688 = vmatpush1.bf16.msra.mxu0 %v1205
    %1689 = vmatprep.subr.bf16.mxu0 %v1210
    %1690 = vmatpush1.bf16.msra.mxu0 %v1209
    %1691 = vmatprep.subr.bf16.mxu0 %v1214
    %1692 = vmatpush1.bf16.msra.mxu0 %v1213
    %1693 = vmatprep.subr.bf16.mxu0 %v1218
    %1694 = vmatpush1.bf16.msra.mxu0 %v1217
    %1695 = vmatprep.subr.bf16.mxu0 %v1222
    %1696 = vmatpush1.bf16.msra.mxu0 %v1221
    %1697 = vmatprep.subr.bf16.mxu0 %v1226
    %1698 = vmatpush1.bf16.msra.mxu0 %v1225
    %1699 = vmatprep.subr.bf16.mxu0 %v1230
    %1700 = vmatpush1.bf16.msra.mxu0 %v1229
    %1701 = vmatprep.subr.bf16.mxu0 %v1234
    %1702 = vmatpush1.bf16.msra.mxu0 %v1233
    %1703 = vmatprep.subr.bf16.mxu0 %v1238
    %1704 = vmatpush1.bf16.msra.mxu0 %v1237
    %1705 = vmatprep.subr.bf16.mxu0 %v1242
    %1706 = vmatpush1.bf16.msra.mxu0 %v1241
    %1707 = vmatprep.subr.bf16.mxu0 %v1246
    %1708 = vmatpush1.bf16.msra.mxu0 %v1245
    %1709 = vmatprep.subr.bf16.mxu0 %v1250
    %1710 = vmatpush1.bf16.msra.mxu0 %v1249
    %1711 = vmatprep.subr.bf16.mxu0 %v1254
    %1712 = vmatpush1.bf16.msra.mxu0 %v1253
    %1713 = vmatprep.subr.bf16.mxu0 %v1258
    %1714 = vmatpush1.bf16.msra.mxu0 %v1257
    %1715 = vmatprep.subr.bf16.mxu0 %v1262
    %1716 = vmatpush1.bf16.msra.mxu0 %v1261
    %1717 = vmatprep.subr.bf16.mxu0 %v1266
    %1718 = vmatpush1.bf16.msra.mxu0 %v1265
    %1719 = vmatprep.mubr.bf16.mxu0 %v556
    %1720 = vmatmul.mubr.bf16.gmra.mrb[0].mxu0 %v555
    %v1721 = vpop.f32.mrb[0].mxu0
    %v1722 = vadd.f32 %v1681, %v1721
    %v1723 = vpop.f32.mrb[0].mxu0
    %v1724 = vadd.f32 %v1683, %v1723
    %v1725 = vpop.f32.mrb[0].mxu0
    %v1726 = vpop.f32.mrb[0].mxu0
    %1727 = vdwg.mxu0
    %1728 = vmatprep.subr.bf16.mxu0 %v1270
    %1729 = vmatpush1.bf16.msra.mxu0 %v1269
    %1730 = vmatprep.subr.bf16.mxu0 %v1274
    %1731 = vmatpush1.bf16.msra.mxu0 %v1273
    %1732 = vmatprep.subr.bf16.mxu0 %v1278
    %1733 = vmatpush1.bf16.msra.mxu0 %v1277
    %1734 = vmatprep.subr.bf16.mxu0 %v1282
    %1735 = vmatpush1.bf16.msra.mxu0 %v1281
    %1736 = vmatprep.subr.bf16.mxu0 %v1286
    %1737 = vmatpush1.bf16.msra.mxu0 %v1285
    %1738 = vmatprep.subr.bf16.mxu0 %v1290
    %1739 = vmatpush1.bf16.msra.mxu0 %v1289
    %1740 = vmatprep.subr.bf16.mxu0 %v1294
    %1741 = vmatpush1.bf16.msra.mxu0 %v1293
    %1742 = vmatprep.subr.bf16.mxu0 %v1298
    %1743 = vmatpush1.bf16.msra.mxu0 %v1297
    %1744 = vmatprep.subr.bf16.mxu0 %v1302
    %1745 = vmatpush1.bf16.msra.mxu0 %v1301
    %1746 = vmatprep.subr.bf16.mxu0 %v1306
    %1747 = vmatpush1.bf16.msra.mxu0 %v1305
    %1748 = vmatprep.subr.bf16.mxu0 %v1310
    %1749 = vmatpush1.bf16.msra.mxu0 %v1309
    %1750 = vmatprep.subr.bf16.mxu0 %v1314
    %1751 = vmatpush1.bf16.msra.mxu0 %v1313
    %1752 = vmatprep.subr.bf16.mxu0 %v1318
    %1753 = vmatpush1.bf16.msra.mxu0 %v1317
    %1754 = vmatprep.subr.bf16.mxu0 %v1322
    %1755 = vmatpush1.bf16.msra.mxu0 %v1321
    %1756 = vmatprep.subr.bf16.mxu0 %v1326
    %1757 = vmatpush1.bf16.msra.mxu0 %v1325
    %1758 = vmatprep.subr.bf16.mxu0 %v1330
    %1759 = vmatpush1.bf16.msra.mxu0 %v1329
    %1760 = vmatprep.mubr.bf16.mxu0 %v554
    %1761 = vmatmul.mubr.bf16.gmra.mrb[0].mxu0 %v540
    %v1762 = vpop.f32.mrb[0].mxu0
    %v1763 = vadd.f32 %v1722, %v1762
    %v1764 = vpop.f32.mrb[0].mxu0
    %v1765 = vadd.f32 %v1724, %v1764
    %v1766 = vpop.f32.mrb[0].mxu0
    %v1767 = vpop.f32.mrb[0].mxu0
    %1768 = vdwg.mxu0
    %v1773 = vcombine.low %v95, %v96
    %v1774 = vcombine.high %v95, %v96
    %v1775 = vcombine.low %v97, %v98
    %v1776 = vcombine.high %v97, %v98
    %v1778 = vunpack.c.l.s4 1966171168
    %v1779 = vunpack.c.0.s8 %v1778
    %v1780 = vlaneseq
    %v1781 = vshrl.u32 %v1780, 7
    %v1782 = vsub.s32 %v1779, %v1781
    %v1783 = vrot.slane %v1773, %v1782
    %v1785 = vunpack.c.l.s4 1966171168
    %v1786 = vunpack.c.0.s8 %v1785
    %v1787 = vlaneseq
    %v1788 = vshrl.u32 %v1787, 7
    %v1789 = vsub.s32 %v1786, %v1788
    %v1790 = vrot.slane %v1774, %v1789
    %v1792 = vunpack.c.l.s4 1966171168
    %v1793 = vunpack.c.0.s8 %v1792
    %v1794 = vlaneseq
    %v1795 = vshrl.u32 %v1794, 7
    %v1796 = vsub.s32 %v1793, %v1795
    %v1797 = vrot.slane %v1775, %v1796
    %v1799 = vunpack.c.l.s4 1966171168
    %v1800 = vunpack.c.0.s8 %v1799
    %v1801 = vlaneseq
    %v1802 = vshrl.u32 %v1801, 7
    %v1803 = vsub.s32 %v1800, %v1802
    %v1804 = vrot.slane %v1776, %v1803
    %v1805 = vcombine.low %v1783, %v1797
    %v1806 = vcombine.high %v1783, %v1797
    %v1807 = vcombine.low %v1790, %v1804
    %v1808 = vcombine.high %v1790, %v1804
    %v1810 = vunpack.c.l.s4 1966171168
    %v1811 = vunpack.c.0.s8 %v1810
    %v1812 = vlaneseq
    %v1813 = vshrl.u32 %v1812, 7
    %v1814 = vsub.s32 %v1811, %v1813
    %v1815 = vrot.slane %v1805, %v1814
    %v1817 = vunpack.c.l.s4 1966171168
    %v1818 = vunpack.c.0.s8 %v1817
    %v1819 = vlaneseq
    %v1820 = vshrl.u32 %v1819, 7
    %v1821 = vsub.s32 %v1818, %v1820
    %v1822 = vrot.slane %v1807, %v1821
    %v1824 = vunpack.c.l.s4 1966171168
    %v1825 = vunpack.c.0.s8 %v1824
    %v1826 = vlaneseq
    %v1827 = vshrl.u32 %v1826, 7
    %v1828 = vsub.s32 %v1825, %v1827
    %v1829 = vrot.slane %v1806, %v1828
    %v1831 = vunpack.c.l.s4 1966171168
    %v1832 = vunpack.c.0.s8 %v1831
    %v1833 = vlaneseq
    %v1834 = vshrl.u32 %v1833, 7
    %v1835 = vsub.s32 %v1832, %v1834
    %v1836 = vrot.slane %v1808, %v1835
    %v1837 = vcombine.high %v1815, %v1815
    %v1838 = vcombine.high %v1829, %v1829
    %v2037 = vunpack.c.l.b16 %v103
    %v2038 = vunpack.c.h.b16 %v103
    %v2039 = vunpack.c.l.b16 %v104
    %v2040 = vunpack.c.h.b16 %v104
    %v2041 = vunpack.c.l.b16 %v105
    %v2042 = vunpack.c.h.b16 %v105
    %v2043 = vunpack.c.l.b16 %v106
    %v2044 = vunpack.c.h.b16 %v106
    %v2045 = vunpack.c.l.b16 %v107
    %v2046 = vunpack.c.h.b16 %v107
    %v2047 = vunpack.c.l.b16 %v108
    %v2048 = vunpack.c.h.b16 %v108
    %v2049 = vunpack.c.l.b16 %v109
    %v2050 = vunpack.c.h.b16 %v109
    %v2051 = vunpack.c.l.b16 %v110
    %v2052 = vunpack.c.h.b16 %v110
    %v2053 = vunpack.c.l.b16 %v111
    %v2054 = vunpack.c.h.b16 %v111
    %v2055 = vunpack.c.l.b16 %v112
    %v2056 = vunpack.c.h.b16 %v112
    %v2057 = vunpack.c.l.b16 %v113
    %v2058 = vunpack.c.h.b16 %v113
    %v2059 = vunpack.c.l.b16 %v114
    %v2060 = vunpack.c.h.b16 %v114
    %v2061 = vunpack.c.l.b16 %v115
    %v2062 = vunpack.c.h.b16 %v115
    %v2063 = vunpack.c.l.b16 %v116
    %v2064 = vunpack.c.h.b16 %v116
    %v2065 = vunpack.c.l.b16 %v117
    %v2066 = vunpack.c.h.b16 %v117
    %v2067 = vunpack.c.l.b16 %v118
    %v2068 = vunpack.c.h.b16 %v118
    %v2069 = vunpack.c.l.b16 %v119
    %v2070 = vunpack.c.h.b16 %v119
    %v2071 = vunpack.c.l.b16 %v120
    %v2072 = vunpack.c.h.b16 %v120
    %v2073 = vunpack.c.l.b16 %v121
    %v2074 = vunpack.c.h.b16 %v121
    %v2075 = vunpack.c.l.b16 %v122
    %v2076 = vunpack.c.h.b16 %v122
    %v2077 = vunpack.c.l.b16 %v123
    %v2078 = vunpack.c.h.b16 %v123
    %v2079 = vunpack.c.l.b16 %v124
    %v2080 = vunpack.c.h.b16 %v124
    %v2081 = vunpack.c.l.b16 %v125
    %v2082 = vunpack.c.h.b16 %v125
    %v2083 = vunpack.c.l.b16 %v126
    %v2084 = vunpack.c.h.b16 %v126
    %v2085 = vunpack.c.l.b16 %v127
    %v2086 = vunpack.c.h.b16 %v127
    %v2087 = vunpack.c.l.b16 %v128
    %v2088 = vunpack.c.h.b16 %v128
    %v2089 = vunpack.c.l.b16 %v129
    %v2090 = vunpack.c.h.b16 %v129
    %v2091 = vunpack.c.l.b16 %v130
    %v2092 = vunpack.c.h.b16 %v130
    %v2093 = vunpack.c.l.b16 %v131
    %v2094 = vunpack.c.h.b16 %v131
    %v2095 = vunpack.c.l.b16 %v132
    %v2096 = vunpack.c.h.b16 %v132
    %v2097 = vunpack.c.l.b16 %v133
    %v2098 = vunpack.c.h.b16 %v133
    %v2099 = vunpack.c.l.b16 %v134
    %v2100 = vunpack.c.h.b16 %v134
    %v2101 = vunpack.c.l.b16 %v135
    %v2102 = vunpack.c.h.b16 %v135
    %v2103 = vunpack.c.l.b16 %v136
    %v2104 = vunpack.c.h.b16 %v136
    %v2105 = vunpack.c.l.b16 %v137
    %v2106 = vunpack.c.h.b16 %v137
    %v2107 = vunpack.c.l.b16 %v138
    %v2108 = vunpack.c.h.b16 %v138
    %v2109 = vunpack.c.l.b16 %v139
    %v2110 = vunpack.c.h.b16 %v139
    %v2111 = vunpack.c.l.b16 %v140
    %v2112 = vunpack.c.h.b16 %v140
    %v2113 = vunpack.c.l.b16 %v141
    %v2114 = vunpack.c.h.b16 %v141
    %v2115 = vunpack.c.l.b16 %v142
    %v2116 = vunpack.c.h.b16 %v142
    %v2117 = vunpack.c.l.b16 %v143
    %v2118 = vunpack.c.h.b16 %v143
    %v2119 = vunpack.c.l.b16 %v144
    %v2120 = vunpack.c.h.b16 %v144
    %v2121 = vunpack.c.l.b16 %v145
    %v2122 = vunpack.c.h.b16 %v145
    %v2123 = vunpack.c.l.b16 %v146
    %v2124 = vunpack.c.h.b16 %v146
    %v2125 = vunpack.c.l.b16 %v147
    %v2126 = vunpack.c.h.b16 %v147
    %v2127 = vunpack.c.l.b16 %v148
    %v2128 = vunpack.c.h.b16 %v148
    %v2129 = vunpack.c.l.b16 %v149
    %v2130 = vunpack.c.h.b16 %v149
    %v2131 = vunpack.c.l.b16 %v150
    %v2132 = vunpack.c.h.b16 %v150
    %v2133 = vunpack.c.l.b16 %v151
    %v2134 = vunpack.c.h.b16 %v151
    %v2135 = vunpack.c.l.b16 %v152
    %v2136 = vunpack.c.h.b16 %v152
    %v2137 = vunpack.c.l.b16 %v153
    %v2138 = vunpack.c.h.b16 %v153
    %v2139 = vunpack.c.l.b16 %v154
    %v2140 = vunpack.c.h.b16 %v154
    %v2141 = vunpack.c.l.b16 %v155
    %v2142 = vunpack.c.h.b16 %v155
    %v2143 = vunpack.c.l.b16 %v156
    %v2144 = vunpack.c.h.b16 %v156
    %v2145 = vunpack.c.l.b16 %v157
    %v2146 = vunpack.c.h.b16 %v157
    %v2147 = vunpack.c.l.b16 %v158
    %v2148 = vunpack.c.h.b16 %v158
    %v2149 = vunpack.c.l.b16 %v159
    %v2150 = vunpack.c.h.b16 %v159
    %v2151 = vunpack.c.l.b16 %v160
    %v2152 = vunpack.c.h.b16 %v160
    %v2153 = vunpack.c.l.b16 %v161
    %v2154 = vunpack.c.h.b16 %v161
    %v2155 = vunpack.c.l.b16 %v162
    %v2156 = vunpack.c.h.b16 %v162
    %v2157 = vunpack.c.l.b16 %v163
    %v2158 = vunpack.c.h.b16 %v163
    %v2159 = vunpack.c.l.b16 %v164
    %v2160 = vunpack.c.h.b16 %v164
    %v2161 = vunpack.c.l.b16 %v165
    %v2162 = vunpack.c.h.b16 %v165
    %v2163 = vunpack.c.l.b16 %v166
    %v2164 = vunpack.c.h.b16 %v166
    %v2165 = vunpack.c.l.b16 %v167
    %v2166 = vunpack.c.h.b16 %v167
    %v2167 = vunpack.c.l.b16 %v168
    %v2168 = vunpack.c.h.b16 %v168
    %v2169 = vunpack.c.l.b16 %v169
    %v2170 = vunpack.c.h.b16 %v169
    %v2171 = vunpack.c.l.b16 %v170
    %v2172 = vunpack.c.h.b16 %v170
    %v2173 = vunpack.c.l.b16 %v171
    %v2174 = vunpack.c.h.b16 %v171
    %v2175 = vunpack.c.l.b16 %v172
    %v2176 = vunpack.c.h.b16 %v172
    %v2177 = vunpack.c.l.b16 %v173
    %v2178 = vunpack.c.h.b16 %v173
    %v2179 = vunpack.c.l.b16 %v174
    %v2180 = vunpack.c.h.b16 %v174
    %v2181 = vunpack.c.l.b16 %v175
    %v2182 = vunpack.c.h.b16 %v175
    %v2183 = vunpack.c.l.b16 %v176
    %v2184 = vunpack.c.h.b16 %v176
    %v2185 = vunpack.c.l.b16 %v177
    %v2186 = vunpack.c.h.b16 %v177
    %v2187 = vunpack.c.l.b16 %v178
    %v2188 = vunpack.c.h.b16 %v178
    %v2189 = vunpack.c.l.b16 %v179
    %v2190 = vunpack.c.h.b16 %v179
    %v2191 = vunpack.c.l.b16 %v180
    %v2192 = vunpack.c.h.b16 %v180
    %v2193 = vunpack.c.l.b16 %v181
    %v2194 = vunpack.c.h.b16 %v181
    %v2195 = vunpack.c.l.b16 %v182
    %v2196 = vunpack.c.h.b16 %v182
    %v2197 = vunpack.c.l.b16 %v183
    %v2198 = vunpack.c.h.b16 %v183
    %v2199 = vunpack.c.l.b16 %v184
    %v2200 = vunpack.c.h.b16 %v184
    %v2201 = vunpack.c.l.b16 %v185
    %v2202 = vunpack.c.h.b16 %v185
    %v2203 = vunpack.c.l.b16 %v186
    %v2204 = vunpack.c.h.b16 %v186
    %v2205 = vunpack.c.l.b16 %v187
    %v2206 = vunpack.c.h.b16 %v187
    %v2207 = vunpack.c.l.b16 %v188
    %v2208 = vunpack.c.h.b16 %v188
    %v2209 = vunpack.c.l.b16 %v189
    %v2210 = vunpack.c.h.b16 %v189
    %v2211 = vunpack.c.l.b16 %v190
    %v2212 = vunpack.c.h.b16 %v190
    %v2213 = vunpack.c.l.b16 %v191
    %v2214 = vunpack.c.h.b16 %v191
    %v2215 = vunpack.c.l.b16 %v192
    %v2216 = vunpack.c.h.b16 %v192
    %v2217 = vunpack.c.l.b16 %v193
    %v2218 = vunpack.c.h.b16 %v193
    %v2219 = vunpack.c.l.b16 %v194
    %v2220 = vunpack.c.h.b16 %v194
    %v2221 = vunpack.c.l.b16 %v195
    %v2222 = vunpack.c.h.b16 %v195
    %v2223 = vunpack.c.l.b16 %v196
    %v2224 = vunpack.c.h.b16 %v196
    %v2225 = vunpack.c.l.b16 %v197
    %v2226 = vunpack.c.h.b16 %v197
    %v2227 = vunpack.c.l.b16 %v198
    %v2228 = vunpack.c.h.b16 %v198
    %v2229 = vunpack.c.l.b16 %v199
    %v2230 = vunpack.c.h.b16 %v199
    %v2231 = vunpack.c.l.b16 %v200
    %v2232 = vunpack.c.h.b16 %v200
    %v2233 = vunpack.c.l.b16 %v201
    %v2234 = vunpack.c.h.b16 %v201
    %v2235 = vunpack.c.l.b16 %v202
    %v2236 = vunpack.c.h.b16 %v202
    %v2237 = vunpack.c.l.b16 %v203
    %v2238 = vunpack.c.h.b16 %v203
    %v2239 = vunpack.c.l.b16 %v204
    %v2240 = vunpack.c.h.b16 %v204
    %v2241 = vunpack.c.l.b16 %v205
    %v2242 = vunpack.c.h.b16 %v205
    %v2243 = vunpack.c.l.b16 %v206
    %v2244 = vunpack.c.h.b16 %v206
    %v2245 = vunpack.c.l.b16 %v207
    %v2246 = vunpack.c.h.b16 %v207
    %v2247 = vunpack.c.l.b16 %v208
    %v2248 = vunpack.c.h.b16 %v208
    %v2249 = vunpack.c.l.b16 %v209
    %v2250 = vunpack.c.h.b16 %v209
    %v2251 = vunpack.c.l.b16 %v210
    %v2252 = vunpack.c.h.b16 %v210
    %v2253 = vunpack.c.l.b16 %v211
    %v2254 = vunpack.c.h.b16 %v211
    %v2255 = vunpack.c.l.b16 %v212
    %v2256 = vunpack.c.h.b16 %v212
    %v2257 = vunpack.c.l.b16 %v213
    %v2258 = vunpack.c.h.b16 %v213
    %v2259 = vunpack.c.l.b16 %v214
    %v2260 = vunpack.c.h.b16 %v214
    %v2261 = vunpack.c.l.b16 %v215
    %v2262 = vunpack.c.h.b16 %v215
    %v2263 = vunpack.c.l.b16 %v216
    %v2264 = vunpack.c.h.b16 %v216
    %v2265 = vunpack.c.l.b16 %v217
    %v2266 = vunpack.c.h.b16 %v217
    %v2267 = vunpack.c.l.b16 %v218
    %v2268 = vunpack.c.h.b16 %v218
    %v2269 = vunpack.c.l.b16 %v219
    %v2270 = vunpack.c.h.b16 %v219
    %v2271 = vunpack.c.l.b16 %v220
    %v2272 = vunpack.c.h.b16 %v220
    %v2273 = vunpack.c.l.b16 %v221
    %v2274 = vunpack.c.h.b16 %v221
    %v2275 = vunpack.c.l.b16 %v222
    %v2276 = vunpack.c.h.b16 %v222
    %v2277 = vunpack.c.l.b16 %v223
    %v2278 = vunpack.c.h.b16 %v223
    %v2279 = vunpack.c.l.b16 %v224
    %v2280 = vunpack.c.h.b16 %v224
    %v2281 = vunpack.c.l.b16 %v225
    %v2282 = vunpack.c.h.b16 %v225
    %v2283 = vunpack.c.l.b16 %v226
    %v2284 = vunpack.c.h.b16 %v226
    %v2285 = vunpack.c.l.b16 %v227
    %v2286 = vunpack.c.h.b16 %v227
    %v2287 = vunpack.c.l.b16 %v228
    %v2288 = vunpack.c.h.b16 %v228
    %v2289 = vunpack.c.l.b16 %v229
    %v2290 = vunpack.c.h.b16 %v229
    %v2291 = vunpack.c.l.b16 %v230
    %v2292 = vunpack.c.h.b16 %v230
    %v2293 = vunpack.c.l.b16 %v231
    %v2294 = vunpack.c.h.b16 %v231
    %v2295 = vunpack.c.l.b16 %v232
    %v2296 = vunpack.c.h.b16 %v232
    %v2297 = vunpack.c.l.b16 %v233
    %v2298 = vunpack.c.h.b16 %v233
    %v2299 = vunpack.c.l.b16 %v234
    %v2300 = vunpack.c.h.b16 %v234
    %v2301 = vunpack.c.l.b16 %v235
    %v2302 = vunpack.c.h.b16 %v235
    %v2303 = vunpack.c.l.b16 %v236
    %v2304 = vunpack.c.h.b16 %v236
    %v2305 = vunpack.c.l.b16 %v237
    %v2306 = vunpack.c.h.b16 %v237
    %v2307 = vunpack.c.l.b16 %v238
    %v2308 = vunpack.c.h.b16 %v238
    %v2309 = vunpack.c.l.b16 %v239
    %v2310 = vunpack.c.h.b16 %v239
    %v2311 = vunpack.c.l.b16 %v240
    %v2312 = vunpack.c.h.b16 %v240
    %v2313 = vunpack.c.l.b16 %v241
    %v2314 = vunpack.c.h.b16 %v241
    %v2315 = vunpack.c.l.b16 %v242
    %v2316 = vunpack.c.h.b16 %v242
    %v2317 = vunpack.c.l.b16 %v243
    %v2318 = vunpack.c.h.b16 %v243
    %v2319 = vunpack.c.l.b16 %v244
    %v2320 = vunpack.c.h.b16 %v244
    %v2321 = vunpack.c.l.b16 %v245
    %v2322 = vunpack.c.h.b16 %v245
    %v2323 = vunpack.c.l.b16 %v246
    %v2324 = vunpack.c.h.b16 %v246
    %v2325 = vunpack.c.l.b16 %v247
    %v2326 = vunpack.c.h.b16 %v247
    %v2327 = vunpack.c.l.b16 %v248
    %v2328 = vunpack.c.h.b16 %v248
    %v2329 = vunpack.c.l.b16 %v249
    %v2330 = vunpack.c.h.b16 %v249
    %v2331 = vunpack.c.l.b16 %v250
    %v2332 = vunpack.c.h.b16 %v250
    %v2333 = vunpack.c.l.b16 %v251
    %v2334 = vunpack.c.h.b16 %v251
    %v2335 = vunpack.c.l.b16 %v252
    %v2336 = vunpack.c.h.b16 %v252
    %v2337 = vunpack.c.l.b16 %v253
    %v2338 = vunpack.c.h.b16 %v253
    %v2339 = vunpack.c.l.b16 %v254
    %v2340 = vunpack.c.h.b16 %v254
    %v2341 = vunpack.c.l.b16 %v255
    %v2342 = vunpack.c.h.b16 %v255
    %v2343 = vunpack.c.l.b16 %v256
    %v2344 = vunpack.c.h.b16 %v256
    %v2345 = vunpack.c.l.b16 %v257
    %v2346 = vunpack.c.h.b16 %v257
    %v2347 = vunpack.c.l.b16 %v258
    %v2348 = vunpack.c.h.b16 %v258
    %v2349 = vunpack.c.l.b16 %v259
    %v2350 = vunpack.c.h.b16 %v259
    %v2351 = vunpack.c.l.b16 %v260
    %v2352 = vunpack.c.h.b16 %v260
    %v2353 = vunpack.c.l.b16 %v261
    %v2354 = vunpack.c.h.b16 %v261
    %v2355 = vunpack.c.l.b16 %v262
    %v2356 = vunpack.c.h.b16 %v262
    %v2357 = vunpack.c.l.b16 %v263
    %v2358 = vunpack.c.h.b16 %v263
    %v2359 = vunpack.c.l.b16 %v264
    %v2360 = vunpack.c.h.b16 %v264
    %v2361 = vunpack.c.l.b16 %v265
    %v2362 = vunpack.c.h.b16 %v265
    %v2363 = vunpack.c.l.b16 %v266
    %v2364 = vunpack.c.h.b16 %v266
    %v2365 = vunpack.c.l.b16 %v267
    %v2366 = vunpack.c.h.b16 %v267
    %v2367 = vunpack.c.l.b16 %v268
    %v2368 = vunpack.c.h.b16 %v268
    %v2369 = vunpack.c.l.b16 %v269
    %v2370 = vunpack.c.h.b16 %v269
    %v2371 = vunpack.c.l.b16 %v270
    %v2372 = vunpack.c.h.b16 %v270
    %v2373 = vunpack.c.l.b16 %v271
    %v2374 = vunpack.c.h.b16 %v271
    %v2375 = vunpack.c.l.b16 %v272
    %v2376 = vunpack.c.h.b16 %v272
    %v2377 = vunpack.c.l.b16 %v273
    %v2378 = vunpack.c.h.b16 %v273
    %v2379 = vunpack.c.l.b16 %v274
    %v2380 = vunpack.c.h.b16 %v274
    %v2381 = vunpack.c.l.b16 %v275
    %v2382 = vunpack.c.h.b16 %v275
    %v2383 = vunpack.c.l.b16 %v276
    %v2384 = vunpack.c.h.b16 %v276
    %v2385 = vunpack.c.l.b16 %v277
    %v2386 = vunpack.c.h.b16 %v277
    %v2387 = vunpack.c.l.b16 %v278
    %v2388 = vunpack.c.h.b16 %v278
    %v2389 = vunpack.c.l.b16 %v279
    %v2390 = vunpack.c.h.b16 %v279
    %v2391 = vunpack.c.l.b16 %v280
    %v2392 = vunpack.c.h.b16 %v280
    %v2393 = vunpack.c.l.b16 %v281
    %v2394 = vunpack.c.h.b16 %v281
    %v2395 = vunpack.c.l.b16 %v282
    %v2396 = vunpack.c.h.b16 %v282
    %v2397 = vunpack.c.l.b16 %v283
    %v2398 = vunpack.c.h.b16 %v283
    %v2399 = vunpack.c.l.b16 %v284
    %v2400 = vunpack.c.h.b16 %v284
    %v2401 = vunpack.c.l.b16 %v285
    %v2402 = vunpack.c.h.b16 %v285
    %v2403 = vunpack.c.l.b16 %v286
    %v2404 = vunpack.c.h.b16 %v286
    %v2405 = vunpack.c.l.b16 %v287
    %v2406 = vunpack.c.h.b16 %v287
    %v2407 = vunpack.c.l.b16 %v288
    %v2408 = vunpack.c.h.b16 %v288
    %v2409 = vunpack.c.l.b16 %v289
    %v2410 = vunpack.c.h.b16 %v289
    %v2411 = vunpack.c.l.b16 %v290
    %v2412 = vunpack.c.h.b16 %v290
    %v2413 = vunpack.c.l.b16 %v291
    %v2414 = vunpack.c.h.b16 %v291
    %v2415 = vunpack.c.l.b16 %v292
    %v2416 = vunpack.c.h.b16 %v292
    %v2417 = vunpack.c.l.b16 %v293
    %v2418 = vunpack.c.h.b16 %v293
    %v2419 = vunpack.c.l.b16 %v294
    %v2420 = vunpack.c.h.b16 %v294
    %v2421 = vpack.c.b16 %v2041, %v2037
    %v2422 = vpack.c.b16 %v2042, %v2038
    %v2423 = vpack.c.b16 %v2043, %v2039
    %v2424 = vpack.c.b16 %v2044, %v2040
    %v2425 = vpack.c.b16 %v2049, %v2045
    %v2426 = vpack.c.b16 %v2050, %v2046
    %v2427 = vpack.c.b16 %v2051, %v2047
    %v2428 = vpack.c.b16 %v2052, %v2048
    %v2429 = vpack.c.b16 %v2057, %v2053
    %v2430 = vpack.c.b16 %v2058, %v2054
    %v2431 = vpack.c.b16 %v2059, %v2055
    %v2432 = vpack.c.b16 %v2060, %v2056
    %v2433 = vpack.c.b16 %v2065, %v2061
    %v2434 = vpack.c.b16 %v2066, %v2062
    %v2435 = vpack.c.b16 %v2067, %v2063
    %v2436 = vpack.c.b16 %v2068, %v2064
    %v2437 = vpack.c.b16 %v2073, %v2069
    %v2438 = vpack.c.b16 %v2074, %v2070
    %v2439 = vpack.c.b16 %v2075, %v2071
    %v2440 = vpack.c.b16 %v2076, %v2072
    %v2441 = vpack.c.b16 %v2081, %v2077
    %v2442 = vpack.c.b16 %v2082, %v2078
    %v2443 = vpack.c.b16 %v2083, %v2079
    %v2444 = vpack.c.b16 %v2084, %v2080
    %v2445 = vpack.c.b16 %v2089, %v2085
    %v2446 = vpack.c.b16 %v2090, %v2086
    %v2447 = vpack.c.b16 %v2091, %v2087
    %v2448 = vpack.c.b16 %v2092, %v2088
    %v2449 = vpack.c.b16 %v2097, %v2093
    %v2450 = vpack.c.b16 %v2098, %v2094
    %v2451 = vpack.c.b16 %v2099, %v2095
    %v2452 = vpack.c.b16 %v2100, %v2096
    %v2453 = vpack.c.b16 %v2105, %v2101
    %v2454 = vpack.c.b16 %v2106, %v2102
    %v2455 = vpack.c.b16 %v2107, %v2103
    %v2456 = vpack.c.b16 %v2108, %v2104
    %v2457 = vpack.c.b16 %v2113, %v2109
    %v2458 = vpack.c.b16 %v2114, %v2110
    %v2459 = vpack.c.b16 %v2115, %v2111
    %v2460 = vpack.c.b16 %v2116, %v2112
    %v2461 = vpack.c.b16 %v2121, %v2117
    %v2462 = vpack.c.b16 %v2122, %v2118
    %v2463 = vpack.c.b16 %v2123, %v2119
    %v2464 = vpack.c.b16 %v2124, %v2120
    %v2465 = vpack.c.b16 %v2129, %v2125
    %v2466 = vpack.c.b16 %v2130, %v2126
    %v2467 = vpack.c.b16 %v2131, %v2127
    %v2468 = vpack.c.b16 %v2132, %v2128
    %v2469 = vpack.c.b16 %v2137, %v2133
    %v2470 = vpack.c.b16 %v2138, %v2134
    %v2471 = vpack.c.b16 %v2139, %v2135
    %v2472 = vpack.c.b16 %v2140, %v2136
    %v2473 = vpack.c.b16 %v2145, %v2141
    %v2474 = vpack.c.b16 %v2146, %v2142
    %v2475 = vpack.c.b16 %v2147, %v2143
    %v2476 = vpack.c.b16 %v2148, %v2144
    %v2477 = vpack.c.b16 %v2153, %v2149
    %v2478 = vpack.c.b16 %v2154, %v2150
    %v2479 = vpack.c.b16 %v2155, %v2151
    %v2480 = vpack.c.b16 %v2156, %v2152
    %v2481 = vpack.c.b16 %v2161, %v2157
    %v2482 = vpack.c.b16 %v2162, %v2158
    %v2483 = vpack.c.b16 %v2163, %v2159
    %v2484 = vpack.c.b16 %v2164, %v2160
    %v2485 = vpack.c.b16 %v2169, %v2165
    %v2486 = vpack.c.b16 %v2170, %v2166
    %v2487 = vpack.c.b16 %v2171, %v2167
    %v2488 = vpack.c.b16 %v2172, %v2168
    %v2489 = vpack.c.b16 %v2177, %v2173
    %v2490 = vpack.c.b16 %v2178, %v2174
    %v2491 = vpack.c.b16 %v2179, %v2175
    %v2492 = vpack.c.b16 %v2180, %v2176
    %v2493 = vpack.c.b16 %v2185, %v2181
    %v2494 = vpack.c.b16 %v2186, %v2182
    %v2495 = vpack.c.b16 %v2187, %v2183
    %v2496 = vpack.c.b16 %v2188, %v2184
    %v2497 = vpack.c.b16 %v2193, %v2189
    %v2498 = vpack.c.b16 %v2194, %v2190
    %v2499 = vpack.c.b16 %v2195, %v2191
    %v2500 = vpack.c.b16 %v2196, %v2192
    %v2501 = vpack.c.b16 %v2201, %v2197
    %v2502 = vpack.c.b16 %v2202, %v2198
    %v2503 = vpack.c.b16 %v2203, %v2199
    %v2504 = vpack.c.b16 %v2204, %v2200
    %v2505 = vpack.c.b16 %v2209, %v2205
    %v2506 = vpack.c.b16 %v2210, %v2206
    %v2507 = vpack.c.b16 %v2211, %v2207
    %v2508 = vpack.c.b16 %v2212, %v2208
    %v2509 = vpack.c.b16 %v2217, %v2213
    %v2510 = vpack.c.b16 %v2218, %v2214
    %v2511 = vpack.c.b16 %v2219, %v2215
    %v2512 = vpack.c.b16 %v2220, %v2216
    %v2513 = vpack.c.b16 %v2225, %v2221
    %v2514 = vpack.c.b16 %v2226, %v2222
    %v2515 = vpack.c.b16 %v2227, %v2223
    %v2516 = vpack.c.b16 %v2228, %v2224
    %v2517 = vpack.c.b16 %v2233, %v2229
    %v2518 = vpack.c.b16 %v2234, %v2230
    %v2519 = vpack.c.b16 %v2235, %v2231
    %v2520 = vpack.c.b16 %v2236, %v2232
    %v2521 = vpack.c.b16 %v2241, %v2237
    %v2522 = vpack.c.b16 %v2242, %v2238
    %v2523 = vpack.c.b16 %v2243, %v2239
    %v2524 = vpack.c.b16 %v2244, %v2240
    %v2525 = vpack.c.b16 %v2249, %v2245
    %v2526 = vpack.c.b16 %v2250, %v2246
    %v2527 = vpack.c.b16 %v2251, %v2247
    %v2528 = vpack.c.b16 %v2252, %v2248
    %v2529 = vpack.c.b16 %v2257, %v2253
    %v2530 = vpack.c.b16 %v2258, %v2254
    %v2531 = vpack.c.b16 %v2259, %v2255
    %v2532 = vpack.c.b16 %v2260, %v2256
    %v2533 = vpack.c.b16 %v2265, %v2261
    %v2534 = vpack.c.b16 %v2266, %v2262
    %v2535 = vpack.c.b16 %v2267, %v2263
    %v2536 = vpack.c.b16 %v2268, %v2264
    %v2537 = vpack.c.b16 %v2273, %v2269
    %v2538 = vpack.c.b16 %v2274, %v2270
    %v2539 = vpack.c.b16 %v2275, %v2271
    %v2540 = vpack.c.b16 %v2276, %v2272
    %v2541 = vpack.c.b16 %v2281, %v2277
    %v2542 = vpack.c.b16 %v2282, %v2278
    %v2543 = vpack.c.b16 %v2283, %v2279
    %v2544 = vpack.c.b16 %v2284, %v2280
    %v2545 = vpack.c.b16 %v2289, %v2285
    %v2546 = vpack.c.b16 %v2290, %v2286
    %v2547 = vpack.c.b16 %v2291, %v2287
    %v2548 = vpack.c.b16 %v2292, %v2288
    %v2549 = vpack.c.b16 %v2297, %v2293
    %v2550 = vpack.c.b16 %v2298, %v2294
    %v2551 = vpack.c.b16 %v2299, %v2295
    %v2552 = vpack.c.b16 %v2300, %v2296
    %v2553 = vpack.c.b16 %v2305, %v2301
    %v2554 = vpack.c.b16 %v2306, %v2302
    %v2555 = vpack.c.b16 %v2307, %v2303
    %v2556 = vpack.c.b16 %v2308, %v2304
    %v2557 = vpack.c.b16 %v2313, %v2309
    %v2558 = vpack.c.b16 %v2314, %v2310
    %v2559 = vpack.c.b16 %v2315, %v2311
    %v2560 = vpack.c.b16 %v2316, %v2312
    %v2561 = vpack.c.b16 %v2321, %v2317
    %v2562 = vpack.c.b16 %v2322, %v2318
    %v2563 = vpack.c.b16 %v2323, %v2319
    %v2564 = vpack.c.b16 %v2324, %v2320
    %v2565 = vpack.c.b16 %v2329, %v2325
    %v2566 = vpack.c.b16 %v2330, %v2326
    %v2567 = vpack.c.b16 %v2331, %v2327
    %v2568 = vpack.c.b16 %v2332, %v2328
    %v2569 = vpack.c.b16 %v2337, %v2333
    %v2570 = vpack.c.b16 %v2338, %v2334
    %v2571 = vpack.c.b16 %v2339, %v2335
    %v2572 = vpack.c.b16 %v2340, %v2336
    %v2573 = vpack.c.b16 %v2345, %v2341
    %v2574 = vpack.c.b16 %v2346, %v2342
    %v2575 = vpack.c.b16 %v2347, %v2343
    %v2576 = vpack.c.b16 %v2348, %v2344
    %v2577 = vpack.c.b16 %v2353, %v2349
    %v2578 = vpack.c.b16 %v2354, %v2350
    %v2579 = vpack.c.b16 %v2355, %v2351
    %v2580 = vpack.c.b16 %v2356, %v2352
    %v2581 = vpack.c.b16 %v2361, %v2357
    %v2582 = vpack.c.b16 %v2362, %v2358
    %v2583 = vpack.c.b16 %v2363, %v2359
    %v2584 = vpack.c.b16 %v2364, %v2360
    %v2585 = vpack.c.b16 %v2369, %v2365
    %v2586 = vpack.c.b16 %v2370, %v2366
    %v2587 = vpack.c.b16 %v2371, %v2367
    %v2588 = vpack.c.b16 %v2372, %v2368
    %v2589 = vpack.c.b16 %v2377, %v2373
    %v2590 = vpack.c.b16 %v2378, %v2374
    %v2591 = vpack.c.b16 %v2379, %v2375
    %v2592 = vpack.c.b16 %v2380, %v2376
    %v2593 = vpack.c.b16 %v2385, %v2381
    %v2594 = vpack.c.b16 %v2386, %v2382
    %v2595 = vpack.c.b16 %v2387, %v2383
    %v2596 = vpack.c.b16 %v2388, %v2384
    %v2597 = vpack.c.b16 %v2393, %v2389
    %v2598 = vpack.c.b16 %v2394, %v2390
    %v2599 = vpack.c.b16 %v2395, %v2391
    %v2600 = vpack.c.b16 %v2396, %v2392
    %v2601 = vpack.c.b16 %v2401, %v2397
    %v2602 = vpack.c.b16 %v2402, %v2398
    %v2603 = vpack.c.b16 %v2403, %v2399
    %v2604 = vpack.c.b16 %v2404, %v2400
    %v2605 = vpack.c.b16 %v2409, %v2405
    %v2606 = vpack.c.b16 %v2410, %v2406
    %v2607 = vpack.c.b16 %v2411, %v2407
    %v2608 = vpack.c.b16 %v2412, %v2408
    %v2609 = vpack.c.b16 %v2417, %v2413
    %v2610 = vpack.c.b16 %v2418, %v2414
    %v2611 = vpack.c.b16 %v2419, %v2415
    %v2612 = vpack.c.b16 %v2420, %v2416
    %2805 = vmatprep.subr.bf16.mxu0 %v2422
    %2806 = vmatpush1.bf16.msra.mxu0 %v2421
    %2807 = vmatprep.subr.bf16.mxu0 %v2426
    %2808 = vmatpush1.bf16.msra.mxu0 %v2425
    %2809 = vmatprep.subr.bf16.mxu0 %v2430
    %2810 = vmatpush1.bf16.msra.mxu0 %v2429
    %2811 = vmatprep.subr.bf16.mxu0 %v2434
    %2812 = vmatpush1.bf16.msra.mxu0 %v2433
    %2813 = vmatprep.subr.bf16.mxu0 %v2438
    %2814 = vmatpush1.bf16.msra.mxu0 %v2437
    %2815 = vmatprep.subr.bf16.mxu0 %v2442
    %2816 = vmatpush1.bf16.msra.mxu0 %v2441
    %2817 = vmatprep.subr.bf16.mxu0 %v2446
    %2818 = vmatpush1.bf16.msra.mxu0 %v2445
    %2819 = vmatprep.subr.bf16.mxu0 %v2450
    %2820 = vmatpush1.bf16.msra.mxu0 %v2449
    %2821 = vmatprep.subr.bf16.mxu0 %v2454
    %2822 = vmatpush1.bf16.msra.mxu0 %v2453
    %2823 = vmatprep.subr.bf16.mxu0 %v2458
    %2824 = vmatpush1.bf16.msra.mxu0 %v2457
    %2825 = vmatprep.subr.bf16.mxu0 %v2462
    %2826 = vmatpush1.bf16.msra.mxu0 %v2461
    %2827 = vmatprep.subr.bf16.mxu0 %v2466
    %2828 = vmatpush1.bf16.msra.mxu0 %v2465
    %2829 = vmatprep.subr.bf16.mxu0 %v2470
    %2830 = vmatpush1.bf16.msra.mxu0 %v2469
    %2831 = vmatprep.subr.bf16.mxu0 %v2474
    %2832 = vmatpush1.bf16.msra.mxu0 %v2473
    %2833 = vmatprep.subr.bf16.mxu0 %v2478
    %2834 = vmatpush1.bf16.msra.mxu0 %v2477
    %2835 = vmatprep.subr.bf16.mxu0 %v2482
    %2836 = vmatpush1.bf16.msra.mxu0 %v2481
    %2837 = vmatprep.mubr.bf16.mxu0 %v1829
    %2838 = vmatmul.mubr.bf16.gmra.mrb[0].mxu0 %v1815
    %v2839 = vpop.f32.mrb[0].mxu0
    %v2840 = vadd.f32 %v1640, %v2839
    %v2841 = vpop.f32.mrb[0].mxu0
    %v2842 = vadd.f32 %v1642, %v2841
    %v2843 = vpop.f32.mrb[0].mxu0
    %v2844 = vpop.f32.mrb[0].mxu0
    %2845 = vdwg.mxu0
    %2846 = vmatprep.subr.bf16.mxu0 %v2486
    %2847 = vmatpush1.bf16.msra.mxu0 %v2485
    %2848 = vmatprep.subr.bf16.mxu0 %v2490
    %2849 = vmatpush1.bf16.msra.mxu0 %v2489
    %2850 = vmatprep.subr.bf16.mxu0 %v2494
    %2851 = vmatpush1.bf16.msra.mxu0 %v2493
    %2852 = vmatprep.subr.bf16.mxu0 %v2498
    %2853 = vmatpush1.bf16.msra.mxu0 %v2497
    %2854 = vmatprep.subr.bf16.mxu0 %v2502
    %2855 = vmatpush1.bf16.msra.mxu0 %v2501
    %2856 = vmatprep.subr.bf16.mxu0 %v2506
    %2857 = vmatpush1.bf16.msra.mxu0 %v2505
    %2858 = vmatprep.subr.bf16.mxu0 %v2510
    %2859 = vmatpush1.bf16.msra.mxu0 %v2509
    %2860 = vmatprep.subr.bf16.mxu0 %v2514
    %2861 = vmatpush1.bf16.msra.mxu0 %v2513
    %2862 = vmatprep.subr.bf16.mxu0 %v2518
    %2863 = vmatpush1.bf16.msra.mxu0 %v2517
    %2864 = vmatprep.subr.bf16.mxu0 %v2522
    %2865 = vmatpush1.bf16.msra.mxu0 %v2521
    %2866 = vmatprep.subr.bf16.mxu0 %v2526
    %2867 = vmatpush1.bf16.msra.mxu0 %v2525
    %2868 = vmatprep.subr.bf16.mxu0 %v2530
    %2869 = vmatpush1.bf16.msra.mxu0 %v2529
    %2870 = vmatprep.subr.bf16.mxu0 %v2534
    %2871 = vmatpush1.bf16.msra.mxu0 %v2533
    %2872 = vmatprep.subr.bf16.mxu0 %v2538
    %2873 = vmatpush1.bf16.msra.mxu0 %v2537
    %2874 = vmatprep.subr.bf16.mxu0 %v2542
    %2875 = vmatpush1.bf16.msra.mxu0 %v2541
    %2876 = vmatprep.subr.bf16.mxu0 %v2546
    %2877 = vmatpush1.bf16.msra.mxu0 %v2545
    %2878 = vmatprep.mubr.bf16.mxu0 %v1838
    %2879 = vmatmul.mubr.bf16.gmra.mrb[0].mxu0 %v1837
    %v2880 = vpop.f32.mrb[0].mxu0
    %v2881 = vadd.f32 %v2840, %v2880
    %v2882 = vpop.f32.mrb[0].mxu0
    %v2883 = vadd.f32 %v2842, %v2882
    %v2884 = vpop.f32.mrb[0].mxu0
    %v2885 = vpop.f32.mrb[0].mxu0
    %2886 = vdwg.mxu0
    %2887 = vmatprep.subr.bf16.mxu0 %v2550
    %2888 = vmatpush1.bf16.msra.mxu0 %v2549
    %2889 = vmatprep.subr.bf16.mxu0 %v2554
    %2890 = vmatpush1.bf16.msra.mxu0 %v2553
    %2891 = vmatprep.subr.bf16.mxu0 %v2558
    %2892 = vmatpush1.bf16.msra.mxu0 %v2557
    %2893 = vmatprep.subr.bf16.mxu0 %v2562
    %2894 = vmatpush1.bf16.msra.mxu0 %v2561
    %2895 = vmatprep.subr.bf16.mxu0 %v2566
    %2896 = vmatpush1.bf16.msra.mxu0 %v2565
    %2897 = vmatprep.subr.bf16.mxu0 %v2570
    %2898 = vmatpush1.bf16.msra.mxu0 %v2569
    %2899 = vmatprep.subr.bf16.mxu0 %v2574
    %2900 = vmatpush1.bf16.msra.mxu0 %v2573
    %2901 = vmatprep.subr.bf16.mxu0 %v2578
    %2902 = vmatpush1.bf16.msra.mxu0 %v2577
    %2903 = vmatprep.subr.bf16.mxu0 %v2582
    %2904 = vmatpush1.bf16.msra.mxu0 %v2581
    %2905 = vmatprep.subr.bf16.mxu0 %v2586
    %2906 = vmatpush1.bf16.msra.mxu0 %v2585
    %2907 = vmatprep.subr.bf16.mxu0 %v2590
    %2908 = vmatpush1.bf16.msra.mxu0 %v2589
    %2909 = vmatprep.subr.bf16.mxu0 %v2594
    %2910 = vmatpush1.bf16.msra.mxu0 %v2593
    %2911 = vmatprep.subr.bf16.mxu0 %v2598
    %2912 = vmatpush1.bf16.msra.mxu0 %v2597
    %2913 = vmatprep.subr.bf16.mxu0 %v2602
    %2914 = vmatpush1.bf16.msra.mxu0 %v2601
    %2915 = vmatprep.subr.bf16.mxu0 %v2606
    %2916 = vmatpush1.bf16.msra.mxu0 %v2605
    %2917 = vmatprep.subr.bf16.mxu0 %v2610
    %2918 = vmatpush1.bf16.msra.mxu0 %v2609
    %2919 = vmatprep.mubr.bf16.mxu0 %v1836
    %2920 = vmatmul.mubr.bf16.gmra.mrb[0].mxu0 %v1822
    %v2921 = vpop.f32.mrb[0].mxu0
    %v2922 = vadd.f32 %v2881, %v2921
    %v2923 = vpop.f32.mrb[0].mxu0
    %v2924 = vadd.f32 %v2883, %v2923
    %v2925 = vpop.f32.mrb[0].mxu0
    %v2926 = vpop.f32.mrb[0].mxu0
    %2927 = vdwg.mxu0
    %2928 = vmatprep.subr.bf16.mxu0 %v2424
    %2929 = vmatpush1.bf16.msra.mxu0 %v2423
    %2930 = vmatprep.subr.bf16.mxu0 %v2428
    %2931 = vmatpush1.bf16.msra.mxu0 %v2427
    %2932 = vmatprep.subr.bf16.mxu0 %v2432
    %2933 = vmatpush1.bf16.msra.mxu0 %v2431
    %2934 = vmatprep.subr.bf16.mxu0 %v2436
    %2935 = vmatpush1.bf16.msra.mxu0 %v2435
    %2936 = vmatprep.subr.bf16.mxu0 %v2440
    %2937 = vmatpush1.bf16.msra.mxu0 %v2439
    %2938 = vmatprep.subr.bf16.mxu0 %v2444
    %2939 = vmatpush1.bf16.msra.mxu0 %v2443
    %2940 = vmatprep.subr.bf16.mxu0 %v2448
    %2941 = vmatpush1.bf16.msra.mxu0 %v2447
    %2942 = vmatprep.subr.bf16.mxu0 %v2452
    %2943 = vmatpush1.bf16.msra.mxu0 %v2451
    %2944 = vmatprep.subr.bf16.mxu0 %v2456
    %2945 = vmatpush1.bf16.msra.mxu0 %v2455
    %2946 = vmatprep.subr.bf16.mxu0 %v2460
    %2947 = vmatpush1.bf16.msra.mxu0 %v2459
    %2948 = vmatprep.subr.bf16.mxu0 %v2464
    %2949 = vmatpush1.bf16.msra.mxu0 %v2463
    %2950 = vmatprep.subr.bf16.mxu0 %v2468
    %2951 = vmatpush1.bf16.msra.mxu0 %v2467
    %2952 = vmatprep.subr.bf16.mxu0 %v2472
    %2953 = vmatpush1.bf16.msra.mxu0 %v2471
    %2954 = vmatprep.subr.bf16.mxu0 %v2476
    %2955 = vmatpush1.bf16.msra.mxu0 %v2475
    %2956 = vmatprep.subr.bf16.mxu0 %v2480
    %2957 = vmatpush1.bf16.msra.mxu0 %v2479
    %2958 = vmatprep.subr.bf16.mxu0 %v2484
    %2959 = vmatpush1.bf16.msra.mxu0 %v2483
    %2960 = vmatprep.mubr.bf16.mxu0 %v1829
    %2961 = vmatmul.mubr.bf16.gmra.mrb[0].mxu0 %v1815
    %v2962 = vpop.f32.mrb[0].mxu0
    %v2963 = vadd.f32 %v1763, %v2962
    %v2964 = vpop.f32.mrb[0].mxu0
    %v2965 = vadd.f32 %v1765, %v2964
    %v2966 = vpop.f32.mrb[0].mxu0
    %v2967 = vpop.f32.mrb[0].mxu0
    %2968 = vdwg.mxu0
    %2969 = vmatprep.subr.bf16.mxu0 %v2488
    %2970 = vmatpush1.bf16.msra.mxu0 %v2487
    %2971 = vmatprep.subr.bf16.mxu0 %v2492
    %2972 = vmatpush1.bf16.msra.mxu0 %v2491
    %2973 = vmatprep.subr.bf16.mxu0 %v2496
    %2974 = vmatpush1.bf16.msra.mxu0 %v2495
    %2975 = vmatprep.subr.bf16.mxu0 %v2500
    %2976 = vmatpush1.bf16.msra.mxu0 %v2499
    %2977 = vmatprep.subr.bf16.mxu0 %v2504
    %2978 = vmatpush1.bf16.msra.mxu0 %v2503
    %2979 = vmatprep.subr.bf16.mxu0 %v2508
    %2980 = vmatpush1.bf16.msra.mxu0 %v2507
    %2981 = vmatprep.subr.bf16.mxu0 %v2512
    %2982 = vmatpush1.bf16.msra.mxu0 %v2511
    %2983 = vmatprep.subr.bf16.mxu0 %v2516
    %2984 = vmatpush1.bf16.msra.mxu0 %v2515
    %2985 = vmatprep.subr.bf16.mxu0 %v2520
    %2986 = vmatpush1.bf16.msra.mxu0 %v2519
    %2987 = vmatprep.subr.bf16.mxu0 %v2524
    %2988 = vmatpush1.bf16.msra.mxu0 %v2523
    %2989 = vmatprep.subr.bf16.mxu0 %v2528
    %2990 = vmatpush1.bf16.msra.mxu0 %v2527
    %2991 = vmatprep.subr.bf16.mxu0 %v2532
    %2992 = vmatpush1.bf16.msra.mxu0 %v2531
    %2993 = vmatprep.subr.bf16.mxu0 %v2536
    %2994 = vmatpush1.bf16.msra.mxu0 %v2535
    %2995 = vmatprep.subr.bf16.mxu0 %v2540
    %2996 = vmatpush1.bf16.msra.mxu0 %v2539
    %2997 = vmatprep.subr.bf16.mxu0 %v2544
    %2998 = vmatpush1.bf16.msra.mxu0 %v2543
    %2999 = vmatprep.subr.bf16.mxu0 %v2548
    %3000 = vmatpush1.bf16.msra.mxu0 %v2547
    %3001 = vmatprep.mubr.bf16.mxu0 %v1838
    %3002 = vmatmul.mubr.bf16.gmra.mrb[0].mxu0 %v1837
    %v3003 = vpop.f32.mrb[0].mxu0
    %v3004 = vadd.f32 %v2963, %v3003
    %v3005 = vpop.f32.mrb[0].mxu0
    %v3006 = vadd.f32 %v2965, %v3005
    %v3007 = vpop.f32.mrb[0].mxu0
    %v3008 = vpop.f32.mrb[0].mxu0
    %3009 = vdwg.mxu0
    %3010 = vmatprep.subr.bf16.mxu0 %v2552
    %3011 = vmatpush1.bf16.msra.mxu0 %v2551
    %3012 = vmatprep.subr.bf16.mxu0 %v2556
    %3013 = vmatpush1.bf16.msra.mxu0 %v2555
    %3014 = vmatprep.subr.bf16.mxu0 %v2560
    %3015 = vmatpush1.bf16.msra.mxu0 %v2559
    %3016 = vmatprep.subr.bf16.mxu0 %v2564
    %3017 = vmatpush1.bf16.msra.mxu0 %v2563
    %3018 = vmatprep.subr.bf16.mxu0 %v2568
    %3019 = vmatpush1.bf16.msra.mxu0 %v2567
    %3020 = vmatprep.subr.bf16.mxu0 %v2572
    %3021 = vmatpush1.bf16.msra.mxu0 %v2571
    %3022 = vmatprep.subr.bf16.mxu0 %v2576
    %3023 = vmatpush1.bf16.msra.mxu0 %v2575
    %3024 = vmatprep.subr.bf16.mxu0 %v2580
    %3025 = vmatpush1.bf16.msra.mxu0 %v2579
    %3026 = vmatprep.subr.bf16.mxu0 %v2584
    %3027 = vmatpush1.bf16.msra.mxu0 %v2583
    %3028 = vmatprep.subr.bf16.mxu0 %v2588
    %3029 = vmatpush1.bf16.msra.mxu0 %v2587
    %3030 = vmatprep.subr.bf16.mxu0 %v2592
    %3031 = vmatpush1.bf16.msra.mxu0 %v2591
    %3032 = vmatprep.subr.bf16.mxu0 %v2596
    %3033 = vmatpush1.bf16.msra.mxu0 %v2595
    %3034 = vmatprep.subr.bf16.mxu0 %v2600
    %3035 = vmatpush1.bf16.msra.mxu0 %v2599
    %3036 = vmatprep.subr.bf16.mxu0 %v2604
    %3037 = vmatpush1.bf16.msra.mxu0 %v2603
    %3038 = vmatprep.subr.bf16.mxu0 %v2608
    %3039 = vmatpush1.bf16.msra.mxu0 %v2607
    %3040 = vmatprep.subr.bf16.mxu0 %v2612
    %3041 = vmatpush1.bf16.msra.mxu0 %v2611
    %3042 = vmatprep.mubr.bf16.mxu0 %v1836
    %3043 = vmatmul.mubr.bf16.gmra.mrb[0].mxu0 %v1822
    %v3044 = vpop.f32.mrb[0].mxu0
    %v3045 = vadd.f32 %v3004, %v3044
    %v3046 = vpop.f32.mrb[0].mxu0
    %v3047 = vadd.f32 %v3006, %v3046
    %v3048 = vpop.f32.mrb[0].mxu0
    %v3049 = vpop.f32.mrb[0].mxu0
    %3050 = vdwg.mxu0
    %v3051 = vld [vmem:[%s4] sm:$0xf]
    %v3053 = vlaneseq
    %v3054 = vshrl.u32 %v3053, 7
    %v3055 = vsub.s32 0, %v3054
    %v3056 = vrot.slane %v3051, %v3055
    %v3057 = vlaneseq
    %v3058 = vshrl.u32 %v3057, 7
    %v3059 = vsub.s32 1, %v3058
    %v3060 = vrot.slane %v3051, %v3059
    %v3061 = vlaneseq
    %v3062 = vshrl.u32 %v3061, 7
    %v3063 = vsub.s32 2, %v3062
    %v3064 = vrot.slane %v3051, %v3063
    %v3065 = vlaneseq
    %v3066 = vshrl.u32 %v3065, 7
    %v3067 = vsub.s32 3, %v3066
    %v3068 = vrot.slane %v3051, %v3067
    %v3073 = vadd.f32 %v2922, %v3056
    %v3074 = vadd.f32 %v2924, %v3060
    %v3075 = vadd.f32 %v3045, %v3064
    %v3076 = vadd.f32 %v3047, %v3068
    %v3077 = vmax.f32 %v3073, 0.0
    %v3078 = vmax.f32 %v3074, 0.0
    %v3079 = vmax.f32 %v3075, 0.0
    %v3080 = vmax.f32 %v3076, 0.0
    %v3081 = vpack.c.bf16 %v3077, %v3077
    %v3082 = vpack.c.bf16 %v3078, %v3078
    %v3083 = vpack.c.bf16 %v3079, %v3079
    %v3084 = vpack.c.bf16 %v3080, %v3080
    %v3085 = vld [vmem:[#allocation10] sm:$0xff]
    %v3086 = vld [vmem:[#allocation10 + $0x8] sm:$0xff]
    %v3087 = vld [vmem:[#allocation10 + $0x10] sm:$0xff]
    %v3088 = vld [vmem:[#allocation10 + $0x18] sm:$0xff]
    %v3089 = vld [vmem:[#allocation10 + $0x20] sm:$0xff]
    %v3090 = vld [vmem:[#allocation10 + $0x28] sm:$0xff]
    %v3091 = vld [vmem:[#allocation10 + $0x30] sm:$0xff]
    %v3092 = vld [vmem:[#allocation10 + $0x38] sm:$0xff]
    %v3093 = vld [vmem:[#allocation10 + $0x40] sm:$0xff]
    %v3094 = vld [vmem:[#allocation10 + $0x48] sm:$0xff]
    %v3095 = vld [vmem:[#allocation10 + $0x50] sm:$0xff]
    %v3096 = vld [vmem:[#allocation10 + $0x58] sm:$0xff]
    %v3097 = vld [vmem:[#allocation10 + $0x60] sm:$0xff]
    %v3098 = vld [vmem:[#allocation10 + $0x68] sm:$0xff]
    %v3099 = vld [vmem:[#allocation10 + $0x70] sm:$0xff]
    %v3100 = vld [vmem:[#allocation10 + $0x78] sm:$0xff]
    %v3101 = vld [vmem:[#allocation10 + $0x80] sm:$0xff]
    %v3102 = vld [vmem:[#allocation10 + $0x88] sm:$0xff]
    %v3103 = vld [vmem:[#allocation10 + $0x90] sm:$0xff]
    %v3104 = vld [vmem:[#allocation10 + $0x98] sm:$0xff]
    %v3105 = vld [vmem:[#allocation10 + $0xa0] sm:$0xff]
    %v3106 = vld [vmem:[#allocation10 + $0xa8] sm:$0xff]
    %v3107 = vld [vmem:[#allocation10 + $0xb0] sm:$0xff]
    %v3108 = vld [vmem:[#allocation10 + $0xb8] sm:$0xff]
    %v3109 = vld [vmem:[#allocation10 + $0xc0] sm:$0xff]
    %v3110 = vld [vmem:[#allocation10 + $0xc8] sm:$0xff]
    %v3111 = vld [vmem:[#allocation10 + $0xd0] sm:$0xff]
    %v3112 = vld [vmem:[#allocation10 + $0xd8] sm:$0xff]
    %v3113 = vld [vmem:[#allocation10 + $0xe0] sm:$0xff]
    %v3114 = vld [vmem:[#allocation10 + $0xe8] sm:$0xff]
    %v3115 = vld [vmem:[#allocation10 + $0xf0] sm:$0xff]
    %v3116 = vld [vmem:[#allocation10 + $0xf8] sm:$0xff]
    %v3117 = vld [vmem:[#allocation10 + $0x100] sm:$0xff]
    %v3118 = vld [vmem:[#allocation10 + $0x108] sm:$0xff]
    %v3119 = vld [vmem:[#allocation10 + $0x110] sm:$0xff]
    %v3120 = vld [vmem:[#allocation10 + $0x118] sm:$0xff]
    %v3121 = vld [vmem:[#allocation10 + $0x120] sm:$0xff]
    %v3122 = vld [vmem:[#allocation10 + $0x128] sm:$0xff]
    %v3123 = vld [vmem:[#allocation10 + $0x130] sm:$0xff]
    %v3124 = vld [vmem:[#allocation10 + $0x138] sm:$0xff]
    %v3125 = vld [vmem:[#allocation10 + $0x140] sm:$0xff]
    %v3126 = vld [vmem:[#allocation10 + $0x148] sm:$0xff]
    %v3127 = vld [vmem:[#allocation10 + $0x150] sm:$0xff]
    %v3128 = vld [vmem:[#allocation10 + $0x158] sm:$0xff]
    %v3129 = vld [vmem:[#allocation10 + $0x160] sm:$0xff]
    %v3130 = vld [vmem:[#allocation10 + $0x168] sm:$0xff]
    %v3131 = vld [vmem:[#allocation10 + $0x170] sm:$0xff]
    %v3132 = vld [vmem:[#allocation10 + $0x178] sm:$0xff]
    %v3133 = vld [vmem:[#allocation10 + $0x180] sm:$0xff]
    %v3134 = vld [vmem:[#allocation10 + $0x188] sm:$0xff]
    %v3135 = vld [vmem:[#allocation10 + $0x190] sm:$0xff]
    %v3136 = vld [vmem:[#allocation10 + $0x198] sm:$0xff]
    %v3137 = vld [vmem:[#allocation10 + $0x1a0] sm:$0xff]
    %v3138 = vld [vmem:[#allocation10 + $0x1a8] sm:$0xff]
    %v3139 = vld [vmem:[#allocation10 + $0x1b0] sm:$0xff]
    %v3140 = vld [vmem:[#allocation10 + $0x1b8] sm:$0xff]
    %v3141 = vld [vmem:[#allocation10 + $0x1c0] sm:$0xff]
    %v3142 = vld [vmem:[#allocation10 + $0x1c8] sm:$0xff]
    %v3143 = vld [vmem:[#allocation10 + $0x1d0] sm:$0xff]
    %v3144 = vld [vmem:[#allocation10 + $0x1d8] sm:$0xff]
    %v3145 = vld [vmem:[#allocation10 + $0x1e0] sm:$0xff]
    %v3146 = vld [vmem:[#allocation10 + $0x1e8] sm:$0xff]
    %v3147 = vld [vmem:[#allocation10 + $0x1f0] sm:$0xff]
    %v3148 = vld [vmem:[#allocation10 + $0x1f8] sm:$0xff]
    %v3149 = vld [vmem:[%s6] sm:$0x3]
    %v3151 = vlaneseq
    %v3152 = vshrl.u32 %v3151, 7
    %v3153 = vsub.s32 0, %v3152
    %v3154 = vrot.slane %v3149, %v3153
    %v3155 = vlaneseq
    %v3156 = vshrl.u32 %v3155, 7
    %v3157 = vsub.s32 1, %v3156
    %v3158 = vrot.slane %v3149, %v3157
    %v3225 = vunpack.c.l.b16 %v3085
    %v3226 = vunpack.c.h.b16 %v3085
    %v3227 = vunpack.c.l.b16 %v3086
    %v3228 = vunpack.c.h.b16 %v3086
    %v3229 = vunpack.c.l.b16 %v3087
    %v3230 = vunpack.c.h.b16 %v3087
    %v3231 = vunpack.c.l.b16 %v3088
    %v3232 = vunpack.c.h.b16 %v3088
    %v3233 = vunpack.c.l.b16 %v3089
    %v3234 = vunpack.c.h.b16 %v3089
    %v3235 = vunpack.c.l.b16 %v3090
    %v3236 = vunpack.c.h.b16 %v3090
    %v3237 = vunpack.c.l.b16 %v3091
    %v3238 = vunpack.c.h.b16 %v3091
    %v3239 = vunpack.c.l.b16 %v3092
    %v3240 = vunpack.c.h.b16 %v3092
    %v3241 = vunpack.c.l.b16 %v3093
    %v3242 = vunpack.c.h.b16 %v3093
    %v3243 = vunpack.c.l.b16 %v3094
    %v3244 = vunpack.c.h.b16 %v3094
    %v3245 = vunpack.c.l.b16 %v3095
    %v3246 = vunpack.c.h.b16 %v3095
    %v3247 = vunpack.c.l.b16 %v3096
    %v3248 = vunpack.c.h.b16 %v3096
    %v3249 = vunpack.c.l.b16 %v3097
    %v3250 = vunpack.c.h.b16 %v3097
    %v3251 = vunpack.c.l.b16 %v3098
    %v3252 = vunpack.c.h.b16 %v3098
    %v3253 = vunpack.c.l.b16 %v3099
    %v3254 = vunpack.c.h.b16 %v3099
    %v3255 = vunpack.c.l.b16 %v3100
    %v3256 = vunpack.c.h.b16 %v3100
    %v3257 = vunpack.c.l.b16 %v3101
    %v3258 = vunpack.c.h.b16 %v3101
    %v3259 = vunpack.c.l.b16 %v3102
    %v3260 = vunpack.c.h.b16 %v3102
    %v3261 = vunpack.c.l.b16 %v3103
    %v3262 = vunpack.c.h.b16 %v3103
    %v3263 = vunpack.c.l.b16 %v3104
    %v3264 = vunpack.c.h.b16 %v3104
    %v3265 = vunpack.c.l.b16 %v3105
    %v3266 = vunpack.c.h.b16 %v3105
    %v3267 = vunpack.c.l.b16 %v3106
    %v3268 = vunpack.c.h.b16 %v3106
    %v3269 = vunpack.c.l.b16 %v3107
    %v3270 = vunpack.c.h.b16 %v3107
    %v3271 = vunpack.c.l.b16 %v3108
    %v3272 = vunpack.c.h.b16 %v3108
    %v3273 = vunpack.c.l.b16 %v3109
    %v3274 = vunpack.c.h.b16 %v3109
    %v3275 = vunpack.c.l.b16 %v3110
    %v3276 = vunpack.c.h.b16 %v3110
    %v3277 = vunpack.c.l.b16 %v3111
    %v3278 = vunpack.c.h.b16 %v3111
    %v3279 = vunpack.c.l.b16 %v3112
    %v3280 = vunpack.c.h.b16 %v3112
    %v3281 = vunpack.c.l.b16 %v3113
    %v3282 = vunpack.c.h.b16 %v3113
    %v3283 = vunpack.c.l.b16 %v3114
    %v3284 = vunpack.c.h.b16 %v3114
    %v3285 = vunpack.c.l.b16 %v3115
    %v3286 = vunpack.c.h.b16 %v3115
    %v3287 = vunpack.c.l.b16 %v3116
    %v3288 = vunpack.c.h.b16 %v3116
    %v3289 = vunpack.c.l.b16 %v3117
    %v3290 = vunpack.c.h.b16 %v3117
    %v3291 = vunpack.c.l.b16 %v3118
    %v3292 = vunpack.c.h.b16 %v3118
    %v3293 = vunpack.c.l.b16 %v3119
    %v3294 = vunpack.c.h.b16 %v3119
    %v3295 = vunpack.c.l.b16 %v3120
    %v3296 = vunpack.c.h.b16 %v3120
    %v3297 = vunpack.c.l.b16 %v3121
    %v3298 = vunpack.c.h.b16 %v3121
    %v3299 = vunpack.c.l.b16 %v3122
    %v3300 = vunpack.c.h.b16 %v3122
    %v3301 = vunpack.c.l.b16 %v3123
    %v3302 = vunpack.c.h.b16 %v3123
    %v3303 = vunpack.c.l.b16 %v3124
    %v3304 = vunpack.c.h.b16 %v3124
    %v3305 = vunpack.c.l.b16 %v3125
    %v3306 = vunpack.c.h.b16 %v3125
    %v3307 = vunpack.c.l.b16 %v3126
    %v3308 = vunpack.c.h.b16 %v3126
    %v3309 = vunpack.c.l.b16 %v3127
    %v3310 = vunpack.c.h.b16 %v3127
    %v3311 = vunpack.c.l.b16 %v3128
    %v3312 = vunpack.c.h.b16 %v3128
    %v3313 = vunpack.c.l.b16 %v3129
    %v3314 = vunpack.c.h.b16 %v3129
    %v3315 = vunpack.c.l.b16 %v3130
    %v3316 = vunpack.c.h.b16 %v3130
    %v3317 = vunpack.c.l.b16 %v3131
    %v3318 = vunpack.c.h.b16 %v3131
    %v3319 = vunpack.c.l.b16 %v3132
    %v3320 = vunpack.c.h.b16 %v3132
    %v3321 = vunpack.c.l.b16 %v3133
    %v3322 = vunpack.c.h.b16 %v3133
    %v3323 = vunpack.c.l.b16 %v3134
    %v3324 = vunpack.c.h.b16 %v3134
    %v3325 = vunpack.c.l.b16 %v3135
    %v3326 = vunpack.c.h.b16 %v3135
    %v3327 = vunpack.c.l.b16 %v3136
    %v3328 = vunpack.c.h.b16 %v3136
    %v3329 = vunpack.c.l.b16 %v3137
    %v3330 = vunpack.c.h.b16 %v3137
    %v3331 = vunpack.c.l.b16 %v3138
    %v3332 = vunpack.c.h.b16 %v3138
    %v3333 = vunpack.c.l.b16 %v3139
    %v3334 = vunpack.c.h.b16 %v3139
    %v3335 = vunpack.c.l.b16 %v3140
    %v3336 = vunpack.c.h.b16 %v3140
    %v3337 = vunpack.c.l.b16 %v3141
    %v3338 = vunpack.c.h.b16 %v3141
    %v3339 = vunpack.c.l.b16 %v3142
    %v3340 = vunpack.c.h.b16 %v3142
    %v3341 = vunpack.c.l.b16 %v3143
    %v3342 = vunpack.c.h.b16 %v3143
    %v3343 = vunpack.c.l.b16 %v3144
    %v3344 = vunpack.c.h.b16 %v3144
    %v3345 = vunpack.c.l.b16 %v3145
    %v3346 = vunpack.c.h.b16 %v3145
    %v3347 = vunpack.c.l.b16 %v3146
    %v3348 = vunpack.c.h.b16 %v3146
    %v3349 = vunpack.c.l.b16 %v3147
    %v3350 = vunpack.c.h.b16 %v3147
    %v3351 = vunpack.c.l.b16 %v3148
    %v3352 = vunpack.c.h.b16 %v3148
    %v3353 = vpack.c.b16 %v3227, %v3225
    %v3354 = vpack.c.b16 %v3228, %v3226
    %v3355 = vpack.c.b16 %v3231, %v3229
    %v3356 = vpack.c.b16 %v3232, %v3230
    %v3357 = vpack.c.b16 %v3235, %v3233
    %v3358 = vpack.c.b16 %v3236, %v3234
    %v3359 = vpack.c.b16 %v3239, %v3237
    %v3360 = vpack.c.b16 %v3240, %v3238
    %v3361 = vpack.c.b16 %v3243, %v3241
    %v3362 = vpack.c.b16 %v3244, %v3242
    %v3363 = vpack.c.b16 %v3247, %v3245
    %v3364 = vpack.c.b16 %v3248, %v3246
    %v3365 = vpack.c.b16 %v3251, %v3249
    %v3366 = vpack.c.b16 %v3252, %v3250
    %v3367 = vpack.c.b16 %v3255, %v3253
    %v3368 = vpack.c.b16 %v3256, %v3254
    %v3369 = vpack.c.b16 %v3259, %v3257
    %v3370 = vpack.c.b16 %v3260, %v3258
    %v3371 = vpack.c.b16 %v3263, %v3261
    %v3372 = vpack.c.b16 %v3264, %v3262
    %v3373 = vpack.c.b16 %v3267, %v3265
    %v3374 = vpack.c.b16 %v3268, %v3266
    %v3375 = vpack.c.b16 %v3271, %v3269
    %v3376 = vpack.c.b16 %v3272, %v3270
    %v3377 = vpack.c.b16 %v3275, %v3273
    %v3378 = vpack.c.b16 %v3276, %v3274
    %v3379 = vpack.c.b16 %v3279, %v3277
    %v3380 = vpack.c.b16 %v3280, %v3278
    %v3381 = vpack.c.b16 %v3283, %v3281
    %v3382 = vpack.c.b16 %v3284, %v3282
    %v3383 = vpack.c.b16 %v3287, %v3285
    %v3384 = vpack.c.b16 %v3288, %v3286
    %v3385 = vpack.c.b16 %v3291, %v3289
    %v3386 = vpack.c.b16 %v3292, %v3290
    %v3387 = vpack.c.b16 %v3295, %v3293
    %v3388 = vpack.c.b16 %v3296, %v3294
    %v3389 = vpack.c.b16 %v3299, %v3297
    %v3390 = vpack.c.b16 %v3300, %v3298
    %v3391 = vpack.c.b16 %v3303, %v3301
    %v3392 = vpack.c.b16 %v3304, %v3302
    %v3393 = vpack.c.b16 %v3307, %v3305
    %v3394 = vpack.c.b16 %v3308, %v3306
    %v3395 = vpack.c.b16 %v3311, %v3309
    %v3396 = vpack.c.b16 %v3312, %v3310
    %v3397 = vpack.c.b16 %v3315, %v3313
    %v3398 = vpack.c.b16 %v3316, %v3314
    %v3399 = vpack.c.b16 %v3319, %v3317
    %v3400 = vpack.c.b16 %v3320, %v3318
    %v3401 = vpack.c.b16 %v3323, %v3321
    %v3402 = vpack.c.b16 %v3324, %v3322
    %v3403 = vpack.c.b16 %v3327, %v3325
    %v3404 = vpack.c.b16 %v3328, %v3326
    %v3405 = vpack.c.b16 %v3331, %v3329
    %v3406 = vpack.c.b16 %v3332, %v3330
    %v3407 = vpack.c.b16 %v3335, %v3333
    %v3408 = vpack.c.b16 %v3336, %v3334
    %v3409 = vpack.c.b16 %v3339, %v3337
    %v3410 = vpack.c.b16 %v3340, %v3338
    %v3411 = vpack.c.b16 %v3343, %v3341
    %v3412 = vpack.c.b16 %v3344, %v3342
    %v3413 = vpack.c.b16 %v3347, %v3345
    %v3414 = vpack.c.b16 %v3348, %v3346
    %v3415 = vpack.c.b16 %v3351, %v3349
    %v3416 = vpack.c.b16 %v3352, %v3350
    %3481 = vmatprep.subr.bf16.mxu0 %v3354
    %3482 = vmatpush1.bf16.msra.mxu0 %v3353
    %3483 = vmatprep.subr.bf16.mxu0 %v3356
    %3484 = vmatpush1.bf16.msra.mxu0 %v3355
    %3485 = vmatprep.subr.bf16.mxu0 %v3358
    %3486 = vmatpush1.bf16.msra.mxu0 %v3357
    %3487 = vmatprep.subr.bf16.mxu0 %v3360
    %3488 = vmatpush1.bf16.msra.mxu0 %v3359
    %3489 = vmatprep.subr.bf16.mxu0 %v3362
    %3490 = vmatpush1.bf16.msra.mxu0 %v3361
    %3491 = vmatprep.subr.bf16.mxu0 %v3364
    %3492 = vmatpush1.bf16.msra.mxu0 %v3363
    %3493 = vmatprep.subr.bf16.mxu0 %v3366
    %3494 = vmatpush1.bf16.msra.mxu0 %v3365
    %3495 = vmatprep.subr.bf16.mxu0 %v3368
    %3496 = vmatpush1.bf16.msra.mxu0 %v3367
    %3497 = vmatprep.subr.bf16.mxu0 %v3370
    %3498 = vmatpush1.bf16.msra.mxu0 %v3369
    %3499 = vmatprep.subr.bf16.mxu0 %v3372
    %3500 = vmatpush1.bf16.msra.mxu0 %v3371
    %3501 = vmatprep.subr.bf16.mxu0 %v3374
    %3502 = vmatpush1.bf16.msra.mxu0 %v3373
    %3503 = vmatprep.subr.bf16.mxu0 %v3376
    %3504 = vmatpush1.bf16.msra.mxu0 %v3375
    %3505 = vmatprep.subr.bf16.mxu0 %v3378
    %3506 = vmatpush1.bf16.msra.mxu0 %v3377
    %3507 = vmatprep.subr.bf16.mxu0 %v3380
    %3508 = vmatpush1.bf16.msra.mxu0 %v3379
    %3509 = vmatprep.subr.bf16.mxu0 %v3382
    %3510 = vmatpush1.bf16.msra.mxu0 %v3381
    %3511 = vmatprep.subr.bf16.mxu0 %v3384
    %3512 = vmatpush1.bf16.msra.mxu0 %v3383
    %3513 = vmatprep.mubr.bf16.mxu0 %v3082
    %3514 = vmatmul.mubr.bf16.gmra.mrb[0].mxu0 %v3081
    %v3515 = vpop.f32.mrb[0].mxu0
    %v3516 = vadd.f32 %v3154, %v3515
    %v3517 = vpop.f32.mrb[0].mxu0
    %v3518 = vadd.f32 %v3158, %v3517
    %v3519 = vpop.f32.mrb[0].mxu0
    %v3520 = vpop.f32.mrb[0].mxu0
    %3521 = vdwg.mxu0
    %3522 = vmatprep.subr.bf16.mxu0 %v3386
    %3523 = vmatpush1.bf16.msra.mxu0 %v3385
    %3524 = vmatprep.subr.bf16.mxu0 %v3388
    %3525 = vmatpush1.bf16.msra.mxu0 %v3387
    %3526 = vmatprep.subr.bf16.mxu0 %v3390
    %3527 = vmatpush1.bf16.msra.mxu0 %v3389
    %3528 = vmatprep.subr.bf16.mxu0 %v3392
    %3529 = vmatpush1.bf16.msra.mxu0 %v3391
    %3530 = vmatprep.subr.bf16.mxu0 %v3394
    %3531 = vmatpush1.bf16.msra.mxu0 %v3393
    %3532 = vmatprep.subr.bf16.mxu0 %v3396
    %3533 = vmatpush1.bf16.msra.mxu0 %v3395
    %3534 = vmatprep.subr.bf16.mxu0 %v3398
    %3535 = vmatpush1.bf16.msra.mxu0 %v3397
    %3536 = vmatprep.subr.bf16.mxu0 %v3400
    %3537 = vmatpush1.bf16.msra.mxu0 %v3399
    %3538 = vmatprep.subr.bf16.mxu0 %v3402
    %3539 = vmatpush1.bf16.msra.mxu0 %v3401
    %3540 = vmatprep.subr.bf16.mxu0 %v3404
    %3541 = vmatpush1.bf16.msra.mxu0 %v3403
    %3542 = vmatprep.subr.bf16.mxu0 %v3406
    %3543 = vmatpush1.bf16.msra.mxu0 %v3405
    %3544 = vmatprep.subr.bf16.mxu0 %v3408
    %3545 = vmatpush1.bf16.msra.mxu0 %v3407
    %3546 = vmatprep.subr.bf16.mxu0 %v3410
    %3547 = vmatpush1.bf16.msra.mxu0 %v3409
    %3548 = vmatprep.subr.bf16.mxu0 %v3412
    %3549 = vmatpush1.bf16.msra.mxu0 %v3411
    %3550 = vmatprep.subr.bf16.mxu0 %v3414
    %3551 = vmatpush1.bf16.msra.mxu0 %v3413
    %3552 = vmatprep.subr.bf16.mxu0 %v3416
    %3553 = vmatpush1.bf16.msra.mxu0 %v3415
    %3554 = vmatprep.mubr.bf16.mxu0 %v3084
    %3555 = vmatmul.mubr.bf16.gmra.mrb[0].mxu0 %v3083
    %v3556 = vpop.f32.mrb[0].mxu0
    %v3557 = vadd.f32 %v3516, %v3556
    %v3558 = vpop.f32.mrb[0].mxu0
    %v3559 = vadd.f32 %v3518, %v3558
    %v3560 = vpop.f32.mrb[0].mxu0
    %v3561 = vpop.f32.mrb[0].mxu0
    %3562 = vdwg.mxu0
    %v3565 = vcombine.low %v3557, %v3559
    %v3566 = vcombine.high %v3557, %v3559
    %v3568 = vunpack.c.l.s4 1983009808
    %v3569 = vunpack.c.0.s8 %v3568
    %v3570 = vlaneseq
    %v3571 = vshrl.u32 %v3570, 7
    %v3572 = vsub.s32 %v3569, %v3571
    %v3573 = vrot.slane %v3565, %v3572
    %v3575 = vunpack.c.l.s4 1983009808
    %v3576 = vunpack.c.0.s8 %v3575
    %v3577 = vlaneseq
    %v3578 = vshrl.u32 %v3577, 7
    %v3579 = vsub.s32 %v3576, %v3578
    %v3580 = vrot.slane %v3566, %v3579
    %v3581 = vcombine.high %v3573, %v3573
    %v3582 = vcombine.high %v3580, %v3580
    %3587 = vst [vmem:[#allocation11] sm:$0xf] %v3573
    %3588 = vst [vmem:[#allocation11 + $0x4] sm:$0xf] %v3581
    %3589 = vst [vmem:[#allocation11 + $0x8] sm:$0xf] %v3580
    %3590 = vst [vmem:[#allocation11 + $0xc] sm:$0xf] %v3582
    // Predicated region
    $region50: #{tpu_custom_call.1} parent=1 // pred_check
      _
    $region51: #{tpu_custom_call.1} parent=1 // pred_check_branch
      %3592 = sbr.rel (0) target = $region53
    $region52: #{tpu_custom_call.1} parent=1 // pred_region
      %s3594 = ssub.s32 256, 64
      %3595 = vsyncadd [#allocation4], %s3594
      %s3596 = sshll.u32 [#allocation11], 4
      %s3597 = int_to_ptr.vmem [resolvable:$true] %s3596
      %3602 = dma.vmem_to_hbm [thread:$0]  %s3597, 64, %s7, [#allocation4], 64, 64, 4
    $region53: #{tpu_custom_call.1} parent=1 // pred_fallthru
      _
    // Predicated region
    $region54: #{tpu_custom_call.1} parent=1 // pred_check
      _
    $region55: #{tpu_custom_call.1} parent=1 // pred_check_branch
      %3604 = sbr.rel (0) target = $region57
    $region56: #{tpu_custom_call.1} parent=1 // pred_region
      %3605 = dma.done [#allocation4], 256
    $region57: #{tpu_custom_call.1} parent=1 // pred_fallthru
      _
    %3606 = vsyncpa [#allocation3], 1
    %3607 = vsyncpa [#allocation6], 1
    %3608 = vsyncpa [#allocation9], 1
    %3609 = vsyncpa [#allocation4], 1

// kernel: tpu_custom_call.1
$region0: #{tpu_custom_call.1}
  #allocation0 [shape = 'u32[]', space=smem, size = 0x4, offset = 0x4, fixed_abs, tag = 'smem constant byte address 0x4 - core index']
  #allocation1 [shape = 'u32[144,128]{1,0:T(1,128)}', space=vmem, size = 0x12000, scoped, tag = 'internal scratch']
  %s0 = inlined_call_operand.hbm [shape: bf16[2,768], index: 0, kind: input, shape index: {}]
  %s1 = inlined_call_operand.hbm [shape: bf16[2,768], index: 1, kind: input, shape index: {}]
  %s2 = inlined_call_operand.hbm [shape: bf16[768,512], index: 2, kind: input, shape index: {}]
  %s3 = inlined_call_operand.hbm [shape: bf16[768,512], index: 3, kind: input, shape index: {}]
  %s4 = inlined_call_operand.vmem [shape: f32[1,512], index: 4, kind: input, shape index: {}]
  %s5 = inlined_call_operand.hbm [shape: bf16[512,256], index: 5, kind: input, shape index: {}]
  %s6 = inlined_call_operand.vmem [shape: f32[1,256], index: 6, kind: input, shape index: {}]
  %s7 = inlined_call_operand.hbm [shape: f32[2,256], index: 7, kind: output, shape index: {}]
  %s8 = sld [smem:[#allocation0]]
  $region58: #{tpu_custom_call.1} parent=0
    _
  %s10 = ssub.s32 1, %s8
  %s11 = scalar_select 0, %s10, %s8
  $region1: #{tpu_custom_call.1} parent=0
    #allocation2 [shape = 'u8[12288]{0}', space=vmem, size = 0x3000, scoped, tag = 'input window, operand 0, single buffered']
    #allocation3 [shape = 's32[1]{0}', space=sflag, size = 0x4, scoped, tag = 'scoped memory for tpu_custom_call.1']
    #allocation4 [shape = 's32[1]{0}', space=sflag, size = 0x4, scoped, tag = 'scoped memory for tpu_custom_call.1']
    #allocation5 [shape = 'u8[12288]{0}', space=vmem, size = 0x3000, scoped, tag = 'input window, operand 1, single buffered']
    #allocation6 [shape = 's32[1]{0}', space=sflag, size = 0x4, scoped, tag = 'scoped memory for tpu_custom_call.1']
    #allocation7 [shape = 'u8[786432]{0}', space=vmem, size = 0xc0000, scoped, tag = 'input window, operand 2, single buffered']
    #allocation8 [shape = 'u8[786432]{0}', space=vmem, size = 0xc0000, scoped, tag = 'input window, operand 3, single buffered']
    #allocation9 [shape = 's32[1]{0}', space=sflag, size = 0x4, scoped, tag = 'scoped memory for tpu_custom_call.1']
    #allocation10 [shape = 'u8[262144]{0}', space=vmem, size = 0x40000, scoped, tag = 'input window, operand 5, single buffered']
    #allocation11 [shape = 'u8[8192]{0}', space=vmem, size = 0x2000, scoped, tag = 'output window, operand 0, single buffered']
    %12 = vsyncpa [#allocation3], 0
    %13 = vsyncpa [#allocation6], 0
    %14 = vsyncpa [#allocation9], 0
    %15 = vsyncpa [#allocation4], 0
    // Predicated region
    $region2: #{tpu_custom_call.1} parent=1 // pred_check
      _
    $region3: #{tpu_custom_call.1} parent=1 // pred_check_branch
      %17 = sbr.rel (0) target = $region5
    $region4: #{tpu_custom_call.1} parent=1 // pred_region
      %s19 = ssub.s32 384, 96
      %20 = vsyncadd [#allocation3], %s19
      %s21 = sshll.u32 [#allocation2], 4
      %s22 = int_to_ptr.vmem [resolvable:$true] %s21
      %27 = dma.hbm_to_vmem [thread:$0]  %s0, 96, %s22, [#allocation3], 96, 96, 6
    $region5: #{tpu_custom_call.1} parent=1 // pred_fallthru
      _
    // Predicated region
    $region6: #{tpu_custom_call.1} parent=1 // pred_check
      _
    $region7: #{tpu_custom_call.1} parent=1 // pred_check_branch
      %29 = sbr.rel (0) target = $region9
    $region8: #{tpu_custom_call.1} parent=1 // pred_region
      %s31 = ssub.s32 384, 96
      %32 = vsyncadd [#allocation6], %s31
      %s33 = sshll.u32 [#allocation5], 4
      %s34 = int_to_ptr.vmem [resolvable:$true] %s33
      %39 = dma.hbm_to_vmem [thread:$0]  %s1, 96, %s34, [#allocation6], 96, 96, 6
    $region9: #{tpu_custom_call.1} parent=1 // pred_fallthru
      _
    // Predicated region
    $region10: #{tpu_custom_call.1} parent=1 // pred_check
      _
    $region11: #{tpu_custom_call.1} parent=1 // pred_check_branch
      %41 = sbr.rel (0) target = $region13
    $region12: #{tpu_custom_call.1} parent=1 // pred_region
      %s43 = ssub.s32 24576, 24576
      %44 = vsyncadd [#allocation6], %s43
      %s45 = sshll.u32 [#allocation7], 4
      %s46 = int_to_ptr.vmem [resolvable:$true] %s45
      %51 = dma.hbm_to_vmem [thread:$0]  %s2, 24576, %s46, [#allocation6], 256, 256, 16
    $region13: #{tpu_custom_call.1} parent=1 // pred_fallthru
      _
    // Predicated region
    $region14: #{tpu_custom_call.1} parent=1 // pred_check
      _
    $region15: #{tpu_custom_call.1} parent=1 // pred_check_branch
      %53 = sbr.rel (0) target = $region17
    $region16: #{tpu_custom_call.1} parent=1 // pred_region
      %s55 = ssub.s32 24576, 24576
      %56 = vsyncadd [#allocation9], %s55
      %s57 = sshll.u32 [#allocation8], 4
      %s58 = int_to_ptr.vmem [resolvable:$true] %s57
      %63 = dma.hbm_to_vmem [thread:$0]  %s3, 24576, %s58, [#allocation9], 256, 256, 16
    $region17: #{tpu_custom_call.1} parent=1 // pred_fallthru
      _
    // Predicated region
    $region18: #{tpu_custom_call.1} parent=1 // pred_check
      _
    $region19: #{tpu_custom_call.1} parent=1 // pred_check_branch
      %65 = sbr.rel (0) target = $region21
    $region20: #{tpu_custom_call.1} parent=1 // pred_region
      _
    $region21: #{tpu_custom_call.1} parent=1 // pred_fallthru
      _
    // Predicated region
    $region22: #{tpu_custom_call.1} parent=1 // pred_check
      _
    $region23: #{tpu_custom_call.1} parent=1 // pred_check_branch
      %67 = sbr.rel (0) target = $region25
    $region24: #{tpu_custom_call.1} parent=1 // pred_region
      %s69 = ssub.s32 8192, 8192
      %70 = vsyncadd [#allocation9], %s69
      %s71 = sshll.u32 [#allocation10], 4
      %s72 = int_to_ptr.vmem [resolvable:$true] %s71
      %77 = dma.hbm_to_vmem [thread:$0]  %s5, 8192, %s72, [#allocation9], 128, 128, 8
    $region25: #{tpu_custom_call.1} parent=1 // pred_fallthru
      _
    // Predicated region
    $region26: #{tpu_custom_call.1} parent=1 // pred_check
      _
    $region27: #{tpu_custom_call.1} parent=1 // pred_check_branch
      %79 = sbr.rel (0) target = $region29
    $region28: #{tpu_custom_call.1} parent=1 // pred_region
      _
    $region29: #{tpu_custom_call.1} parent=1 // pred_fallthru
      _
    // Predicated region
    $region30: #{tpu_custom_call.1} parent=1 // pred_check
      _
    $region31: #{tpu_custom_call.1} parent=1 // pred_check_branch
      %81 = sbr.rel (0) target = $region33
    $region32: #{tpu_custom_call.1} parent=1 // pred_region
      %82 = dma.done [#allocation3], 384
    $region33: #{tpu_custom_call.1} parent=1 // pred_fallthru
      _
    // Predicated region
    $region34: #{tpu_custom_call.1} parent=1 // pred_check
      _
    $region35: #{tpu_custom_call.1} parent=1 // pred_check_branch
      %84 = sbr.rel (0) target = $region37
    $region36: #{tpu_custom_call.1} parent=1 // pred_region
      %85 = dma.done [#allocation6], 384
    $region37: #{tpu_custom_call.1} parent=1 // pred_fallthru
      _
    // Predicated region
    $region38: #{tpu_custom_call.1} parent=1 // pred_check
      _
    $region39: #{tpu_custom_call.1} parent=1 // pred_check_branch
      %87 = sbr.rel (0) target = $region41
    $region40: #{tpu_custom_call.1} parent=1 // pred_region
      %88 = dma.done [#allocation6], 24576
    $region41: #{tpu_custom_call.1} parent=1 // pred_fallthru
      _
    // Predicated region
    $region42: #{tpu_custom_call.1} parent=1 // pred_check
      _
    $region43: #{tpu_custom_call.1} parent=1 // pred_check_branch
      %90 = sbr.rel (0) target = $region45
    $region44: #{tpu_custom_call.1} parent=1 // pred_region
      %91 = dma.done [#allocation9], 24576
    $region45: #{tpu_custom_call.1} parent=1 // pred_fallthru
      _
    // Predicated region
    $region46: #{tpu_custom_call.1} parent=1 // pred_check
      _
    $region47: #{tpu_custom_call.1} parent=1 // pred_check_branch
      %93 = sbr.rel (0) target = $region49
    $region48: #{tpu_custom_call.1} parent=1 // pred_region
      %94 = dma.done [#allocation9], 8192
    $region49: #{tpu_custom_call.1} parent=1 // pred_fallthru
      _
    %v95 = vld [vmem:[#allocation2] sm:$0x3f]
    %v96 = vld [vmem:[#allocation2 + $0x6] sm:$0x3f]
    %v97 = vld [vmem:[#allocation2 + $0xc] sm:$0x3f]
    %v98 = vld [vmem:[#allocation2 + $0x12] sm:$0x3f]
    %v99 = vld [vmem:[#allocation5] sm:$0x3f]
    %v100 = vld [vmem:[#allocation5 + $0x6] sm:$0x3f]
    %v101 = vld [vmem:[#allocation5 + $0xc] sm:$0x3f]
    %v102 = vld [vmem:[#allocation5 + $0x12] sm:$0x3f]
    %v103 = vld [vmem:[#allocation7] sm:$0xff]
    %v104 = vld [vmem:[#allocation7 + $0x8] sm:$0xff]
    %v105 = vld [vmem:[#allocation7 + $0x10] sm:$0xff]
    %v106 = vld [vmem:[#allocation7 + $0x18] sm:$0xff]
    %v107 = vld [vmem:[#allocation7 + $0x20] sm:$0xff]
    %v108 = vld [vmem:[#allocation7 + $0x28] sm:$0xff]
    %v109 = vld [vmem:[#allocation7 + $0x30] sm:$0xff]
    %v110 = vld [vmem:[#allocation7 + $0x38] sm:$0xff]
    %v111 = vld [vmem:[#allocation7 + $0x40] sm:$0xff]
    %v112 = vld [vmem:[#allocation7 + $0x48] sm:$0xff]
    %v113 = vld [vmem:[#allocation7 + $0x50] sm:$0xff]
    %v114 = vld [vmem:[#allocation7 + $0x58] sm:$0xff]
    %v115 = vld [vmem:[#allocation7 + $0x60] sm:$0xff]
    %v116 = vld [vmem:[#allocation7 + $0x68] sm:$0xff]
    %v117 = vld [vmem:[#allocation7 + $0x70] sm:$0xff]
    %v118 = vld [vmem:[#allocation7 + $0x78] sm:$0xff]
    %v119 = vld [vmem:[#allocation7 + $0x80] sm:$0xff]
    %v120 = vld [vmem:[#allocation7 + $0x88] sm:$0xff]
    %v121 = vld [vmem:[#allocation7 + $0x90] sm:$0xff]
    %v122 = vld [vmem:[#allocation7 + $0x98] sm:$0xff]
    %v123 = vld [vmem:[#allocation7 + $0xa0] sm:$0xff]
    %v124 = vld [vmem:[#allocation7 + $0xa8] sm:$0xff]
    %v125 = vld [vmem:[#allocation7 + $0xb0] sm:$0xff]
    %v126 = vld [vmem:[#allocation7 + $0xb8] sm:$0xff]
    %v127 = vld [vmem:[#allocation7 + $0xc0] sm:$0xff]
    %v128 = vld [vmem:[#allocation7 + $0xc8] sm:$0xff]
    %v129 = vld [vmem:[#allocation7 + $0xd0] sm:$0xff]
    %v130 = vld [vmem:[#allocation7 + $0xd8] sm:$0xff]
    %v131 = vld [vmem:[#allocation7 + $0xe0] sm:$0xff]
    %v132 = vld [vmem:[#allocation7 + $0xe8] sm:$0xff]
    %v133 = vld [vmem:[#allocation7 + $0xf0] sm:$0xff]
    %v134 = vld [vmem:[#allocation7 + $0xf8] sm:$0xff]
    %v135 = vld [vmem:[#allocation7 + $0x100] sm:$0xff]
    %v136 = vld [vmem:[#allocation7 + $0x108] sm:$0xff]
    %v137 = vld [vmem:[#allocation7 + $0x110] sm:$0xff]
    %v138 = vld [vmem:[#allocation7 + $0x118] sm:$0xff]
    %v139 = vld [vmem:[#allocation7 + $0x120] sm:$0xff]
    %v140 = vld [vmem:[#allocation7 + $0x128] sm:$0xff]
    %v141 = vld [vmem:[#allocation7 + $0x130] sm:$0xff]
    %v142 = vld [vmem:[#allocation7 + $0x138] sm:$0xff]
    %v143 = vld [vmem:[#allocation7 + $0x140] sm:$0xff]
    %v144 = vld [vmem:[#allocation7 + $0x148] sm:$0xff]
    %v145 = vld [vmem:[#allocation7 + $0x150] sm:$0xff]
    %v146 = vld [vmem:[#allocation7 + $0x158] sm:$0xff]
    %v147 = vld [vmem:[#allocation7 + $0x160] sm:$0xff]
    %v148 = vld [vmem:[#allocation7 + $0x168] sm:$0xff]
    %v149 = vld [vmem:[#allocation7 + $0x170] sm:$0xff]
    %v150 = vld [vmem:[#allocation7 + $0x178] sm:$0xff]
    %v151 = vld [vmem:[#allocation7 + $0x180] sm:$0xff]
    %v152 = vld [vmem:[#allocation7 + $0x188] sm:$0xff]
    %v153 = vld [vmem:[#allocation7 + $0x190] sm:$0xff]
    %v154 = vld [vmem:[#allocation7 + $0x198] sm:$0xff]
    %v155 = vld [vmem:[#allocation7 + $0x1a0] sm:$0xff]
    %v156 = vld [vmem:[#allocation7 + $0x1a8] sm:$0xff]
    %v157 = vld [vmem:[#allocation7 + $0x1b0] sm:$0xff]
    %v158 = vld [vmem:[#allocation7 + $0x1b8] sm:$0xff]
    %v159 = vld [vmem:[#allocation7 + $0x1c0] sm:$0xff]
    %v160 = vld [vmem:[#allocation7 + $0x1c8] sm:$0xff]
    %v161 = vld [vmem:[#allocation7 + $0x1d0] sm:$0xff]
    %v162 = vld [vmem:[#allocation7 + $0x1d8] sm:$0xff]
    %v163 = vld [vmem:[#allocation7 + $0x1e0] sm:$0xff]
    %v164 = vld [vmem:[#allocation7 + $0x1e8] sm:$0xff]
    %v165 = vld [vmem:[#allocation7 + $0x1f0] sm:$0xff]
    %v166 = vld [vmem:[#allocation7 + $0x1f8] sm:$0xff]
    %v167 = vld [vmem:[#allocation7 + $0x200] sm:$0xff]
    %v168 = vld [vmem:[#allocation7 + $0x208] sm:$0xff]
    %v169 = vld [vmem:[#allocation7 + $0x210] sm:$0xff]
    %v170 = vld [vmem:[#allocation7 + $0x218] sm:$0xff]
    %v171 = vld [vmem:[#allocation7 + $0x220] sm:$0xff]
    %v172 = vld [vmem:[#allocation7 + $0x228] sm:$0xff]
    %v173 = vld [vmem:[#allocation7 + $0x230] sm:$0xff]
    %v174 = vld [vmem:[#allocation7 + $0x238] sm:$0xff]
    %v175 = vld [vmem:[#allocation7 + $0x240] sm:$0xff]
    %v176 = vld [vmem:[#allocation7 + $0x248] sm:$0xff]
    %v177 = vld [vmem:[#allocation7 + $0x250] sm:$0xff]
    %v178 = vld [vmem:[#allocation7 + $0x258] sm:$0xff]
    %v179 = vld [vmem:[#allocation7 + $0x260] sm:$0xff]
    %v180 = vld [vmem:[#allocation7 + $0x268] sm:$0xff]
    %v181 = vld [vmem:[#allocation7 + $0x270] sm:$0xff]
    %v182 = vld [vmem:[#allocation7 + $0x278] sm:$0xff]
    %v183 = vld [vmem:[#allocation7 + $0x280] sm:$0xff]
    %v184 = vld [vmem:[#allocation7 + $0x288] sm:$0xff]
    %v185 = vld [vmem:[#allocation7 + $0x290] sm:$0xff]
    %v186 = vld [vmem:[#allocation7 + $0x298] sm:$0xff]
    %v187 = vld [vmem:[#allocation7 + $0x2a0] sm:$0xff]
    %v188 = vld [vmem:[#allocation7 + $0x2a8] sm:$0xff]
    %v189 = vld [vmem:[#allocation7 + $0x2b0] sm:$0xff]
    %v190 = vld [vmem:[#allocation7 + $0x2b8] sm:$0xff]
    %v191 = vld [vmem:[#allocation7 + $0x2c0] sm:$0xff]
    %v192 = vld [vmem:[#allocation7 + $0x2c8] sm:$0xff]
    %v193 = vld [vmem:[#allocation7 + $0x2d0] sm:$0xff]
    %v194 = vld [vmem:[#allocation7 + $0x2d8] sm:$0xff]
    %v195 = vld [vmem:[#allocation7 + $0x2e0] sm:$0xff]
    %v196 = vld [vmem:[#allocation7 + $0x2e8] sm:$0xff]
    %v197 = vld [vmem:[#allocation7 + $0x2f0] sm:$0xff]
    %v198 = vld [vmem:[#allocation7 + $0x2f8] sm:$0xff]
    %v199 = vld [vmem:[#allocation7 + $0x300] sm:$0xff]
    %v200 = vld [vmem:[#allocation7 + $0x308] sm:$0xff]
    %v201 = vld [vmem:[#allocation7 + $0x310] sm:$0xff]
    %v202 = vld [vmem:[#allocation7 + $0x318] sm:$0xff]
    %v203 = vld [vmem:[#allocation7 + $0x320] sm:$0xff]
    %v204 = vld [vmem:[#allocation7 + $0x328] sm:$0xff]
    %v205 = vld [vmem:[#allocation7 + $0x330] sm:$0xff]
    %v206 = vld [vmem:[#allocation7 + $0x338] sm:$0xff]
    %v207 = vld [vmem:[#allocation7 + $0x340] sm:$0xff]
    %v208 = vld [vmem:[#allocation7 + $0x348] sm:$0xff]
    %v209 = vld [vmem:[#allocation7 + $0x350] sm:$0xff]
    %v210 = vld [vmem:[#allocation7 + $0x358] sm:$0xff]
    %v211 = vld [vmem:[#allocation7 + $0x360] sm:$0xff]
    %v212 = vld [vmem:[#allocation7 + $0x368] sm:$0xff]
    %v213 = vld [vmem:[#allocation7 + $0x370] sm:$0xff]
    %v214 = vld [vmem:[#allocation7 + $0x378] sm:$0xff]
    %v215 = vld [vmem:[#allocation7 + $0x380] sm:$0xff]
    %v216 = vld [vmem:[#allocation7 + $0x388] sm:$0xff]
    %v217 = vld [vmem:[#allocation7 + $0x390] sm:$0xff]
    %v218 = vld [vmem:[#allocation7 + $0x398] sm:$0xff]
    %v219 = vld [vmem:[#allocation7 + $0x3a0] sm:$0xff]
    %v220 = vld [vmem:[#allocation7 + $0x3a8] sm:$0xff]
    %v221 = vld [vmem:[#allocation7 + $0x3b0] sm:$0xff]
    %v222 = vld [vmem:[#allocation7 + $0x3b8] sm:$0xff]
    %v223 = vld [vmem:[#allocation7 + $0x3c0] sm:$0xff]
    %v224 = vld [vmem:[#allocation7 + $0x3c8] sm:$0xff]
    %v225 = vld [vmem:[#allocation7 + $0x3d0] sm:$0xff]
    %v226 = vld [vmem:[#allocation7 + $0x3d8] sm:$0xff]
    %v227 = vld [vmem:[#allocation7 + $0x3e0] sm:$0xff]
    %v228 = vld [vmem:[#allocation7 + $0x3e8] sm:$0xff]
    %v229 = vld [vmem:[#allocation7 + $0x3f0] sm:$0xff]
    %v230 = vld [vmem:[#allocation7 + $0x3f8] sm:$0xff]
    %v231 = vld [vmem:[#allocation7 + $0x400] sm:$0xff]
    %v232 = vld [vmem:[#allocation7 + $0x408] sm:$0xff]
    %v233 = vld [vmem:[#allocation7 + $0x410] sm:$0xff]
    %v234 = vld [vmem:[#allocation7 + $0x418] sm:$0xff]
    %v235 = vld [vmem:[#allocation7 + $0x420] sm:$0xff]
    %v236 = vld [vmem:[#allocation7 + $0x428] sm:$0xff]
    %v237 = vld [vmem:[#allocation7 + $0x430] sm:$0xff]
    %v238 = vld [vmem:[#allocation7 + $0x438] sm:$0xff]
    %v239 = vld [vmem:[#allocation7 + $0x440] sm:$0xff]
    %v240 = vld [vmem:[#allocation7 + $0x448] sm:$0xff]
    %v241 = vld [vmem:[#allocation7 + $0x450] sm:$0xff]
    %v242 = vld [vmem:[#allocation7 + $0x458] sm:$0xff]
    %v243 = vld [vmem:[#allocation7 + $0x460] sm:$0xff]
    %v244 = vld [vmem:[#allocation7 + $0x468] sm:$0xff]
    %v245 = vld [vmem:[#allocation7 + $0x470] sm:$0xff]
    %v246 = vld [vmem:[#allocation7 + $0x478] sm:$0xff]
    %v247 = vld [vmem:[#allocation7 + $0x480] sm:$0xff]
    %v248 = vld [vmem:[#allocation7 + $0x488] sm:$0xff]
    %v249 = vld [vmem:[#allocation7 + $0x490] sm:$0xff]
    %v250 = vld [vmem:[#allocation7 + $0x498] sm:$0xff]
    %v251 = vld [vmem:[#allocation7 + $0x4a0] sm:$0xff]
    %v252 = vld [vmem:[#allocation7 + $0x4a8] sm:$0xff]
    %v253 = vld [vmem:[#allocation7 + $0x4b0] sm:$0xff]
    %v254 = vld [vmem:[#allocation7 + $0x4b8] sm:$0xff]
    %v255 = vld [vmem:[#allocation7 + $0x4c0] sm:$0xff]
    %v256 = vld [vmem:[#allocation7 + $0x4c8] sm:$0xff]
    %v257 = vld [vmem:[#allocation7 + $0x4d0] sm:$0xff]
    %v258 = vld [vmem:[#allocation7 + $0x4d8] sm:$0xff]
    %v259 = vld [vmem:[#allocation7 + $0x4e0] sm:$0xff]
    %v260 = vld [vmem:[#allocation7 + $0x4e8] sm:$0xff]
    %v261 = vld [vmem:[#allocation7 + $0x4f0] sm:$0xff]
    %v262 = vld [vmem:[#allocation7 + $0x4f8] sm:$0xff]
    %v263 = vld [vmem:[#allocation7 + $0x500] sm:$0xff]
    %v264 = vld [vmem:[#allocation7 + $0x508] sm:$0xff]
    %v265 = vld [vmem:[#allocation7 + $0x510] sm:$0xff]
    %v266 = vld [vmem:[#allocation7 + $0x518] sm:$0xff]
    %v267 = vld [vmem:[#allocation7 + $0x520] sm:$0xff]
    %v268 = vld [vmem:[#allocation7 + $0x528] sm:$0xff]
    %v269 = vld [vmem:[#allocation7 + $0x530] sm:$0xff]
    %v270 = vld [vmem:[#allocation7 + $0x538] sm:$0xff]
    %v271 = vld [vmem:[#allocation7 + $0x540] sm:$0xff]
    %v272 = vld [vmem:[#allocation7 + $0x548] sm:$0xff]
    %v273 = vld [vmem:[#allocation7 + $0x550] sm:$0xff]
    %v274 = vld [vmem:[#allocation7 + $0x558] sm:$0xff]
    %v275 = vld [vmem:[#allocation7 + $0x560] sm:$0xff]
    %v276 = vld [vmem:[#allocation7 + $0x568] sm:$0xff]
    %v277 = vld [vmem:[#allocation7 + $0x570] sm:$0xff]
    %v278 = vld [vmem:[#allocation7 + $0x578] sm:$0xff]
    %v279 = vld [vmem:[#allocation7 + $0x580] sm:$0xff]
    %v280 = vld [vmem:[#allocation7 + $0x588] sm:$0xff]
    %v281 = vld [vmem:[#allocation7 + $0x590] sm:$0xff]
    %v282 = vld [vmem:[#allocation7 + $0x598] sm:$0xff]
    %v283 = vld [vmem:[#allocation7 + $0x5a0] sm:$0xff]
    %v284 = vld [vmem:[#allocation7 + $0x5a8] sm:$0xff]
    %v285 = vld [vmem:[#allocation7 + $0x5b0] sm:$0xff]
    %v286 = vld [vmem:[#allocation7 + $0x5b8] sm:$0xff]
    %v287 = vld [vmem:[#allocation7 + $0x5c0] sm:$0xff]
    %v288 = vld [vmem:[#allocation7 + $0x5c8] sm:$0xff]
    %v289 = vld [vmem:[#allocation7 + $0x5d0] sm:$0xff]
    %v290 = vld [vmem:[#allocation7 + $0x5d8] sm:$0xff]
    %v291 = vld [vmem:[#allocation7 + $0x5e0] sm:$0xff]
    %v292 = vld [vmem:[#allocation7 + $0x5e8] sm:$0xff]
    %v293 = vld [vmem:[#allocation7 + $0x5f0] sm:$0xff]
    %v294 = vld [vmem:[#allocation7 + $0x5f8] sm:$0xff]
    %v295 = vld [vmem:[#allocation8] sm:$0xff]
    %v296 = vld [vmem:[#allocation8 + $0x8] sm:$0xff]
    %v297 = vld [vmem:[#allocation8 + $0x10] sm:$0xff]
    %v298 = vld [vmem:[#allocation8 + $0x18] sm:$0xff]
    %v299 = vld [vmem:[#allocation8 + $0x20] sm:$0xff]
    %v300 = vld [vmem:[#allocation8 + $0x28] sm:$0xff]
    %v301 = vld [vmem:[#allocation8 + $0x30] sm:$0xff]
    %v302 = vld [vmem:[#allocation8 + $0x38] sm:$0xff]
    %v303 = vld [vmem:[#allocation8 + $0x40] sm:$0xff]
    %v304 = vld [vmem:[#allocation8 + $0x48] sm:$0xff]
    %v305 = vld [vmem:[#allocation8 + $0x50] sm:$0xff]
    %v306 = vld [vmem:[#allocation8 + $0x58] sm:$0xff]
    %v307 = vld [vmem:[#allocation8 + $0x60] sm:$0xff]
    %v308 = vld [vmem:[#allocation8 + $0x68] sm:$0xff]
    %v309 = vld [vmem:[#allocation8 + $0x70] sm:$0xff]
    %v310 = vld [vmem:[#allocation8 + $0x78] sm:$0xff]
    %v311 = vld [vmem:[#allocation8 + $0x80] sm:$0xff]
    %v312 = vld [vmem:[#allocation8 + $0x88] sm:$0xff]
    %v313 = vld [vmem:[#allocation8 + $0x90] sm:$0xff]
    %v314 = vld [vmem:[#allocation8 + $0x98] sm:$0xff]
    %v315 = vld [vmem:[#allocation8 + $0xa0] sm:$0xff]
    %v316 = vld [vmem:[#allocation8 + $0xa8] sm:$0xff]
    %v317 = vld [vmem:[#allocation8 + $0xb0] sm:$0xff]
    %v318 = vld [vmem:[#allocation8 + $0xb8] sm:$0xff]
    %v319 = vld [vmem:[#allocation8 + $0xc0] sm:$0xff]
    %v320 = vld [vmem:[#allocation8 + $0xc8] sm:$0xff]
    %v321 = vld [vmem:[#allocation8 + $0xd0] sm:$0xff]
    %v322 = vld [vmem:[#allocation8 + $0xd8] sm:$0xff]
    %v323 = vld [vmem:[#allocation8 + $0xe0] sm:$0xff]
    %v324 = vld [vmem:[#allocation8 + $0xe8] sm:$0xff]
    %v325 = vld [vmem:[#allocation8 + $0xf0] sm:$0xff]
    %v326 = vld [vmem:[#allocation8 + $0xf8] sm:$0xff]
    %v327 = vld [vmem:[#allocation8 + $0x100] sm:$0xff]
    %v328 = vld [vmem:[#allocation8 + $0x108] sm:$0xff]
    %v329 = vld [vmem:[#allocation8 + $0x110] sm:$0xff]
    %v330 = vld [vmem:[#allocation8 + $0x118] sm:$0xff]
    %v331 = vld [vmem:[#allocation8 + $0x120] sm:$0xff]
    %v332 = vld [vmem:[#allocation8 + $0x128] sm:$0xff]
    %v333 = vld [vmem:[#allocation8 + $0x130] sm:$0xff]
    %v334 = vld [vmem:[#allocation8 + $0x138] sm:$0xff]
    %v335 = vld [vmem:[#allocation8 + $0x140] sm:$0xff]
    %v336 = vld [vmem:[#allocation8 + $0x148] sm:$0xff]
    %v337 = vld [vmem:[#allocation8 + $0x150] sm:$0xff]
    %v338 = vld [vmem:[#allocation8 + $0x158] sm:$0xff]
    %v339 = vld [vmem:[#allocation8 + $0x160] sm:$0xff]
    %v340 = vld [vmem:[#allocation8 + $0x168] sm:$0xff]
    %v341 = vld [vmem:[#allocation8 + $0x170] sm:$0xff]
    %v342 = vld [vmem:[#allocation8 + $0x178] sm:$0xff]
    %v343 = vld [vmem:[#allocation8 + $0x180] sm:$0xff]
    %v344 = vld [vmem:[#allocation8 + $0x188] sm:$0xff]
    %v345 = vld [vmem:[#allocation8 + $0x190] sm:$0xff]
    %v346 = vld [vmem:[#allocation8 + $0x198] sm:$0xff]
    %v347 = vld [vmem:[#allocation8 + $0x1a0] sm:$0xff]
    %v348 = vld [vmem:[#allocation8 + $0x1a8] sm:$0xff]
    %v349 = vld [vmem:[#allocation8 + $0x1b0] sm:$0xff]
    %v350 = vld [vmem:[#allocation8 + $0x1b8] sm:$0xff]
    %v351 = vld [vmem:[#allocation8 + $0x1c0] sm:$0xff]
    %v352 = vld [vmem:[#allocation8 + $0x1c8] sm:$0xff]
    %v353 = vld [vmem:[#allocation8 + $0x1d0] sm:$0xff]
    %v354 = vld [vmem:[#allocation8 + $0x1d8] sm:$0xff]
    %v355 = vld [vmem:[#allocation8 + $0x1e0] sm:$0xff]
    %v356 = vld [vmem:[#allocation8 + $0x1e8] sm:$0xff]
    %v357 = vld [vmem:[#allocation8 + $0x1f0] sm:$0xff]
    %v358 = vld [vmem:[#allocation8 + $0x1f8] sm:$0xff]
    %v359 = vld [vmem:[#allocation8 + $0x200] sm:$0xff]
    %v360 = vld [vmem:[#allocation8 + $0x208] sm:$0xff]
    %v361 = vld [vmem:[#allocation8 + $0x210] sm:$0xff]
    %v362 = vld [vmem:[#allocation8 + $0x218] sm:$0xff]
    %v363 = vld [vmem:[#allocation8 + $0x220] sm:$0xff]
    %v364 = vld [vmem:[#allocation8 + $0x228] sm:$0xff]
    %v365 = vld [vmem:[#allocation8 + $0x230] sm:$0xff]
    %v366 = vld [vmem:[#allocation8 + $0x238] sm:$0xff]
    %v367 = vld [vmem:[#allocation8 + $0x240] sm:$0xff]
    %v368 = vld [vmem:[#allocation8 + $0x248] sm:$0xff]
    %v369 = vld [vmem:[#allocation8 + $0x250] sm:$0xff]
    %v370 = vld [vmem:[#allocation8 + $0x258] sm:$0xff]
    %v371 = vld [vmem:[#allocation8 + $0x260] sm:$0xff]
    %v372 = vld [vmem:[#allocation8 + $0x268] sm:$0xff]
    %v373 = vld [vmem:[#allocation8 + $0x270] sm:$0xff]
    %v374 = vld [vmem:[#allocation8 + $0x278] sm:$0xff]
    %v375 = vld [vmem:[#allocation8 + $0x280] sm:$0xff]
    %v376 = vld [vmem:[#allocation8 + $0x288] sm:$0xff]
    %v377 = vld [vmem:[#allocation8 + $0x290] sm:$0xff]
    %v378 = vld [vmem:[#allocation8 + $0x298] sm:$0xff]
    %v379 = vld [vmem:[#allocation8 + $0x2a0] sm:$0xff]
    %v380 = vld [vmem:[#allocation8 + $0x2a8] sm:$0xff]
    %v381 = vld [vmem:[#allocation8 + $0x2b0] sm:$0xff]
    %v382 = vld [vmem:[#allocation8 + $0x2b8] sm:$0xff]
    %v383 = vld [vmem:[#allocation8 + $0x2c0] sm:$0xff]
    %v384 = vld [vmem:[#allocation8 + $0x2c8] sm:$0xff]
    %v385 = vld [vmem:[#allocation8 + $0x2d0] sm:$0xff]
    %v386 = vld [vmem:[#allocation8 + $0x2d8] sm:$0xff]
    %v387 = vld [vmem:[#allocation8 + $0x2e0] sm:$0xff]
    %v388 = vld [vmem:[#allocation8 + $0x2e8] sm:$0xff]
    %v389 = vld [vmem:[#allocation8 + $0x2f0] sm:$0xff]
    %v390 = vld [vmem:[#allocation8 + $0x2f8] sm:$0xff]
    %v391 = vld [vmem:[#allocation8 + $0x300] sm:$0xff]
    %v392 = vld [vmem:[#allocation8 + $0x308] sm:$0xff]
    %v393 = vld [vmem:[#allocation8 + $0x310] sm:$0xff]
    %v394 = vld [vmem:[#allocation8 + $0x318] sm:$0xff]
    %v395 = vld [vmem:[#allocation8 + $0x320] sm:$0xff]
    %v396 = vld [vmem:[#allocation8 + $0x328] sm:$0xff]
    %v397 = vld [vmem:[#allocation8 + $0x330] sm:$0xff]
    %v398 = vld [vmem:[#allocation8 + $0x338] sm:$0xff]
    %v399 = vld [vmem:[#allocation8 + $0x340] sm:$0xff]
    %v400 = vld [vmem:[#allocation8 + $0x348] sm:$0xff]
    %v401 = vld [vmem:[#allocation8 + $0x350] sm:$0xff]
    %v402 = vld [vmem:[#allocation8 + $0x358] sm:$0xff]
    %v403 = vld [vmem:[#allocation8 + $0x360] sm:$0xff]
    %v404 = vld [vmem:[#allocation8 + $0x368] sm:$0xff]
    %v405 = vld [vmem:[#allocation8 + $0x370] sm:$0xff]
    %v406 = vld [vmem:[#allocation8 + $0x378] sm:$0xff]
    %v407 = vld [vmem:[#allocation8 + $0x380] sm:$0xff]
    %v408 = vld [vmem:[#allocation8 + $0x388] sm:$0xff]
    %v409 = vld [vmem:[#allocation8 + $0x390] sm:$0xff]
    %v410 = vld [vmem:[#allocation8 + $0x398] sm:$0xff]
    %v411 = vld [vmem:[#allocation8 + $0x3a0] sm:$0xff]
    %v412 = vld [vmem:[#allocation8 + $0x3a8] sm:$0xff]
    %v413 = vld [vmem:[#allocation8 + $0x3b0] sm:$0xff]
    %v414 = vld [vmem:[#allocation8 + $0x3b8] sm:$0xff]
    %v415 = vld [vmem:[#allocation8 + $0x3c0] sm:$0xff]
    %v416 = vld [vmem:[#allocation8 + $0x3c8] sm:$0xff]
    %v417 = vld [vmem:[#allocation8 + $0x3d0] sm:$0xff]
    %v418 = vld [vmem:[#allocation8 + $0x3d8] sm:$0xff]
    %v419 = vld [vmem:[#allocation8 + $0x3e0] sm:$0xff]
    %v420 = vld [vmem:[#allocation8 + $0x3e8] sm:$0xff]
    %v421 = vld [vmem:[#allocation8 + $0x3f0] sm:$0xff]
    %v422 = vld [vmem:[#allocation8 + $0x3f8] sm:$0xff]
    %v423 = vld [vmem:[#allocation8 + $0x400] sm:$0xff]
    %v424 = vld [vmem:[#allocation8 + $0x408] sm:$0xff]
    %v425 = vld [vmem:[#allocation8 + $0x410] sm:$0xff]
    %v426 = vld [vmem:[#allocation8 + $0x418] sm:$0xff]
    %v427 = vld [vmem:[#allocation8 + $0x420] sm:$0xff]
    %v428 = vld [vmem:[#allocation8 + $0x428] sm:$0xff]
    %v429 = vld [vmem:[#allocation8 + $0x430] sm:$0xff]
    %v430 = vld [vmem:[#allocation8 + $0x438] sm:$0xff]
    %v431 = vld [vmem:[#allocation8 + $0x440] sm:$0xff]
    %v432 = vld [vmem:[#allocation8 + $0x448] sm:$0xff]
    %v433 = vld [vmem:[#allocation8 + $0x450] sm:$0xff]
    %v434 = vld [vmem:[#allocation8 + $0x458] sm:$0xff]
    %v435 = vld [vmem:[#allocation8 + $0x460] sm:$0xff]
    %v436 = vld [vmem:[#allocation8 + $0x468] sm:$0xff]
    %v437 = vld [vmem:[#allocation8 + $0x470] sm:$0xff]
    %v438 = vld [vmem:[#allocation8 + $0x478] sm:$0xff]
    %v439 = vld [vmem:[#allocation8 + $0x480] sm:$0xff]
    %v440 = vld [vmem:[#allocation8 + $0x488] sm:$0xff]
    %v441 = vld [vmem:[#allocation8 + $0x490] sm:$0xff]
    %v442 = vld [vmem:[#allocation8 + $0x498] sm:$0xff]
    %v443 = vld [vmem:[#allocation8 + $0x4a0] sm:$0xff]
    %v444 = vld [vmem:[#allocation8 + $0x4a8] sm:$0xff]
    %v445 = vld [vmem:[#allocation8 + $0x4b0] sm:$0xff]
    %v446 = vld [vmem:[#allocation8 + $0x4b8] sm:$0xff]
    %v447 = vld [vmem:[#allocation8 + $0x4c0] sm:$0xff]
    %v448 = vld [vmem:[#allocation8 + $0x4c8] sm:$0xff]
    %v449 = vld [vmem:[#allocation8 + $0x4d0] sm:$0xff]
    %v450 = vld [vmem:[#allocation8 + $0x4d8] sm:$0xff]
    %v451 = vld [vmem:[#allocation8 + $0x4e0] sm:$0xff]
    %v452 = vld [vmem:[#allocation8 + $0x4e8] sm:$0xff]
    %v453 = vld [vmem:[#allocation8 + $0x4f0] sm:$0xff]
    %v454 = vld [vmem:[#allocation8 + $0x4f8] sm:$0xff]
    %v455 = vld [vmem:[#allocation8 + $0x500] sm:$0xff]
    %v456 = vld [vmem:[#allocation8 + $0x508] sm:$0xff]
    %v457 = vld [vmem:[#allocation8 + $0x510] sm:$0xff]
    %v458 = vld [vmem:[#allocation8 + $0x518] sm:$0xff]
    %v459 = vld [vmem:[#allocation8 + $0x520] sm:$0xff]
    %v460 = vld [vmem:[#allocation8 + $0x528] sm:$0xff]
    %v461 = vld [vmem:[#allocation8 + $0x530] sm:$0xff]
    %v462 = vld [vmem:[#allocation8 + $0x538] sm:$0xff]
    %v463 = vld [vmem:[#allocation8 + $0x540] sm:$0xff]
    %v464 = vld [vmem:[#allocation8 + $0x548] sm:$0xff]
    %v465 = vld [vmem:[#allocation8 + $0x550] sm:$0xff]
    %v466 = vld [vmem:[#allocation8 + $0x558] sm:$0xff]
    %v467 = vld [vmem:[#allocation8 + $0x560] sm:$0xff]
    %v468 = vld [vmem:[#allocation8 + $0x568] sm:$0xff]
    %v469 = vld [vmem:[#allocation8 + $0x570] sm:$0xff]
    %v470 = vld [vmem:[#allocation8 + $0x578] sm:$0xff]
    %v471 = vld [vmem:[#allocation8 + $0x580] sm:$0xff]
    %v472 = vld [vmem:[#allocation8 + $0x588] sm:$0xff]
    %v473 = vld [vmem:[#allocation8 + $0x590] sm:$0xff]
    %v474 = vld [vmem:[#allocation8 + $0x598] sm:$0xff]
    %v475 = vld [vmem:[#allocation8 + $0x5a0] sm:$0xff]
    %v476 = vld [vmem:[#allocation8 + $0x5a8] sm:$0xff]
    %v477 = vld [vmem:[#allocation8 + $0x5b0] sm:$0xff]
    %v478 = vld [vmem:[#allocation8 + $0x5b8] sm:$0xff]
    %v479 = vld [vmem:[#allocation8 + $0x5c0] sm:$0xff]
    %v480 = vld [vmem:[#allocation8 + $0x5c8] sm:$0xff]
    %v481 = vld [vmem:[#allocation8 + $0x5d0] sm:$0xff]
    %v482 = vld [vmem:[#allocation8 + $0x5d8] sm:$0xff]
    %v483 = vld [vmem:[#allocation8 + $0x5e0] sm:$0xff]
    %v484 = vld [vmem:[#allocation8 + $0x5e8] sm:$0xff]
    %v485 = vld [vmem:[#allocation8 + $0x5f0] sm:$0xff]
    %v486 = vld [vmem:[#allocation8 + $0x5f8] sm:$0xff]
    %v491 = vcombine.low %v99, %v100
    %v492 = vcombine.high %v99, %v100
    %v493 = vcombine.low %v101, %v102
    %v494 = vcombine.high %v101, %v102
    %v496 = vunpack.c.l.s4 1966171168
    %v497 = vunpack.c.0.s8 %v496
    %v498 = vlaneseq
    %v499 = vshrl.u32 %v498, 7
    %v500 = vsub.s32 %v497, %v499
    %v501 = vrot.slane %v491, %v500
    %v503 = vunpack.c.l.s4 1966171168
    %v504 = vunpack.c.0.s8 %v503
    %v505 = vlaneseq
    %v506 = vshrl.u32 %v505, 7
    %v507 = vsub.s32 %v504, %v506
    %v508 = vrot.slane %v492, %v507
    %v510 = vunpack.c.l.s4 1966171168
    %v511 = vunpack.c.0.s8 %v510
    %v512 = vlaneseq
    %v513 = vshrl.u32 %v512, 7
    %v514 = vsub.s32 %v511, %v513
    %v515 = vrot.slane %v493, %v514
    %v517 = vunpack.c.l.s4 1966171168
    %v518 = vunpack.c.0.s8 %v517
    %v519 = vlaneseq
    %v520 = vshrl.u32 %v519, 7
    %v521 = vsub.s32 %v518, %v520
    %v522 = vrot.slane %v494, %v521
    %v523 = vcombine.low %v501, %v515
    %v524 = vcombine.high %v501, %v515
    %v525 = vcombine.low %v508, %v522
    %v526 = vcombine.high %v508, %v522
    %v528 = vunpack.c.l.s4 1966171168
    %v529 = vunpack.c.0.s8 %v528
    %v530 = vlaneseq
    %v531 = vshrl.u32 %v530, 7
    %v532 = vsub.s32 %v529, %v531
    %v533 = vrot.slane %v523, %v532
    %v535 = vunpack.c.l.s4 1966171168
    %v536 = vunpack.c.0.s8 %v535
    %v537 = vlaneseq
    %v538 = vshrl.u32 %v537, 7
    %v539 = vsub.s32 %v536, %v538
    %v540 = vrot.slane %v525, %v539
    %v542 = vunpack.c.l.s4 1966171168
    %v543 = vunpack.c.0.s8 %v542
    %v544 = vlaneseq
    %v545 = vshrl.u32 %v544, 7
    %v546 = vsub.s32 %v543, %v545
    %v547 = vrot.slane %v524, %v546
    %v549 = vunpack.c.l.s4 1966171168
    %v550 = vunpack.c.0.s8 %v549
    %v551 = vlaneseq
    %v552 = vshrl.u32 %v551, 7
    %v553 = vsub.s32 %v550, %v552
    %v554 = vrot.slane %v526, %v553
    %v555 = vcombine.high %v533, %v533
    %v556 = vcombine.high %v547, %v547
    %v755 = vunpack.c.l.b16 %v295
    %v756 = vunpack.c.h.b16 %v295
    %v757 = vunpack.c.l.b16 %v296
    %v758 = vunpack.c.h.b16 %v296
    %v759 = vunpack.c.l.b16 %v297
    %v760 = vunpack.c.h.b16 %v297
    %v761 = vunpack.c.l.b16 %v298
    %v762 = vunpack.c.h.b16 %v298
    %v763 = vunpack.c.l.b16 %v299
    %v764 = vunpack.c.h.b16 %v299
    %v765 = vunpack.c.l.b16 %v300
    %v766 = vunpack.c.h.b16 %v300
    %v767 = vunpack.c.l.b16 %v301
    %v768 = vunpack.c.h.b16 %v301
    %v769 = vunpack.c.l.b16 %v302
    %v770 = vunpack.c.h.b16 %v302
    %v771 = vunpack.c.l.b16 %v303
    %v772 = vunpack.c.h.b16 %v303
    %v773 = vunpack.c.l.b16 %v304
    %v774 = vunpack.c.h.b16 %v304
    %v775 = vunpack.c.l.b16 %v305
    %v776 = vunpack.c.h.b16 %v305
    %v777 = vunpack.c.l.b16 %v306
    %v778 = vunpack.c.h.b16 %v306
    %v779 = vunpack.c.l.b16 %v307
    %v780 = vunpack.c.h.b16 %v307
    %v781 = vunpack.c.l.b16 %v308
    %v782 = vunpack.c.h.b16 %v308
    %v783 = vunpack.c.l.b16 %v309
    %v784 = vunpack.c.h.b16 %v309
    %v785 = vunpack.c.l.b16 %v310
    %v786 = vunpack.c.h.b16 %v310
    %v787 = vunpack.c.l.b16 %v311
    %v788 = vunpack.c.h.b16 %v311
    %v789 = vunpack.c.l.b16 %v312
    %v790 = vunpack.c.h.b16 %v312
    %v791 = vunpack.c.l.b16 %v313
    %v792 = vunpack.c.h.b16 %v313
    %v793 = vunpack.c.l.b16 %v314
    %v794 = vunpack.c.h.b16 %v314
    %v795 = vunpack.c.l.b16 %v315
    %v796 = vunpack.c.h.b16 %v315
    %v797 = vunpack.c.l.b16 %v316
    %v798 = vunpack.c.h.b16 %v316
    %v799 = vunpack.c.l.b16 %v317
    %v800 = vunpack.c.h.b16 %v317
    %v801 = vunpack.c.l.b16 %v318
    %v802 = vunpack.c.h.b16 %v318
    %v803 = vunpack.c.l.b16 %v319
    %v804 = vunpack.c.h.b16 %v319
    %v805 = vunpack.c.l.b16 %v320
    %v806 = vunpack.c.h.b16 %v320
    %v807 = vunpack.c.l.b16 %v321
    %v808 = vunpack.c.h.b16 %v321
    %v809 = vunpack.c.l.b16 %v322
    %v810 = vunpack.c.h.b16 %v322
    %v811 = vunpack.c.l.b16 %v323
    %v812 = vunpack.c.h.b16 %v323
    %v813 = vunpack.c.l.b16 %v324
    %v814 = vunpack.c.h.b16 %v324
    %v815 = vunpack.c.l.b16 %v325
    %v816 = vunpack.c.h.b16 %v325
    %v817 = vunpack.c.l.b16 %v326
    %v818 = vunpack.c.h.b16 %v326
    %v819 = vunpack.c.l.b16 %v327
    %v820 = vunpack.c.h.b16 %v327
    %v821 = vunpack.c.l.b16 %v328
    %v822 = vunpack.c.h.b16 %v328
    %v823 = vunpack.c.l.b16 %v329
    %v824 = vunpack.c.h.b16 %v329
    %v825 = vunpack.c.l.b16 %v330
    %v826 = vunpack.c.h.b16 %v330
    %v827 = vunpack.c.l.b16 %v331
    %v828 = vunpack.c.h.b16 %v331
    %v829 = vunpack.c.l.b16 %v332
    %v830 = vunpack.c.h.b16 %v332
    %v831 = vunpack.c.l.b16 %v333
    %v832 = vunpack.c.h.b16 %v333
    %v833 = vunpack.c.l.b16 %v334
    %v834 = vunpack.c.h.b16 %v334
    %v835 = vunpack.c.l.b16 %v335
    %v836 = vunpack.c.h.b16 %v335
    %v837 = vunpack.c.l.b16 %v336
    %v838 = vunpack.c.h.b16 %v336
    %v839 = vunpack.c.l.b16 %v337
    %v840 = vunpack.c.h.b16 %v337
    %v841 = vunpack.c.l.b16 %v338
    %v842 = vunpack.c.h.b16 %v338
    %v843 = vunpack.c.l.b16 %v339
    %v844 = vunpack.c.h.b16 %v339
    %v845 = vunpack.c.l.b16 %v340
    %v846 = vunpack.c.h.b16 %v340
    %v847 = vunpack.c.l.b16 %v341
    %v848 = vunpack.c.h.b16 %v341
    %v849 = vunpack.c.l.b16 %v342
    %v850 = vunpack.c.h.b16 %v342
    %v851 = vunpack.c.l.b16 %v343
    %v852 = vunpack.c.h.b16 %v343
    %v853 = vunpack.c.l.b16 %v344
    %v854 = vunpack.c.h.b16 %v344
    %v855 = vunpack.c.l.b16 %v345
    %v856 = vunpack.c.h.b16 %v345
    %v857 = vunpack.c.l.b16 %v346
    %v858 = vunpack.c.h.b16 %v346
    %v859 = vunpack.c.l.b16 %v347
    %v860 = vunpack.c.h.b16 %v347
    %v861 = vunpack.c.l.b16 %v348
    %v862 = vunpack.c.h.b16 %v348
    %v863 = vunpack.c.l.b16 %v349
    %v864 = vunpack.c.h.b16 %v349
    %v865 = vunpack.c.l.b16 %v350
    %v866 = vunpack.c.h.b16 %v350
    %v867 = vunpack.c.l.b16 %v351
    %v868 = vunpack.c.h.b16 %v351
    %v869 = vunpack.c.l.b16 %v352
    %v870 = vunpack.c.h.b16 %v352
    %v871 = vunpack.c.l.b16 %v353
    %v872 = vunpack.c.h.b16 %v353
    %v873 = vunpack.c.l.b16 %v354
    %v874 = vunpack.c.h.b16 %v354
    %v875 = vunpack.c.l.b16 %v355
    %v876 = vunpack.c.h.b16 %v355
    %v877 = vunpack.c.l.b16 %v356
    %v878 = vunpack.c.h.b16 %v356
    %v879 = vunpack.c.l.b16 %v357
    %v880 = vunpack.c.h.b16 %v357
    %v881 = vunpack.c.l.b16 %v358
    %v882 = vunpack.c.h.b16 %v358
    %v883 = vunpack.c.l.b16 %v359
    %v884 = vunpack.c.h.b16 %v359
    %v885 = vunpack.c.l.b16 %v360
    %v886 = vunpack.c.h.b16 %v360
    %v887 = vunpack.c.l.b16 %v361
    %v888 = vunpack.c.h.b16 %v361
    %v889 = vunpack.c.l.b16 %v362
    %v890 = vunpack.c.h.b16 %v362
    %v891 = vunpack.c.l.b16 %v363
    %v892 = vunpack.c.h.b16 %v363
    %v893 = vunpack.c.l.b16 %v364
    %v894 = vunpack.c.h.b16 %v364
    %v895 = vunpack.c.l.b16 %v365
    %v896 = vunpack.c.h.b16 %v365
    %v897 = vunpack.c.l.b16 %v366
    %v898 = vunpack.c.h.b16 %v366
    %v899 = vunpack.c.l.b16 %v367
    %v900 = vunpack.c.h.b16 %v367
    %v901 = vunpack.c.l.b16 %v368
    %v902 = vunpack.c.h.b16 %v368
    %v903 = vunpack.c.l.b16 %v369
    %v904 = vunpack.c.h.b16 %v369
    %v905 = vunpack.c.l.b16 %v370
    %v906 = vunpack.c.h.b16 %v370
    %v907 = vunpack.c.l.b16 %v371
    %v908 = vunpack.c.h.b16 %v371
    %v909 = vunpack.c.l.b16 %v372
    %v910 = vunpack.c.h.b16 %v372
    %v911 = vunpack.c.l.b16 %v373
    %v912 = vunpack.c.h.b16 %v373
    %v913 = vunpack.c.l.b16 %v374
    %v914 = vunpack.c.h.b16 %v374
    %v915 = vunpack.c.l.b16 %v375
    %v916 = vunpack.c.h.b16 %v375
    %v917 = vunpack.c.l.b16 %v376
    %v918 = vunpack.c.h.b16 %v376
    %v919 = vunpack.c.l.b16 %v377
    %v920 = vunpack.c.h.b16 %v377
    %v921 = vunpack.c.l.b16 %v378
    %v922 = vunpack.c.h.b16 %v378
    %v923 = vunpack.c.l.b16 %v379
    %v924 = vunpack.c.h.b16 %v379
    %v925 = vunpack.c.l.b16 %v380
    %v926 = vunpack.c.h.b16 %v380
    %v927 = vunpack.c.l.b16 %v381
    %v928 = vunpack.c.h.b16 %v381
    %v929 = vunpack.c.l.b16 %v382
    %v930 = vunpack.c.h.b16 %v382
    %v931 = vunpack.c.l.b16 %v383
    %v932 = vunpack.c.h.b16 %v383
    %v933 = vunpack.c.l.b16 %v384
    %v934 = vunpack.c.h.b16 %v384
    %v935 = vunpack.c.l.b16 %v385
    %v936 = vunpack.c.h.b16 %v385
    %v937 = vunpack.c.l.b16 %v386
    %v938 = vunpack.c.h.b16 %v386
    %v939 = vunpack.c.l.b16 %v387
    %v940 = vunpack.c.h.b16 %v387
    %v941 = vunpack.c.l.b16 %v388
    %v942 = vunpack.c.h.b16 %v388
    %v943 = vunpack.c.l.b16 %v389
    %v944 = vunpack.c.h.b16 %v389
    %v945 = vunpack.c.l.b16 %v390
    %v946 = vunpack.c.h.b16 %v390
    %v947 = vunpack.c.l.b16 %v391
    %v948 = vunpack.c.h.b16 %v391
    %v949 = vunpack.c.l.b16 %v392
    %v950 = vunpack.c.h.b16 %v392
    %v951 = vunpack.c.l.b16 %v393
    %v952 = vunpack.c.h.b16 %v393
    %v953 = vunpack.c.l.b16 %v394
    %v954 = vunpack.c.h.b16 %v394
    %v955 = vunpack.c.l.b16 %v395
    %v956 = vunpack.c.h.b16 %v395
    %v957 = vunpack.c.l.b16 %v396
    %v958 = vunpack.c.h.b16 %v396
    %v959 = vunpack.c.l.b16 %v397
    %v960 = vunpack.c.h.b16 %v397
    %v961 = vunpack.c.l.b16 %v398
    %v962 = vunpack.c.h.b16 %v398
    %v963 = vunpack.c.l.b16 %v399
    %v964 = vunpack.c.h.b16 %v399
    %v965 = vunpack.c.l.b16 %v400
    %v966 = vunpack.c.h.b16 %v400
    %v967 = vunpack.c.l.b16 %v401
    %v968 = vunpack.c.h.b16 %v401
    %v969 = vunpack.c.l.b16 %v402
    %v970 = vunpack.c.h.b16 %v402
    %v971 = vunpack.c.l.b16 %v403
    %v972 = vunpack.c.h.b16 %v403
    %v973 = vunpack.c.l.b16 %v404
    %v974 = vunpack.c.h.b16 %v404
    %v975 = vunpack.c.l.b16 %v405
    %v976 = vunpack.c.h.b16 %v405
    %v977 = vunpack.c.l.b16 %v406
    %v978 = vunpack.c.h.b16 %v406
    %v979 = vunpack.c.l.b16 %v407
    %v980 = vunpack.c.h.b16 %v407
    %v981 = vunpack.c.l.b16 %v408
    %v982 = vunpack.c.h.b16 %v408
    %v983 = vunpack.c.l.b16 %v409
    %v984 = vunpack.c.h.b16 %v409
    %v985 = vunpack.c.l.b16 %v410
    %v986 = vunpack.c.h.b16 %v410
    %v987 = vunpack.c.l.b16 %v411
    %v988 = vunpack.c.h.b16 %v411
    %v989 = vunpack.c.l.b16 %v412
    %v990 = vunpack.c.h.b16 %v412
    %v991 = vunpack.c.l.b16 %v413
    %v992 = vunpack.c.h.b16 %v413
    %v993 = vunpack.c.l.b16 %v414
    %v994 = vunpack.c.h.b16 %v414
    %v995 = vunpack.c.l.b16 %v415
    %v996 = vunpack.c.h.b16 %v415
    %v997 = vunpack.c.l.b16 %v416
    %v998 = vunpack.c.h.b16 %v416
    %v999 = vunpack.c.l.b16 %v417
    %v1000 = vunpack.c.h.b16 %v417
    %v1001 = vunpack.c.l.b16 %v418
    %v1002 = vunpack.c.h.b16 %v418
    %v1003 = vunpack.c.l.b16 %v419
    %v1004 = vunpack.c.h.b16 %v419
    %v1005 = vunpack.c.l.b16 %v420
    %v1006 = vunpack.c.h.b16 %v420
    %v1007 = vunpack.c.l.b16 %v421
    %v1008 = vunpack.c.h.b16 %v421
    %v1009 = vunpack.c.l.b16 %v422
    %v1010 = vunpack.c.h.b16 %v422
    %v1011 = vunpack.c.l.b16 %v423
    %v1012 = vunpack.c.h.b16 %v423
    %v1013 = vunpack.c.l.b16 %v424
    %v1014 = vunpack.c.h.b16 %v424
    %v1015 = vunpack.c.l.b16 %v425
    %v1016 = vunpack.c.h.b16 %v425
    %v1017 = vunpack.c.l.b16 %v426
    %v1018 = vunpack.c.h.b16 %v426
    %v1019 = vunpack.c.l.b16 %v427
    %v1020 = vunpack.c.h.b16 %v427
    %v1021 = vunpack.c.l.b16 %v428
    %v1022 = vunpack.c.h.b16 %v428
    %v1023 = vunpack.c.l.b16 %v429
    %v1024 = vunpack.c.h.b16 %v429
    %v1025 = vunpack.c.l.b16 %v430
    %v1026 = vunpack.c.h.b16 %v430
    %v1027 = vunpack.c.l.b16 %v431
    %v1028 = vunpack.c.h.b16 %v431
    %v1029 = vunpack.c.l.b16 %v432
    %v1030 = vunpack.c.h.b16 %v432
    %v1031 = vunpack.c.l.b16 %v433
    %v1032 = vunpack.c.h.b16 %v433
    %v1033 = vunpack.c.l.b16 %v434
    %v1034 = vunpack.c.h.b16 %v434
    %v1035 = vunpack.c.l.b16 %v435
    %v1036 = vunpack.c.h.b16 %v435
    %v1037 = vunpack.c.l.b16 %v436
    %v1038 = vunpack.c.h.b16 %v436
    %v1039 = vunpack.c.l.b16 %v437
    %v1040 = vunpack.c.h.b16 %v437
    %v1041 = vunpack.c.l.b16 %v438
    %v1042 = vunpack.c.h.b16 %v438
    %v1043 = vunpack.c.l.b16 %v439
    %v1044 = vunpack.c.h.b16 %v439
    %v1045 = vunpack.c.l.b16 %v440
    %v1046 = vunpack.c.h.b16 %v440
    %v1047 = vunpack.c.l.b16 %v441
    %v1048 = vunpack.c.h.b16 %v441
    %v1049 = vunpack.c.l.b16 %v442
    %v1050 = vunpack.c.h.b16 %v442
    %v1051 = vunpack.c.l.b16 %v443
    %v1052 = vunpack.c.h.b16 %v443
    %v1053 = vunpack.c.l.b16 %v444
    %v1054 = vunpack.c.h.b16 %v444
    %v1055 = vunpack.c.l.b16 %v445
    %v1056 = vunpack.c.h.b16 %v445
    %v1057 = vunpack.c.l.b16 %v446
    %v1058 = vunpack.c.h.b16 %v446
    %v1059 = vunpack.c.l.b16 %v447
    %v1060 = vunpack.c.h.b16 %v447
    %v1061 = vunpack.c.l.b16 %v448
    %v1062 = vunpack.c.h.b16 %v448
    %v1063 = vunpack.c.l.b16 %v449
    %v1064 = vunpack.c.h.b16 %v449
    %v1065 = vunpack.c.l.b16 %v450
    %v1066 = vunpack.c.h.b16 %v450
    %v1067 = vunpack.c.l.b16 %v451
    %v1068 = vunpack.c.h.b16 %v451
    %v1069 = vunpack.c.l.b16 %v452
    %v1070 = vunpack.c.h.b16 %v452
    %v1071 = vunpack.c.l.b16 %v453
    %v1072 = vunpack.c.h.b16 %v453
    %v1073 = vunpack.c.l.b16 %v454
    %v1074 = vunpack.c.h.b16 %v454
    %v1075 = vunpack.c.l.b16 %v455
    %v1076 = vunpack.c.h.b16 %v455
    %v1077 = vunpack.c.l.b16 %v456
    %v1078 = vunpack.c.h.b16 %v456
    %v1079 = vunpack.c.l.b16 %v457
    %v1080 = vunpack.c.h.b16 %v457
    %v1081 = vunpack.c.l.b16 %v458
    %v1082 = vunpack.c.h.b16 %v458
    %v1083 = vunpack.c.l.b16 %v459
    %v1084 = vunpack.c.h.b16 %v459
    %v1085 = vunpack.c.l.b16 %v460
    %v1086 = vunpack.c.h.b16 %v460
    %v1087 = vunpack.c.l.b16 %v461
    %v1088 = vunpack.c.h.b16 %v461
    %v1089 = vunpack.c.l.b16 %v462
    %v1090 = vunpack.c.h.b16 %v462
    %v1091 = vunpack.c.l.b16 %v463
    %v1092 = vunpack.c.h.b16 %v463
    %v1093 = vunpack.c.l.b16 %v464
    %v1094 = vunpack.c.h.b16 %v464
    %v1095 = vunpack.c.l.b16 %v465
    %v1096 = vunpack.c.h.b16 %v465
    %v1097 = vunpack.c.l.b16 %v466
    %v1098 = vunpack.c.h.b16 %v466
    %v1099 = vunpack.c.l.b16 %v467
    %v1100 = vunpack.c.h.b16 %v467
    %v1101 = vunpack.c.l.b16 %v468
    %v1102 = vunpack.c.h.b16 %v468
    %v1103 = vunpack.c.l.b16 %v469
    %v1104 = vunpack.c.h.b16 %v469
    %v1105 = vunpack.c.l.b16 %v470
    %v1106 = vunpack.c.h.b16 %v470
    %v1107 = vunpack.c.l.b16 %v471
    %v1108 = vunpack.c.h.b16 %v471
    %v1109 = vunpack.c.l.b16 %v472
    %v1110 = vunpack.c.h.b16 %v472
    %v1111 = vunpack.c.l.b16 %v473
    %v1112 = vunpack.c.h.b16 %v473
    %v1113 = vunpack.c.l.b16 %v474
    %v1114 = vunpack.c.h.b16 %v474
    %v1115 = vunpack.c.l.b16 %v475
    %v1116 = vunpack.c.h.b16 %v475
    %v1117 = vunpack.c.l.b16 %v476
    %v1118 = vunpack.c.h.b16 %v476
    %v1119 = vunpack.c.l.b16 %v477
    %v1120 = vunpack.c.h.b16 %v477
    %v1121 = vunpack.c.l.b16 %v478
    %v1122 = vunpack.c.h.b16 %v478
    %v1123 = vunpack.c.l.b16 %v479
    %v1124 = vunpack.c.h.b16 %v479
    %v1125 = vunpack.c.l.b16 %v480
    %v1126 = vunpack.c.h.b16 %v480
    %v1127 = vunpack.c.l.b16 %v481
    %v1128 = vunpack.c.h.b16 %v481
    %v1129 = vunpack.c.l.b16 %v482
    %v1130 = vunpack.c.h.b16 %v482
    %v1131 = vunpack.c.l.b16 %v483
    %v1132 = vunpack.c.h.b16 %v483
    %v1133 = vunpack.c.l.b16 %v484
    %v1134 = vunpack.c.h.b16 %v484
    %v1135 = vunpack.c.l.b16 %v485
    %v1136 = vunpack.c.h.b16 %v485
    %v1137 = vunpack.c.l.b16 %v486
    %v1138 = vunpack.c.h.b16 %v486
    %v1139 = vpack.c.b16 %v759, %v755
    %v1140 = vpack.c.b16 %v760, %v756
    %v1141 = vpack.c.b16 %v761, %v757
    %v1142 = vpack.c.b16 %v762, %v758
    %v1143 = vpack.c.b16 %v767, %v763
    %v1144 = vpack.c.b16 %v768, %v764
    %v1145 = vpack.c.b16 %v769, %v765
    %v1146 = vpack.c.b16 %v770, %v766
    %v1147 = vpack.c.b16 %v775, %v771
    %v1148 = vpack.c.b16 %v776, %v772
    %v1149 = vpack.c.b16 %v777, %v773
    %v1150 = vpack.c.b16 %v778, %v774
    %v1151 = vpack.c.b16 %v783, %v779
    %v1152 = vpack.c.b16 %v784, %v780
    %v1153 = vpack.c.b16 %v785, %v781
    %v1154 = vpack.c.b16 %v786, %v782
    %v1155 = vpack.c.b16 %v791, %v787
    %v1156 = vpack.c.b16 %v792, %v788
    %v1157 = vpack.c.b16 %v793, %v789
    %v1158 = vpack.c.b16 %v794, %v790
    %v1159 = vpack.c.b16 %v799, %v795
    %v1160 = vpack.c.b16 %v800, %v796
    %v1161 = vpack.c.b16 %v801, %v797
    %v1162 = vpack.c.b16 %v802, %v798
    %v1163 = vpack.c.b16 %v807, %v803
    %v1164 = vpack.c.b16 %v808, %v804
    %v1165 = vpack.c.b16 %v809, %v805
    %v1166 = vpack.c.b16 %v810, %v806
    %v1167 = vpack.c.b16 %v815, %v811
    %v1168 = vpack.c.b16 %v816, %v812
    %v1169 = vpack.c.b16 %v817, %v813
    %v1170 = vpack.c.b16 %v818, %v814
    %v1171 = vpack.c.b16 %v823, %v819
    %v1172 = vpack.c.b16 %v824, %v820
    %v1173 = vpack.c.b16 %v825, %v821
    %v1174 = vpack.c.b16 %v826, %v822
    %v1175 = vpack.c.b16 %v831, %v827
    %v1176 = vpack.c.b16 %v832, %v828
    %v1177 = vpack.c.b16 %v833, %v829
    %v1178 = vpack.c.b16 %v834, %v830
    %v1179 = vpack.c.b16 %v839, %v835
    %v1180 = vpack.c.b16 %v840, %v836
    %v1181 = vpack.c.b16 %v841, %v837
    %v1182 = vpack.c.b16 %v842, %v838
    %v1183 = vpack.c.b16 %v847, %v843
    %v1184 = vpack.c.b16 %v848, %v844
    %v1185 = vpack.c.b16 %v849, %v845
    %v1186 = vpack.c.b16 %v850, %v846
    %v1187 = vpack.c.b16 %v855, %v851
    %v1188 = vpack.c.b16 %v856, %v852
    %v1189 = vpack.c.b16 %v857, %v853
    %v1190 = vpack.c.b16 %v858, %v854
    %v1191 = vpack.c.b16 %v863, %v859
    %v1192 = vpack.c.b16 %v864, %v860
    %v1193 = vpack.c.b16 %v865, %v861
    %v1194 = vpack.c.b16 %v866, %v862
    %v1195 = vpack.c.b16 %v871, %v867
    %v1196 = vpack.c.b16 %v872, %v868
    %v1197 = vpack.c.b16 %v873, %v869
    %v1198 = vpack.c.b16 %v874, %v870
    %v1199 = vpack.c.b16 %v879, %v875
    %v1200 = vpack.c.b16 %v880, %v876
    %v1201 = vpack.c.b16 %v881, %v877
    %v1202 = vpack.c.b16 %v882, %v878
    %v1203 = vpack.c.b16 %v887, %v883
    %v1204 = vpack.c.b16 %v888, %v884
    %v1205 = vpack.c.b16 %v889, %v885
    %v1206 = vpack.c.b16 %v890, %v886
    %v1207 = vpack.c.b16 %v895, %v891
    %v1208 = vpack.c.b16 %v896, %v892
    %v1209 = vpack.c.b16 %v897, %v893
    %v1210 = vpack.c.b16 %v898, %v894
    %v1211 = vpack.c.b16 %v903, %v899
    %v1212 = vpack.c.b16 %v904, %v900
    %v1213 = vpack.c.b16 %v905, %v901
    %v1214 = vpack.c.b16 %v906, %v902
    %v1215 = vpack.c.b16 %v911, %v907
    %v1216 = vpack.c.b16 %v912, %v908
    %v1217 = vpack.c.b16 %v913, %v909
    %v1218 = vpack.c.b16 %v914, %v910
    %v1219 = vpack.c.b16 %v919, %v915
    %v1220 = vpack.c.b16 %v920, %v916
    %v1221 = vpack.c.b16 %v921, %v917
    %v1222 = vpack.c.b16 %v922, %v918
    %v1223 = vpack.c.b16 %v927, %v923
    %v1224 = vpack.c.b16 %v928, %v924
    %v1225 = vpack.c.b16 %v929, %v925
    %v1226 = vpack.c.b16 %v930, %v926
    %v1227 = vpack.c.b16 %v935, %v931
    %v1228 = vpack.c.b16 %v936, %v932
    %v1229 = vpack.c.b16 %v937, %v933
    %v1230 = vpack.c.b16 %v938, %v934
    %v1231 = vpack.c.b16 %v943, %v939
    %v1232 = vpack.c.b16 %v944, %v940
    %v1233 = vpack.c.b16 %v945, %v941
    %v1234 = vpack.c.b16 %v946, %v942
    %v1235 = vpack.c.b16 %v951, %v947
    %v1236 = vpack.c.b16 %v952, %v948
    %v1237 = vpack.c.b16 %v953, %v949
    %v1238 = vpack.c.b16 %v954, %v950
    %v1239 = vpack.c.b16 %v959, %v955
    %v1240 = vpack.c.b16 %v960, %v956
    %v1241 = vpack.c.b16 %v961, %v957
    %v1242 = vpack.c.b16 %v962, %v958
    %v1243 = vpack.c.b16 %v967, %v963
    %v1244 = vpack.c.b16 %v968, %v964
    %v1245 = vpack.c.b16 %v969, %v965
    %v1246 = vpack.c.b16 %v970, %v966
    %v1247 = vpack.c.b16 %v975, %v971
    %v1248 = vpack.c.b16 %v976, %v972
    %v1249 = vpack.c.b16 %v977, %v973
    %v1250 = vpack.c.b16 %v978, %v974
    %v1251 = vpack.c.b16 %v983, %v979
    %v1252 = vpack.c.b16 %v984, %v980
    %v1253 = vpack.c.b16 %v985, %v981
    %v1254 = vpack.c.b16 %v986, %v982
    %v1255 = vpack.c.b16 %v991, %v987
    %v1256 = vpack.c.b16 %v992, %v988
    %v1257 = vpack.c.b16 %v993, %v989
    %v1258 = vpack.c.b16 %v994, %v990
    %v1259 = vpack.c.b16 %v999, %v995
    %v1260 = vpack.c.b16 %v1000, %v996
    %v1261 = vpack.c.b16 %v1001, %v997
    %v1262 = vpack.c.b16 %v1002, %v998
    %v1263 = vpack.c.b16 %v1007, %v1003
    %v1264 = vpack.c.b16 %v1008, %v1004
    %v1265 = vpack.c.b16 %v1009, %v1005
    %v1266 = vpack.c.b16 %v1010, %v1006
    %v1267 = vpack.c.b16 %v1015, %v1011
    %v1268 = vpack.c.b16 %v1016, %v1012
    %v1269 = vpack.c.b16 %v1017, %v1013
    %v1270 = vpack.c.b16 %v1018, %v1014
    %v1271 = vpack.c.b16 %v1023, %v1019
    %v1272 = vpack.c.b16 %v1024, %v1020
    %v1273 = vpack.c.b16 %v1025, %v1021
    %v1274 = vpack.c.b16 %v1026, %v1022
    %v1275 = vpack.c.b16 %v1031, %v1027
    %v1276 = vpack.c.b16 %v1032, %v1028
    %v1277 = vpack.c.b16 %v1033, %v1029
    %v1278 = vpack.c.b16 %v1034, %v1030
    %v1279 = vpack.c.b16 %v1039, %v1035
    %v1280 = vpack.c.b16 %v1040, %v1036
    %v1281 = vpack.c.b16 %v1041, %v1037
    %v1282 = vpack.c.b16 %v1042, %v1038
    %v1283 = vpack.c.b16 %v1047, %v1043
    %v1284 = vpack.c.b16 %v1048, %v1044
    %v1285 = vpack.c.b16 %v1049, %v1045
    %v1286 = vpack.c.b16 %v1050, %v1046
    %v1287 = vpack.c.b16 %v1055, %v1051
    %v1288 = vpack.c.b16 %v1056, %v1052
    %v1289 = vpack.c.b16 %v1057, %v1053
    %v1290 = vpack.c.b16 %v1058, %v1054
    %v1291 = vpack.c.b16 %v1063, %v1059
    %v1292 = vpack.c.b16 %v1064, %v1060
    %v1293 = vpack.c.b16 %v1065, %v1061
    %v1294 = vpack.c.b16 %v1066, %v1062
    %v1295 = vpack.c.b16 %v1071, %v1067
    %v1296 = vpack.c.b16 %v1072, %v1068
    %v1297 = vpack.c.b16 %v1073, %v1069
    %v1298 = vpack.c.b16 %v1074, %v1070
    %v1299 = vpack.c.b16 %v1079, %v1075
    %v1300 = vpack.c.b16 %v1080, %v1076
    %v1301 = vpack.c.b16 %v1081, %v1077
    %v1302 = vpack.c.b16 %v1082, %v1078
    %v1303 = vpack.c.b16 %v1087, %v1083
    %v1304 = vpack.c.b16 %v1088, %v1084
    %v1305 = vpack.c.b16 %v1089, %v1085
    %v1306 = vpack.c.b16 %v1090, %v1086
    %v1307 = vpack.c.b16 %v1095, %v1091
    %v1308 = vpack.c.b16 %v1096, %v1092
    %v1309 = vpack.c.b16 %v1097, %v1093
    %v1310 = vpack.c.b16 %v1098, %v1094
    %v1311 = vpack.c.b16 %v1103, %v1099
    %v1312 = vpack.c.b16 %v1104, %v1100
    %v1313 = vpack.c.b16 %v1105, %v1101
    %v1314 = vpack.c.b16 %v1106, %v1102
    %v1315 = vpack.c.b16 %v1111, %v1107
    %v1316 = vpack.c.b16 %v1112, %v1108
    %v1317 = vpack.c.b16 %v1113, %v1109
    %v1318 = vpack.c.b16 %v1114, %v1110
    %v1319 = vpack.c.b16 %v1119, %v1115
    %v1320 = vpack.c.b16 %v1120, %v1116
    %v1321 = vpack.c.b16 %v1121, %v1117
    %v1322 = vpack.c.b16 %v1122, %v1118
    %v1323 = vpack.c.b16 %v1127, %v1123
    %v1324 = vpack.c.b16 %v1128, %v1124
    %v1325 = vpack.c.b16 %v1129, %v1125
    %v1326 = vpack.c.b16 %v1130, %v1126
    %v1327 = vpack.c.b16 %v1135, %v1131
    %v1328 = vpack.c.b16 %v1136, %v1132
    %v1329 = vpack.c.b16 %v1137, %v1133
    %v1330 = vpack.c.b16 %v1138, %v1134
    %1523 = vmatprep.subr.bf16.mxu0 %v1140
    %1524 = vmatpush1.bf16.msra.mxu0 %v1139
    %1525 = vmatprep.subr.bf16.mxu0 %v1144
    %1526 = vmatpush1.bf16.msra.mxu0 %v1143
    %1527 = vmatprep.subr.bf16.mxu0 %v1148
    %1528 = vmatpush1.bf16.msra.mxu0 %v1147
    %1529 = vmatprep.subr.bf16.mxu0 %v1152
    %1530 = vmatpush1.bf16.msra.mxu0 %v1151
    %1531 = vmatprep.subr.bf16.mxu0 %v1156
    %1532 = vmatpush1.bf16.msra.mxu0 %v1155
    %1533 = vmatprep.subr.bf16.mxu0 %v1160
    %1534 = vmatpush1.bf16.msra.mxu0 %v1159
    %1535 = vmatprep.subr.bf16.mxu0 %v1164
    %1536 = vmatpush1.bf16.msra.mxu0 %v1163
    %1537 = vmatprep.subr.bf16.mxu0 %v1168
    %1538 = vmatpush1.bf16.msra.mxu0 %v1167
    %1539 = vmatprep.subr.bf16.mxu0 %v1172
    %1540 = vmatpush1.bf16.msra.mxu0 %v1171
    %1541 = vmatprep.subr.bf16.mxu0 %v1176
    %1542 = vmatpush1.bf16.msra.mxu0 %v1175
    %1543 = vmatprep.subr.bf16.mxu0 %v1180
    %1544 = vmatpush1.bf16.msra.mxu0 %v1179
    %1545 = vmatprep.subr.bf16.mxu0 %v1184
    %1546 = vmatpush1.bf16.msra.mxu0 %v1183
    %1547 = vmatprep.subr.bf16.mxu0 %v1188
    %1548 = vmatpush1.bf16.msra.mxu0 %v1187
    %1549 = vmatprep.subr.bf16.mxu0 %v1192
    %1550 = vmatpush1.bf16.msra.mxu0 %v1191
    %1551 = vmatprep.subr.bf16.mxu0 %v1196
    %1552 = vmatpush1.bf16.msra.mxu0 %v1195
    %1553 = vmatprep.subr.bf16.mxu0 %v1200
    %1554 = vmatpush1.bf16.msra.mxu0 %v1199
    %1555 = vmatprep.mubr.bf16.mxu0 %v547
    %1556 = vmatmul.mubr.bf16.gmra.mrb[0].mxu0 %v533
    %v1557 = vpop.f32.mrb[0].mxu0
    %v1558 = vadd.f32 0.0, %v1557
    %v1559 = vpop.f32.mrb[0].mxu0
    %v1560 = vadd.f32 0.0, %v1559
    %v1561 = vpop.f32.mrb[0].mxu0
    %v1562 = vpop.f32.mrb[0].mxu0
    %1563 = vdwg.mxu0
    %1564 = vmatprep.subr.bf16.mxu0 %v1204
    %1565 = vmatpush1.bf16.msra.mxu0 %v1203
    %1566 = vmatprep.subr.bf16.mxu0 %v1208
    %1567 = vmatpush1.bf16.msra.mxu0 %v1207
    %1568 = vmatprep.subr.bf16.mxu0 %v1212
    %1569 = vmatpush1.bf16.msra.mxu0 %v1211
    %1570 = vmatprep.subr.bf16.mxu0 %v1216
    %1571 = vmatpush1.bf16.msra.mxu0 %v1215
    %1572 = vmatprep.subr.bf16.mxu0 %v1220
    %1573 = vmatpush1.bf16.msra.mxu0 %v1219
    %1574 = vmatprep.subr.bf16.mxu0 %v1224
    %1575 = vmatpush1.bf16.msra.mxu0 %v1223
    %1576 = vmatprep.subr.bf16.mxu0 %v1228
    %1577 = vmatpush1.bf16.msra.mxu0 %v1227
    %1578 = vmatprep.subr.bf16.mxu0 %v1232
    %1579 = vmatpush1.bf16.msra.mxu0 %v1231
    %1580 = vmatprep.subr.bf16.mxu0 %v1236
    %1581 = vmatpush1.bf16.msra.mxu0 %v1235
    %1582 = vmatprep.subr.bf16.mxu0 %v1240
    %1583 = vmatpush1.bf16.msra.mxu0 %v1239
    %1584 = vmatprep.subr.bf16.mxu0 %v1244
    %1585 = vmatpush1.bf16.msra.mxu0 %v1243
    %1586 = vmatprep.subr.bf16.mxu0 %v1248
    %1587 = vmatpush1.bf16.msra.mxu0 %v1247
    %1588 = vmatprep.subr.bf16.mxu0 %v1252
    %1589 = vmatpush1.bf16.msra.mxu0 %v1251
    %1590 = vmatprep.subr.bf16.mxu0 %v1256
    %1591 = vmatpush1.bf16.msra.mxu0 %v1255
    %1592 = vmatprep.subr.bf16.mxu0 %v1260
    %1593 = vmatpush1.bf16.msra.mxu0 %v1259
    %1594 = vmatprep.subr.bf16.mxu0 %v1264
    %1595 = vmatpush1.bf16.msra.mxu0 %v1263
    %1596 = vmatprep.mubr.bf16.mxu0 %v556
    %1597 = vmatmul.mubr.bf16.gmra.mrb[0].mxu0 %v555
    %v1598 = vpop.f32.mrb[0].mxu0
    %v1599 = vadd.f32 %v1558, %v1598
    %v1600 = vpop.f32.mrb[0].mxu0
    %v1601 = vadd.f32 %v1560, %v1600
    %v1602 = vpop.f32.mrb[0].mxu0
    %v1603 = vpop.f32.mrb[0].mxu0
    %1604 = vdwg.mxu0
    %1605 = vmatprep.subr.bf16.mxu0 %v1268
    %1606 = vmatpush1.bf16.msra.mxu0 %v1267
    %1607 = vmatprep.subr.bf16.mxu0 %v1272
    %1608 = vmatpush1.bf16.msra.mxu0 %v1271
    %1609 = vmatprep.subr.bf16.mxu0 %v1276
    %1610 = vmatpush1.bf16.msra.mxu0 %v1275
    %1611 = vmatprep.subr.bf16.mxu0 %v1280
    %1612 = vmatpush1.bf16.msra.mxu0 %v1279
    %1613 = vmatprep.subr.bf16.mxu0 %v1284
    %1614 = vmatpush1.bf16.msra.mxu0 %v1283
    %1615 = vmatprep.subr.bf16.mxu0 %v1288
    %1616 = vmatpush1.bf16.msra.mxu0 %v1287
    %1617 = vmatprep.subr.bf16.mxu0 %v1292
    %1618 = vmatpush1.bf16.msra.mxu0 %v1291
    %1619 = vmatprep.subr.bf16.mxu0 %v1296
    %1620 = vmatpush1.bf16.msra.mxu0 %v1295
    %1621 = vmatprep.subr.bf16.mxu0 %v1300
    %1622 = vmatpush1.bf16.msra.mxu0 %v1299
    %1623 = vmatprep.subr.bf16.mxu0 %v1304
    %1624 = vmatpush1.bf16.msra.mxu0 %v1303
    %1625 = vmatprep.subr.bf16.mxu0 %v1308
    %1626 = vmatpush1.bf16.msra.mxu0 %v1307
    %1627 = vmatprep.subr.bf16.mxu0 %v1312
    %1628 = vmatpush1.bf16.msra.mxu0 %v1311
    %1629 = vmatprep.subr.bf16.mxu0 %v1316
    %1630 = vmatpush1.bf16.msra.mxu0 %v1315
    %1631 = vmatprep.subr.bf16.mxu0 %v1320
    %1632 = vmatpush1.bf16.msra.mxu0 %v1319
    %1633 = vmatprep.subr.bf16.mxu0 %v1324
    %1634 = vmatpush1.bf16.msra.mxu0 %v1323
    %1635 = vmatprep.subr.bf16.mxu0 %v1328
    %1636 = vmatpush1.bf16.msra.mxu0 %v1327
    %1637 = vmatprep.mubr.bf16.mxu0 %v554
    %1638 = vmatmul.mubr.bf16.gmra.mrb[0].mxu0 %v540
    %v1639 = vpop.f32.mrb[0].mxu0
    %v1640 = vadd.f32 %v1599, %v1639
    %v1641 = vpop.f32.mrb[0].mxu0
    %v1642 = vadd.f32 %v1601, %v1641
    %v1643 = vpop.f32.mrb[0].mxu0
    %v1644 = vpop.f32.mrb[0].mxu0
    %1645 = vdwg.mxu0
    %1646 = vmatprep.subr.bf16.mxu0 %v1142
    %1647 = vmatpush1.bf16.msra.mxu0 %v1141
    %1648 = vmatprep.subr.bf16.mxu0 %v1146
    %1649 = vmatpush1.bf16.msra.mxu0 %v1145
    %1650 = vmatprep.subr.bf16.mxu0 %v1150
    %1651 = vmatpush1.bf16.msra.mxu0 %v1149
    %1652 = vmatprep.subr.bf16.mxu0 %v1154
    %1653 = vmatpush1.bf16.msra.mxu0 %v1153
    %1654 = vmatprep.subr.bf16.mxu0 %v1158
    %1655 = vmatpush1.bf16.msra.mxu0 %v1157
    %1656 = vmatprep.subr.bf16.mxu0 %v1162
    %1657 = vmatpush1.bf16.msra.mxu0 %v1161
    %1658 = vmatprep.subr.bf16.mxu0 %v1166
    %1659 = vmatpush1.bf16.msra.mxu0 %v1165
    %1660 = vmatprep.subr.bf16.mxu0 %v1170
    %1661 = vmatpush1.bf16.msra.mxu0 %v1169
    %1662 = vmatprep.subr.bf16.mxu0 %v1174
    %1663 = vmatpush1.bf16.msra.mxu0 %v1173
    %1664 = vmatprep.subr.bf16.mxu0 %v1178
    %1665 = vmatpush1.bf16.msra.mxu0 %v1177
    %1666 = vmatprep.subr.bf16.mxu0 %v1182
    %1667 = vmatpush1.bf16.msra.mxu0 %v1181
    %1668 = vmatprep.subr.bf16.mxu0 %v1186
    %1669 = vmatpush1.bf16.msra.mxu0 %v1185
    %1670 = vmatprep.subr.bf16.mxu0 %v1190
    %1671 = vmatpush1.bf16.msra.mxu0 %v1189
    %1672 = vmatprep.subr.bf16.mxu0 %v1194
    %1673 = vmatpush1.bf16.msra.mxu0 %v1193
    %1674 = vmatprep.subr.bf16.mxu0 %v1198
    %1675 = vmatpush1.bf16.msra.mxu0 %v1197
    %1676 = vmatprep.subr.bf16.mxu0 %v1202
    %1677 = vmatpush1.bf16.msra.mxu0 %v1201
    %1678 = vmatprep.mubr.bf16.mxu0 %v547
    %1679 = vmatmul.mubr.bf16.gmra.mrb[0].mxu0 %v533
    %v1680 = vpop.f32.mrb[0].mxu0
    %v1681 = vadd.f32 0.0, %v1680
    %v1682 = vpop.f32.mrb[0].mxu0
    %v1683 = vadd.f32 0.0, %v1682
    %v1684 = vpop.f32.mrb[0].mxu0
    %v1685 = vpop.f32.mrb[0].mxu0
    %1686 = vdwg.mxu0
    %1687 = vmatprep.subr.bf16.mxu0 %v1206
    %1688 = vmatpush1.bf16.msra.mxu0 %v1205
    %1689 = vmatprep.subr.bf16.mxu0 %v1210
    %1690 = vmatpush1.bf16.msra.mxu0 %v1209
    %1691 = vmatprep.subr.bf16.mxu0 %v1214
    %1692 = vmatpush1.bf16.msra.mxu0 %v1213
    %1693 = vmatprep.subr.bf16.mxu0 %v1218
    %1694 = vmatpush1.bf16.msra.mxu0 %v1217
    %1695 = vmatprep.subr.bf16.mxu0 %v1222
    %1696 = vmatpush1.bf16.msra.mxu0 %v1221
    %1697 = vmatprep.subr.bf16.mxu0 %v1226
    %1698 = vmatpush1.bf16.msra.mxu0 %v1225
    %1699 = vmatprep.subr.bf16.mxu0 %v1230
    %1700 = vmatpush1.bf16.msra.mxu0 %v1229
    %1701 = vmatprep.subr.bf16.mxu0 %v1234
    %1702 = vmatpush1.bf16.msra.mxu0 %v1233
    %1703 = vmatprep.subr.bf16.mxu0 %v1238
    %1704 = vmatpush1.bf16.msra.mxu0 %v1237
    %1705 = vmatprep.subr.bf16.mxu0 %v1242
    %1706 = vmatpush1.bf16.msra.mxu0 %v1241
    %1707 = vmatprep.subr.bf16.mxu0 %v1246
    %1708 = vmatpush1.bf16.msra.mxu0 %v1245
    %1709 = vmatprep.subr.bf16.mxu0 %v1250
    %1710 = vmatpush1.bf16.msra.mxu0 %v1249
    %1711 = vmatprep.subr.bf16.mxu0 %v1254
    %1712 = vmatpush1.bf16.msra.mxu0 %v1253
    %1713 = vmatprep.subr.bf16.mxu0 %v1258
    %1714 = vmatpush1.bf16.msra.mxu0 %v1257
    %1715 = vmatprep.subr.bf16.mxu0 %v1262
    %1716 = vmatpush1.bf16.msra.mxu0 %v1261
    %1717 = vmatprep.subr.bf16.mxu0 %v1266
    %1718 = vmatpush1.bf16.msra.mxu0 %v1265
    %1719 = vmatprep.mubr.bf16.mxu0 %v556
    %1720 = vmatmul.mubr.bf16.gmra.mrb[0].mxu0 %v555
    %v1721 = vpop.f32.mrb[0].mxu0
    %v1722 = vadd.f32 %v1681, %v1721
    %v1723 = vpop.f32.mrb[0].mxu0
    %v1724 = vadd.f32 %v1683, %v1723
    %v1725 = vpop.f32.mrb[0].mxu0
    %v1726 = vpop.f32.mrb[0].mxu0
    %1727 = vdwg.mxu0
    %1728 = vmatprep.subr.bf16.mxu0 %v1270
    %1729 = vmatpush1.bf16.msra.mxu0 %v1269
    %1730 = vmatprep.subr.bf16.mxu0 %v1274
    %1731 = vmatpush1.bf16.msra.mxu0 %v1273
    %1732 = vmatprep.subr.bf16.mxu0 %v1278
    %1733 = vmatpush1.bf16.msra.mxu0 %v1277
    %1734 = vmatprep.subr.bf16.mxu0 %v1282
    %1735 = vmatpush1.bf16.msra.mxu0 %v1281
    %1736 = vmatprep.subr.bf16.mxu0 %v1286
    %1737 = vmatpush1.bf16.msra.mxu0 %v1285
    %1738 = vmatprep.subr.bf16.mxu0 %v1290
    %1739 = vmatpush1.bf16.msra.mxu0 %v1289
    %1740 = vmatprep.subr.bf16.mxu0 %v1294
    %1741 = vmatpush1.bf16.msra.mxu0 %v1293
    %1742 = vmatprep.subr.bf16.mxu0 %v1298
    %1743 = vmatpush1.bf16.msra.mxu0 %v1297
    %1744 = vmatprep.subr.bf16.mxu0 %v1302
    %1745 = vmatpush1.bf16.msra.mxu0 %v1301
    %1746 = vmatprep.subr.bf16.mxu0 %v1306
    %1747 = vmatpush1.bf16.msra.mxu0 %v1305
    %1748 = vmatprep.subr.bf16.mxu0 %v1310
    %1749 = vmatpush1.bf16.msra.mxu0 %v1309
    %1750 = vmatprep.subr.bf16.mxu0 %v1314
    %1751 = vmatpush1.bf16.msra.mxu0 %v1313
    %1752 = vmatprep.subr.bf16.mxu0 %v1318
    %1753 = vmatpush1.bf16.msra.mxu0 %v1317
    %1754 = vmatprep.subr.bf16.mxu0 %v1322
    %1755 = vmatpush1.bf16.msra.mxu0 %v1321
    %1756 = vmatprep.subr.bf16.mxu0 %v1326
    %1757 = vmatpush1.bf16.msra.mxu0 %v1325
    %1758 = vmatprep.subr.bf16.mxu0 %v1330
    %1759 = vmatpush1.bf16.msra.mxu0 %v1329
    %1760 = vmatprep.mubr.bf16.mxu0 %v554
    %1761 = vmatmul.mubr.bf16.gmra.mrb[0].mxu0 %v540
    %v1762 = vpop.f32.mrb[0].mxu0
    %v1763 = vadd.f32 %v1722, %v1762
    %v1764 = vpop.f32.mrb[0].mxu0
    %v1765 = vadd.f32 %v1724, %v1764
    %v1766 = vpop.f32.mrb[0].mxu0
    %v1767 = vpop.f32.mrb[0].mxu0
    %1768 = vdwg.mxu0
    %v1773 = vcombine.low %v95, %v96
    %v1774 = vcombine.high %v95, %v96
    %v1775 = vcombine.low %v97, %v98
    %v1776 = vcombine.high %v97, %v98
    %v1778 = vunpack.c.l.s4 1966171168
    %v1779 = vunpack.c.0.s8 %v1778
    %v1780 = vlaneseq
    %v1781 = vshrl.u32 %v1780, 7
    %v1782 = vsub.s32 %v1779, %v1781
    %v1783 = vrot.slane %v1773, %v1782
    %v1785 = vunpack.c.l.s4 1966171168
    %v1786 = vunpack.c.0.s8 %v1785
    %v1787 = vlaneseq
    %v1788 = vshrl.u32 %v1787, 7
    %v1789 = vsub.s32 %v1786, %v1788
    %v1790 = vrot.slane %v1774, %v1789
    %v1792 = vunpack.c.l.s4 1966171168
    %v1793 = vunpack.c.0.s8 %v1792
    %v1794 = vlaneseq
    %v1795 = vshrl.u32 %v1794, 7
    %v1796 = vsub.s32 %v1793, %v1795
    %v1797 = vrot.slane %v1775, %v1796
    %v1799 = vunpack.c.l.s4 1966171168
    %v1800 = vunpack.c.0.s8 %v1799
    %v1801 = vlaneseq
    %v1802 = vshrl.u32 %v1801, 7
    %v1803 = vsub.s32 %v1800, %v1802
    %v1804 = vrot.slane %v1776, %v1803
    %v1805 = vcombine.low %v1783, %v1797
    %v1806 = vcombine.high %v1783, %v1797
    %v1807 = vcombine.low %v1790, %v1804
    %v1808 = vcombine.high %v1790, %v1804
    %v1810 = vunpack.c.l.s4 1966171168
    %v1811 = vunpack.c.0.s8 %v1810
    %v1812 = vlaneseq
    %v1813 = vshrl.u32 %v1812, 7
    %v1814 = vsub.s32 %v1811, %v1813
    %v1815 = vrot.slane %v1805, %v1814
    %v1817 = vunpack.c.l.s4 1966171168
    %v1818 = vunpack.c.0.s8 %v1817
    %v1819 = vlaneseq
    %v1820 = vshrl.u32 %v1819, 7
    %v1821 = vsub.s32 %v1818, %v1820
    %v1822 = vrot.slane %v1807, %v1821
    %v1824 = vunpack.c.l.s4 1966171168
    %v1825 = vunpack.c.0.s8 %v1824
    %v1826 = vlaneseq
    %v1827 = vshrl.u32 %v1826, 7
    %v1828 = vsub.s32 %v1825, %v1827
    %v1829 = vrot.slane %v1806, %v1828
    %v1831 = vunpack.c.l.s4 1966171168
    %v1832 = vunpack.c.0.s8 %v1831
    %v1833 = vlaneseq
    %v1834 = vshrl.u32 %v1833, 7
    %v1835 = vsub.s32 %v1832, %v1834
    %v1836 = vrot.slane %v1808, %v1835
    %v1837 = vcombine.high %v1815, %v1815
    %v1838 = vcombine.high %v1829, %v1829
    %v2037 = vunpack.c.l.b16 %v103
    %v2038 = vunpack.c.h.b16 %v103
    %v2039 = vunpack.c.l.b16 %v104
    %v2040 = vunpack.c.h.b16 %v104
    %v2041 = vunpack.c.l.b16 %v105
    %v2042 = vunpack.c.h.b16 %v105
    %v2043 = vunpack.c.l.b16 %v106
    %v2044 = vunpack.c.h.b16 %v106
    %v2045 = vunpack.c.l.b16 %v107
    %v2046 = vunpack.c.h.b16 %v107
    %v2047 = vunpack.c.l.b16 %v108
    %v2048 = vunpack.c.h.b16 %v108
    %v2049 = vunpack.c.l.b16 %v109
    %v2050 = vunpack.c.h.b16 %v109
    %v2051 = vunpack.c.l.b16 %v110
    %v2052 = vunpack.c.h.b16 %v110
    %v2053 = vunpack.c.l.b16 %v111
    %v2054 = vunpack.c.h.b16 %v111
    %v2055 = vunpack.c.l.b16 %v112
    %v2056 = vunpack.c.h.b16 %v112
    %v2057 = vunpack.c.l.b16 %v113
    %v2058 = vunpack.c.h.b16 %v113
    %v2059 = vunpack.c.l.b16 %v114
    %v2060 = vunpack.c.h.b16 %v114
    %v2061 = vunpack.c.l.b16 %v115
    %v2062 = vunpack.c.h.b16 %v115
    %v2063 = vunpack.c.l.b16 %v116
    %v2064 = vunpack.c.h.b16 %v116
    %v2065 = vunpack.c.l.b16 %v117
    %v2066 = vunpack.c.h.b16 %v117
    %v2067 = vunpack.c.l.b16 %v118
    %v2068 = vunpack.c.h.b16 %v118
    %v2069 = vunpack.c.l.b16 %v119
    %v2070 = vunpack.c.h.b16 %v119
    %v2071 = vunpack.c.l.b16 %v120
    %v2072 = vunpack.c.h.b16 %v120
    %v2073 = vunpack.c.l.b16 %v121
    %v2074 = vunpack.c.h.b16 %v121
    %v2075 = vunpack.c.l.b16 %v122
    %v2076 = vunpack.c.h.b16 %v122
    %v2077 = vunpack.c.l.b16 %v123
    %v2078 = vunpack.c.h.b16 %v123
    %v2079 = vunpack.c.l.b16 %v124
    %v2080 = vunpack.c.h.b16 %v124
    %v2081 = vunpack.c.l.b16 %v125
    %v2082 = vunpack.c.h.b16 %v125
    %v2083 = vunpack.c.l.b16 %v126
    %v2084 = vunpack.c.h.b16 %v126
    %v2085 = vunpack.c.l.b16 %v127
    %v2086 = vunpack.c.h.b16 %v127
    %v2087 = vunpack.c.l.b16 %v128
    %v2088 = vunpack.c.h.b16 %v128
    %v2089 = vunpack.c.l.b16 %v129
    %v2090 = vunpack.c.h.b16 %v129
    %v2091 = vunpack.c.l.b16 %v130
    %v2092 = vunpack.c.h.b16 %v130
    %v2093 = vunpack.c.l.b16 %v131
    %v2094 = vunpack.c.h.b16 %v131
    %v2095 = vunpack.c.l.b16 %v132
    %v2096 = vunpack.c.h.b16 %v132
    %v2097 = vunpack.c.l.b16 %v133
    %v2098 = vunpack.c.h.b16 %v133
    %v2099 = vunpack.c.l.b16 %v134
    %v2100 = vunpack.c.h.b16 %v134
    %v2101 = vunpack.c.l.b16 %v135
    %v2102 = vunpack.c.h.b16 %v135
    %v2103 = vunpack.c.l.b16 %v136
    %v2104 = vunpack.c.h.b16 %v136
    %v2105 = vunpack.c.l.b16 %v137
    %v2106 = vunpack.c.h.b16 %v137
    %v2107 = vunpack.c.l.b16 %v138
    %v2108 = vunpack.c.h.b16 %v138
    %v2109 = vunpack.c.l.b16 %v139
    %v2110 = vunpack.c.h.b16 %v139
    %v2111 = vunpack.c.l.b16 %v140
    %v2112 = vunpack.c.h.b16 %v140
    %v2113 = vunpack.c.l.b16 %v141
    %v2114 = vunpack.c.h.b16 %v141
    %v2115 = vunpack.c.l.b16 %v142
    %v2116 = vunpack.c.h.b16 %v142
    %v2117 = vunpack.c.l.b16 %v143
    %v2118 = vunpack.c.h.b16 %v143
    %v2119 = vunpack.c.l.b16 %v144
    %v2120 = vunpack.c.h.b16 %v144
    %v2121 = vunpack.c.l.b16 %v145
    %v2122 = vunpack.c.h.b16 %v145
    %v2123 = vunpack.c.l.b16 %v146
    %v2124 = vunpack.c.h.b16 %v146
    %v2125 = vunpack.c.l.b16 %v147
    %v2126 = vunpack.c.h.b16 %v147
    %v2127 = vunpack.c.l.b16 %v148
    %v2128 = vunpack.c.h.b16 %v148
    %v2129 = vunpack.c.l.b16 %v149
    %v2130 = vunpack.c.h.b16 %v149
    %v2131 = vunpack.c.l.b16 %v150
    %v2132 = vunpack.c.h.b16 %v150
    %v2133 = vunpack.c.l.b16 %v151
    %v2134 = vunpack.c.h.b16 %v151
    %v2135 = vunpack.c.l.b16 %v152
    %v2136 = vunpack.c.h.b16 %v152
    %v2137 = vunpack.c.l.b16 %v153
    %v2138 = vunpack.c.h.b16 %v153
    %v2139 = vunpack.c.l.b16 %v154
    %v2140 = vunpack.c.h.b16 %v154
    %v2141 = vunpack.c.l.b16 %v155
    %v2142 = vunpack.c.h.b16 %v155
    %v2143 = vunpack.c.l.b16 %v156
    %v2144 = vunpack.c.h.b16 %v156
    %v2145 = vunpack.c.l.b16 %v157
    %v2146 = vunpack.c.h.b16 %v157
    %v2147 = vunpack.c.l.b16 %v158
    %v2148 = vunpack.c.h.b16 %v158
    %v2149 = vunpack.c.l.b16 %v159
    %v2150 = vunpack.c.h.b16 %v159
    %v2151 = vunpack.c.l.b16 %v160
    %v2152 = vunpack.c.h.b16 %v160
    %v2153 = vunpack.c.l.b16 %v161
    %v2154 = vunpack.c.h.b16 %v161
    %v2155 = vunpack.c.l.b16 %v162
    %v2156 = vunpack.c.h.b16 %v162
    %v2157 = vunpack.c.l.b16 %v163
    %v2158 = vunpack.c.h.b16 %v163
    %v2159 = vunpack.c.l.b16 %v164
    %v2160 = vunpack.c.h.b16 %v164
    %v2161 = vunpack.c.l.b16 %v165
    %v2162 = vunpack.c.h.b16 %v165
    %v2163 = vunpack.c.l.b16 %v166
    %v2164 = vunpack.c.h.b16 %v166
    %v2165 = vunpack.c.l.b16 %v167
    %v2166 = vunpack.c.h.b16 %v167
    %v2167 = vunpack.c.l.b16 %v168
    %v2168 = vunpack.c.h.b16 %v168
    %v2169 = vunpack.c.l.b16 %v169
    %v2170 = vunpack.c.h.b16 %v169
    %v2171 = vunpack.c.l.b16 %v170
    %v2172 = vunpack.c.h.b16 %v170
    %v2173 = vunpack.c.l.b16 %v171
    %v2174 = vunpack.c.h.b16 %v171
    %v2175 = vunpack.c.l.b16 %v172
    %v2176 = vunpack.c.h.b16 %v172
    %v2177 = vunpack.c.l.b16 %v173
    %v2178 = vunpack.c.h.b16 %v173
    %v2179 = vunpack.c.l.b16 %v174
    %v2180 = vunpack.c.h.b16 %v174
    %v2181 = vunpack.c.l.b16 %v175
    %v2182 = vunpack.c.h.b16 %v175
    %v2183 = vunpack.c.l.b16 %v176
    %v2184 = vunpack.c.h.b16 %v176
    %v2185 = vunpack.c.l.b16 %v177
    %v2186 = vunpack.c.h.b16 %v177
    %v2187 = vunpack.c.l.b16 %v178
    %v2188 = vunpack.c.h.b16 %v178
    %v2189 = vunpack.c.l.b16 %v179
    %v2190 = vunpack.c.h.b16 %v179
    %v2191 = vunpack.c.l.b16 %v180
    %v2192 = vunpack.c.h.b16 %v180
    %v2193 = vunpack.c.l.b16 %v181
    %v2194 = vunpack.c.h.b16 %v181
    %v2195 = vunpack.c.l.b16 %v182
    %v2196 = vunpack.c.h.b16 %v182
    %v2197 = vunpack.c.l.b16 %v183
    %v2198 = vunpack.c.h.b16 %v183
    %v2199 = vunpack.c.l.b16 %v184
    %v2200 = vunpack.c.h.b16 %v184
    %v2201 = vunpack.c.l.b16 %v185
    %v2202 = vunpack.c.h.b16 %v185
    %v2203 = vunpack.c.l.b16 %v186
    %v2204 = vunpack.c.h.b16 %v186
    %v2205 = vunpack.c.l.b16 %v187
    %v2206 = vunpack.c.h.b16 %v187
    %v2207 = vunpack.c.l.b16 %v188
    %v2208 = vunpack.c.h.b16 %v188
    %v2209 = vunpack.c.l.b16 %v189
    %v2210 = vunpack.c.h.b16 %v189
    %v2211 = vunpack.c.l.b16 %v190
    %v2212 = vunpack.c.h.b16 %v190
    %v2213 = vunpack.c.l.b16 %v191
    %v2214 = vunpack.c.h.b16 %v191
    %v2215 = vunpack.c.l.b16 %v192
    %v2216 = vunpack.c.h.b16 %v192
    %v2217 = vunpack.c.l.b16 %v193
    %v2218 = vunpack.c.h.b16 %v193
    %v2219 = vunpack.c.l.b16 %v194
    %v2220 = vunpack.c.h.b16 %v194
    %v2221 = vunpack.c.l.b16 %v195
    %v2222 = vunpack.c.h.b16 %v195
    %v2223 = vunpack.c.l.b16 %v196
    %v2224 = vunpack.c.h.b16 %v196
    %v2225 = vunpack.c.l.b16 %v197
    %v2226 = vunpack.c.h.b16 %v197
    %v2227 = vunpack.c.l.b16 %v198
    %v2228 = vunpack.c.h.b16 %v198
    %v2229 = vunpack.c.l.b16 %v199
    %v2230 = vunpack.c.h.b16 %v199
    %v2231 = vunpack.c.l.b16 %v200
    %v2232 = vunpack.c.h.b16 %v200
    %v2233 = vunpack.c.l.b16 %v201
    %v2234 = vunpack.c.h.b16 %v201
    %v2235 = vunpack.c.l.b16 %v202
    %v2236 = vunpack.c.h.b16 %v202
    %v2237 = vunpack.c.l.b16 %v203
    %v2238 = vunpack.c.h.b16 %v203
    %v2239 = vunpack.c.l.b16 %v204
    %v2240 = vunpack.c.h.b16 %v204
    %v2241 = vunpack.c.l.b16 %v205
    %v2242 = vunpack.c.h.b16 %v205
    %v2243 = vunpack.c.l.b16 %v206
    %v2244 = vunpack.c.h.b16 %v206
    %v2245 = vunpack.c.l.b16 %v207
    %v2246 = vunpack.c.h.b16 %v207
    %v2247 = vunpack.c.l.b16 %v208
    %v2248 = vunpack.c.h.b16 %v208
    %v2249 = vunpack.c.l.b16 %v209
    %v2250 = vunpack.c.h.b16 %v209
    %v2251 = vunpack.c.l.b16 %v210
    %v2252 = vunpack.c.h.b16 %v210
    %v2253 = vunpack.c.l.b16 %v211
    %v2254 = vunpack.c.h.b16 %v211
    %v2255 = vunpack.c.l.b16 %v212
    %v2256 = vunpack.c.h.b16 %v212
    %v2257 = vunpack.c.l.b16 %v213
    %v2258 = vunpack.c.h.b16 %v213
    %v2259 = vunpack.c.l.b16 %v214
    %v2260 = vunpack.c.h.b16 %v214
    %v2261 = vunpack.c.l.b16 %v215
    %v2262 = vunpack.c.h.b16 %v215
    %v2263 = vunpack.c.l.b16 %v216
    %v2264 = vunpack.c.h.b16 %v216
    %v2265 = vunpack.c.l.b16 %v217
    %v2266 = vunpack.c.h.b16 %v217
    %v2267 = vunpack.c.l.b16 %v218
    %v2268 = vunpack.c.h.b16 %v218
    %v2269 = vunpack.c.l.b16 %v219
    %v2270 = vunpack.c.h.b16 %v219
    %v2271 = vunpack.c.l.b16 %v220
    %v2272 = vunpack.c.h.b16 %v220
    %v2273 = vunpack.c.l.b16 %v221
    %v2274 = vunpack.c.h.b16 %v221
    %v2275 = vunpack.c.l.b16 %v222
    %v2276 = vunpack.c.h.b16 %v222
    %v2277 = vunpack.c.l.b16 %v223
    %v2278 = vunpack.c.h.b16 %v223
    %v2279 = vunpack.c.l.b16 %v224
    %v2280 = vunpack.c.h.b16 %v224
    %v2281 = vunpack.c.l.b16 %v225
    %v2282 = vunpack.c.h.b16 %v225
    %v2283 = vunpack.c.l.b16 %v226
    %v2284 = vunpack.c.h.b16 %v226
    %v2285 = vunpack.c.l.b16 %v227
    %v2286 = vunpack.c.h.b16 %v227
    %v2287 = vunpack.c.l.b16 %v228
    %v2288 = vunpack.c.h.b16 %v228
    %v2289 = vunpack.c.l.b16 %v229
    %v2290 = vunpack.c.h.b16 %v229
    %v2291 = vunpack.c.l.b16 %v230
    %v2292 = vunpack.c.h.b16 %v230
    %v2293 = vunpack.c.l.b16 %v231
    %v2294 = vunpack.c.h.b16 %v231
    %v2295 = vunpack.c.l.b16 %v232
    %v2296 = vunpack.c.h.b16 %v232
    %v2297 = vunpack.c.l.b16 %v233
    %v2298 = vunpack.c.h.b16 %v233
    %v2299 = vunpack.c.l.b16 %v234
    %v2300 = vunpack.c.h.b16 %v234
    %v2301 = vunpack.c.l.b16 %v235
    %v2302 = vunpack.c.h.b16 %v235
    %v2303 = vunpack.c.l.b16 %v236
    %v2304 = vunpack.c.h.b16 %v236
    %v2305 = vunpack.c.l.b16 %v237
    %v2306 = vunpack.c.h.b16 %v237
    %v2307 = vunpack.c.l.b16 %v238
    %v2308 = vunpack.c.h.b16 %v238
    %v2309 = vunpack.c.l.b16 %v239
    %v2310 = vunpack.c.h.b16 %v239
    %v2311 = vunpack.c.l.b16 %v240
    %v2312 = vunpack.c.h.b16 %v240
    %v2313 = vunpack.c.l.b16 %v241
    %v2314 = vunpack.c.h.b16 %v241
    %v2315 = vunpack.c.l.b16 %v242
    %v2316 = vunpack.c.h.b16 %v242
    %v2317 = vunpack.c.l.b16 %v243
    %v2318 = vunpack.c.h.b16 %v243
    %v2319 = vunpack.c.l.b16 %v244
    %v2320 = vunpack.c.h.b16 %v244
    %v2321 = vunpack.c.l.b16 %v245
    %v2322 = vunpack.c.h.b16 %v245
    %v2323 = vunpack.c.l.b16 %v246
    %v2324 = vunpack.c.h.b16 %v246
    %v2325 = vunpack.c.l.b16 %v247
    %v2326 = vunpack.c.h.b16 %v247
    %v2327 = vunpack.c.l.b16 %v248
    %v2328 = vunpack.c.h.b16 %v248
    %v2329 = vunpack.c.l.b16 %v249
    %v2330 = vunpack.c.h.b16 %v249
    %v2331 = vunpack.c.l.b16 %v250
    %v2332 = vunpack.c.h.b16 %v250
    %v2333 = vunpack.c.l.b16 %v251
    %v2334 = vunpack.c.h.b16 %v251
    %v2335 = vunpack.c.l.b16 %v252
    %v2336 = vunpack.c.h.b16 %v252
    %v2337 = vunpack.c.l.b16 %v253
    %v2338 = vunpack.c.h.b16 %v253
    %v2339 = vunpack.c.l.b16 %v254
    %v2340 = vunpack.c.h.b16 %v254
    %v2341 = vunpack.c.l.b16 %v255
    %v2342 = vunpack.c.h.b16 %v255
    %v2343 = vunpack.c.l.b16 %v256
    %v2344 = vunpack.c.h.b16 %v256
    %v2345 = vunpack.c.l.b16 %v257
    %v2346 = vunpack.c.h.b16 %v257
    %v2347 = vunpack.c.l.b16 %v258
    %v2348 = vunpack.c.h.b16 %v258
    %v2349 = vunpack.c.l.b16 %v259
    %v2350 = vunpack.c.h.b16 %v259
    %v2351 = vunpack.c.l.b16 %v260
    %v2352 = vunpack.c.h.b16 %v260
    %v2353 = vunpack.c.l.b16 %v261
    %v2354 = vunpack.c.h.b16 %v261
    %v2355 = vunpack.c.l.b16 %v262
    %v2356 = vunpack.c.h.b16 %v262
    %v2357 = vunpack.c.l.b16 %v263
    %v2358 = vunpack.c.h.b16 %v263
    %v2359 = vunpack.c.l.b16 %v264
    %v2360 = vunpack.c.h.b16 %v264
    %v2361 = vunpack.c.l.b16 %v265
    %v2362 = vunpack.c.h.b16 %v265
    %v2363 = vunpack.c.l.b16 %v266
    %v2364 = vunpack.c.h.b16 %v266
    %v2365 = vunpack.c.l.b16 %v267
    %v2366 = vunpack.c.h.b16 %v267
    %v2367 = vunpack.c.l.b16 %v268
    %v2368 = vunpack.c.h.b16 %v268
    %v2369 = vunpack.c.l.b16 %v269
    %v2370 = vunpack.c.h.b16 %v269
    %v2371 = vunpack.c.l.b16 %v270
    %v2372 = vunpack.c.h.b16 %v270
    %v2373 = vunpack.c.l.b16 %v271
    %v2374 = vunpack.c.h.b16 %v271
    %v2375 = vunpack.c.l.b16 %v272
    %v2376 = vunpack.c.h.b16 %v272
    %v2377 = vunpack.c.l.b16 %v273
    %v2378 = vunpack.c.h.b16 %v273
    %v2379 = vunpack.c.l.b16 %v274
    %v2380 = vunpack.c.h.b16 %v274
    %v2381 = vunpack.c.l.b16 %v275
    %v2382 = vunpack.c.h.b16 %v275
    %v2383 = vunpack.c.l.b16 %v276
    %v2384 = vunpack.c.h.b16 %v276
    %v2385 = vunpack.c.l.b16 %v277
    %v2386 = vunpack.c.h.b16 %v277
    %v2387 = vunpack.c.l.b16 %v278
    %v2388 = vunpack.c.h.b16 %v278
    %v2389 = vunpack.c.l.b16 %v279
    %v2390 = vunpack.c.h.b16 %v279
    %v2391 = vunpack.c.l.b16 %v280
    %v2392 = vunpack.c.h.b16 %v280
    %v2393 = vunpack.c.l.b16 %v281
    %v2394 = vunpack.c.h.b16 %v281
    %v2395 = vunpack.c.l.b16 %v282
    %v2396 = vunpack.c.h.b16 %v282
    %v2397 = vunpack.c.l.b16 %v283
    %v2398 = vunpack.c.h.b16 %v283
    %v2399 = vunpack.c.l.b16 %v284
    %v2400 = vunpack.c.h.b16 %v284
    %v2401 = vunpack.c.l.b16 %v285
    %v2402 = vunpack.c.h.b16 %v285
    %v2403 = vunpack.c.l.b16 %v286
    %v2404 = vunpack.c.h.b16 %v286
    %v2405 = vunpack.c.l.b16 %v287
    %v2406 = vunpack.c.h.b16 %v287
    %v2407 = vunpack.c.l.b16 %v288
    %v2408 = vunpack.c.h.b16 %v288
    %v2409 = vunpack.c.l.b16 %v289
    %v2410 = vunpack.c.h.b16 %v289
    %v2411 = vunpack.c.l.b16 %v290
    %v2412 = vunpack.c.h.b16 %v290
    %v2413 = vunpack.c.l.b16 %v291
    %v2414 = vunpack.c.h.b16 %v291
    %v2415 = vunpack.c.l.b16 %v292
    %v2416 = vunpack.c.h.b16 %v292
    %v2417 = vunpack.c.l.b16 %v293
    %v2418 = vunpack.c.h.b16 %v293
    %v2419 = vunpack.c.l.b16 %v294
    %v2420 = vunpack.c.h.b16 %v294
    %v2421 = vpack.c.b16 %v2041, %v2037
    %v2422 = vpack.c.b16 %v2042, %v2038
    %v2423 = vpack.c.b16 %v2043, %v2039
    %v2424 = vpack.c.b16 %v2044, %v2040
    %v2425 = vpack.c.b16 %v2049, %v2045
    %v2426 = vpack.c.b16 %v2050, %v2046
    %v2427 = vpack.c.b16 %v2051, %v2047
    %v2428 = vpack.c.b16 %v2052, %v2048
    %v2429 = vpack.c.b16 %v2057, %v2053
    %v2430 = vpack.c.b16 %v2058, %v2054
    %v2431 = vpack.c.b16 %v2059, %v2055
    %v2432 = vpack.c.b16 %v2060, %v2056
    %v2433 = vpack.c.b16 %v2065, %v2061
    %v2434 = vpack.c.b16 %v2066, %v2062
    %v2435 = vpack.c.b16 %v2067, %v2063
    %v2436 = vpack.c.b16 %v2068, %v2064
    %v2437 = vpack.c.b16 %v2073, %v2069
    %v2438 = vpack.c.b16 %v2074, %v2070
    %v2439 = vpack.c.b16 %v2075, %v2071
    %v2440 = vpack.c.b16 %v2076, %v2072
    %v2441 = vpack.c.b16 %v2081, %v2077
    %v2442 = vpack.c.b16 %v2082, %v2078
    %v2443 = vpack.c.b16 %v2083, %v2079
    %v2444 = vpack.c.b16 %v2084, %v2080
    %v2445 = vpack.c.b16 %v2089, %v2085
    %v2446 = vpack.c.b16 %v2090, %v2086
    %v2447 = vpack.c.b16 %v2091, %v2087
    %v2448 = vpack.c.b16 %v2092, %v2088
    %v2449 = vpack.c.b16 %v2097, %v2093
    %v2450 = vpack.c.b16 %v2098, %v2094
    %v2451 = vpack.c.b16 %v2099, %v2095
    %v2452 = vpack.c.b16 %v2100, %v2096
    %v2453 = vpack.c.b16 %v2105, %v2101
    %v2454 = vpack.c.b16 %v2106, %v2102
    %v2455 = vpack.c.b16 %v2107, %v2103
    %v2456 = vpack.c.b16 %v2108, %v2104
    %v2457 = vpack.c.b16 %v2113, %v2109
    %v2458 = vpack.c.b16 %v2114, %v2110
    %v2459 = vpack.c.b16 %v2115, %v2111
    %v2460 = vpack.c.b16 %v2116, %v2112
    %v2461 = vpack.c.b16 %v2121, %v2117
    %v2462 = vpack.c.b16 %v2122, %v2118
    %v2463 = vpack.c.b16 %v2123, %v2119
    %v2464 = vpack.c.b16 %v2124, %v2120
    %v2465 = vpack.c.b16 %v2129, %v2125
    %v2466 = vpack.c.b16 %v2130, %v2126
    %v2467 = vpack.c.b16 %v2131, %v2127
    %v2468 = vpack.c.b16 %v2132, %v2128
    %v2469 = vpack.c.b16 %v2137, %v2133
    %v2470 = vpack.c.b16 %v2138, %v2134
    %v2471 = vpack.c.b16 %v2139, %v2135
    %v2472 = vpack.c.b16 %v2140, %v2136
    %v2473 = vpack.c.b16 %v2145, %v2141
    %v2474 = vpack.c.b16 %v2146, %v2142
    %v2475 = vpack.c.b16 %v2147, %v2143
    %v2476 = vpack.c.b16 %v2148, %v2144
    %v2477 = vpack.c.b16 %v2153, %v2149
    %v2478 = vpack.c.b16 %v2154, %v2150
    %v2479 = vpack.c.b16 %v2155, %v2151
    %v2480 = vpack.c.b16 %v2156, %v2152
    %v2481 = vpack.c.b16 %v2161, %v2157
    %v2482 = vpack.c.b16 %v2162, %v2158
    %v2483 = vpack.c.b16 %v2163, %v2159
    %v2484 = vpack.c.b16 %v2164, %v2160
    %v2485 = vpack.c.b16 %v2169, %v2165
    %v2486 = vpack.c.b16 %v2170, %v2166
    %v2487 = vpack.c.b16 %v2171, %v2167
    %v2488 = vpack.c.b16 %v2172, %v2168
    %v2489 = vpack.c.b16 %v2177, %v2173
    %v2490 = vpack.c.b16 %v2178, %v2174
    %v2491 = vpack.c.b16 %v2179, %v2175
    %v2492 = vpack.c.b16 %v2180, %v2176
    %v2493 = vpack.c.b16 %v2185, %v2181
    %v2494 = vpack.c.b16 %v2186, %v2182
    %v2495 = vpack.c.b16 %v2187, %v2183
    %v2496 = vpack.c.b16 %v2188, %v2184
    %v2497 = vpack.c.b16 %v2193, %v2189
    %v2498 = vpack.c.b16 %v2194, %v2190
    %v2499 = vpack.c.b16 %v2195, %v2191
    %v2500 = vpack.c.b16 %v2196, %v2192
    %v2501 = vpack.c.b16 %v2201, %v2197
    %v2502 = vpack.c.b16 %v2202, %v2198
    %v2503 = vpack.c.b16 %v2203, %v2199
    %v2504 = vpack.c.b16 %v2204, %v2200
    %v2505 = vpack.c.b16 %v2209, %v2205
    %v2506 = vpack.c.b16 %v2210, %v2206
    %v2507 = vpack.c.b16 %v2211, %v2207
    %v2508 = vpack.c.b16 %v2212, %v2208
    %v2509 = vpack.c.b16 %v2217, %v2213
    %v2510 = vpack.c.b16 %v2218, %v2214
    %v2511 = vpack.c.b16 %v2219, %v2215
    %v2512 = vpack.c.b16 %v2220, %v2216
    %v2513 = vpack.c.b16 %v2225, %v2221
    %v2514 = vpack.c.b16 %v2226, %v2222
    %v2515 = vpack.c.b16 %v2227, %v2223
    %v2516 = vpack.c.b16 %v2228, %v2224
    %v2517 = vpack.c.b16 %v2233, %v2229
    %v2518 = vpack.c.b16 %v2234, %v2230
    %v2519 = vpack.c.b16 %v2235, %v2231
    %v2520 = vpack.c.b16 %v2236, %v2232
    %v2521 = vpack.c.b16 %v2241, %v2237
    %v2522 = vpack.c.b16 %v2242, %v2238
    %v2523 = vpack.c.b16 %v2243, %v2239
    %v2524 = vpack.c.b16 %v2244, %v2240
    %v2525 = vpack.c.b16 %v2249, %v2245
    %v2526 = vpack.c.b16 %v2250, %v2246
    %v2527 = vpack.c.b16 %v2251, %v2247
    %v2528 = vpack.c.b16 %v2252, %v2248
    %v2529 = vpack.c.b16 %v2257, %v2253
    %v2530 = vpack.c.b16 %v2258, %v2254
    %v2531 = vpack.c.b16 %v2259, %v2255
    %v2532 = vpack.c.b16 %v2260, %v2256
    %v2533 = vpack.c.b16 %v2265, %v2261
    %v2534 = vpack.c.b16 %v2266, %v2262
    %v2535 = vpack.c.b16 %v2267, %v2263
    %v2536 = vpack.c.b16 %v2268, %v2264
    %v2537 = vpack.c.b16 %v2273, %v2269
    %v2538 = vpack.c.b16 %v2274, %v2270
    %v2539 = vpack.c.b16 %v2275, %v2271
    %v2540 = vpack.c.b16 %v2276, %v2272
    %v2541 = vpack.c.b16 %v2281, %v2277
    %v2542 = vpack.c.b16 %v2282, %v2278
    %v2543 = vpack.c.b16 %v2283, %v2279
    %v2544 = vpack.c.b16 %v2284, %v2280
    %v2545 = vpack.c.b16 %v2289, %v2285
    %v2546 = vpack.c.b16 %v2290, %v2286
    %v2547 = vpack.c.b16 %v2291, %v2287
    %v2548 = vpack.c.b16 %v2292, %v2288
    %v2549 = vpack.c.b16 %v2297, %v2293
    %v2550 = vpack.c.b16 %v2298, %v2294
    %v2551 = vpack.c.b16 %v2299, %v2295
    %v2552 = vpack.c.b16 %v2300, %v2296
    %v2553 = vpack.c.b16 %v2305, %v2301
    %v2554 = vpack.c.b16 %v2306, %v2302
    %v2555 = vpack.c.b16 %v2307, %v2303
    %v2556 = vpack.c.b16 %v2308, %v2304
    %v2557 = vpack.c.b16 %v2313, %v2309
    %v2558 = vpack.c.b16 %v2314, %v2310
    %v2559 = vpack.c.b16 %v2315, %v2311
    %v2560 = vpack.c.b16 %v2316, %v2312
    %v2561 = vpack.c.b16 %v2321, %v2317
    %v2562 = vpack.c.b16 %v2322, %v2318
    %v2563 = vpack.c.b16 %v2323, %v2319
    %v2564 = vpack.c.b16 %v2324, %v2320
    %v2565 = vpack.c.b16 %v2329, %v2325
    %v2566 = vpack.c.b16 %v2330, %v2326
    %v2567 = vpack.c.b16 %v2331, %v2327
    %v2568 = vpack.c.b16 %v2332, %v2328
    %v2569 = vpack.c.b16 %v2337, %v2333
    %v2570 = vpack.c.b16 %v2338, %v2334
    %v2571 = vpack.c.b16 %v2339, %v2335
    %v2572 = vpack.c.b16 %v2340, %v2336
    %v2573 = vpack.c.b16 %v2345, %v2341
    %v2574 = vpack.c.b16 %v2346, %v2342
    %v2575 = vpack.c.b16 %v2347, %v2343
    %v2576 = vpack.c.b16 %v2348, %v2344
    %v2577 = vpack.c.b16 %v2353, %v2349
    %v2578 = vpack.c.b16 %v2354, %v2350
    %v2579 = vpack.c.b16 %v2355, %v2351
    %v2580 = vpack.c.b16 %v2356, %v2352
    %v2581 = vpack.c.b16 %v2361, %v2357
    %v2582 = vpack.c.b16 %v2362, %v2358
    %v2583 = vpack.c.b16 %v2363, %v2359
    %v2584 = vpack.c.b16 %v2364, %v2360
    %v2585 = vpack.c.b16 %v2369, %v2365
    %v2586 = vpack.c.b16 %v2370, %v2366
    %v2587 = vpack.c.b16 %v2371, %v2367
    %v2588 = vpack.c.b16 %v2372, %v2368
    %v2589 = vpack.c.b16 %v2377, %v2373
    %v2590 = vpack.c.b16 %v2378, %v2374
    %v2591 = vpack.c.b16 %v2379, %v2375
    %v2592 = vpack.c.b16 %v2380, %v2376
    %v2593 = vpack.c.b16 %v2385, %v2381
    %v2594 = vpack.c.b16 %v2386, %v2382
    %v2595 = vpack.c.b16 %v2387, %v2383
    %v2596 = vpack.c.b16 %v2388, %v2384
    %v2597 = vpack.c.b16 %v2393, %v2389
    %v2598 = vpack.c.b16 %v2394, %v2390
    %v2599 = vpack.c.b16 %v2395, %v2391
    %v2600 = vpack.c.b16 %v2396, %v2392
    %v2601 = vpack.c.b16 %v2401, %v2397
    %v2602 = vpack.c.b16 %v2402, %v2398
    %v2603 = vpack.c.b16 %v2403, %v2399
    %v2604 = vpack.c.b16 %v2404, %v2400
    %v2605 = vpack.c.b16 %v2409, %v2405
    %v2606 = vpack.c.b16 %v2410, %v2406
    %v2607 = vpack.c.b16 %v2411, %v2407
    %v2608 = vpack.c.b16 %v2412, %v2408
    %v2609 = vpack.c.b16 %v2417, %v2413
    %v2610 = vpack.c.b16 %v2418, %v2414
    %v2611 = vpack.c.b16 %v2419, %v2415
    %v2612 = vpack.c.b16 %v2420, %v2416
    %2805 = vmatprep.subr.bf16.mxu0 %v2422
    %2806 = vmatpush1.bf16.msra.mxu0 %v2421
    %2807 = vmatprep.subr.bf16.mxu0 %v2426
    %2808 = vmatpush1.bf16.msra.mxu0 %v2425
    %2809 = vmatprep.subr.bf16.mxu0 %v2430
    %2810 = vmatpush1.bf16.msra.mxu0 %v2429
    %2811 = vmatprep.subr.bf16.mxu0 %v2434
    %2812 = vmatpush1.bf16.msra.mxu0 %v2433
    %2813 = vmatprep.subr.bf16.mxu0 %v2438
    %2814 = vmatpush1.bf16.msra.mxu0 %v2437
    %2815 = vmatprep.subr.bf16.mxu0 %v2442
    %2816 = vmatpush1.bf16.msra.mxu0 %v2441
    %2817 = vmatprep.subr.bf16.mxu0 %v2446
    %2818 = vmatpush1.bf16.msra.mxu0 %v2445
    %2819 = vmatprep.subr.bf16.mxu0 %v2450
    %2820 = vmatpush1.bf16.msra.mxu0 %v2449
    %2821 = vmatprep.subr.bf16.mxu0 %v2454
    %2822 = vmatpush1.bf16.msra.mxu0 %v2453
    %2823 = vmatprep.subr.bf16.mxu0 %v2458
    %2824 = vmatpush1.bf16.msra.mxu0 %v2457
    %2825 = vmatprep.subr.bf16.mxu0 %v2462
    %2826 = vmatpush1.bf16.msra.mxu0 %v2461
    %2827 = vmatprep.subr.bf16.mxu0 %v2466
    %2828 = vmatpush1.bf16.msra.mxu0 %v2465
    %2829 = vmatprep.subr.bf16.mxu0 %v2470
    %2830 = vmatpush1.bf16.msra.mxu0 %v2469
    %2831 = vmatprep.subr.bf16.mxu0 %v2474
    %2832 = vmatpush1.bf16.msra.mxu0 %v2473
    %2833 = vmatprep.subr.bf16.mxu0 %v2478
    %2834 = vmatpush1.bf16.msra.mxu0 %v2477
    %2835 = vmatprep.subr.bf16.mxu0 %v2482
    %2836 = vmatpush1.bf16.msra.mxu0 %v2481
    %2837 = vmatprep.mubr.bf16.mxu0 %v1829
    %2838 = vmatmul.mubr.bf16.gmra.mrb[0].mxu0 %v1815
    %v2839 = vpop.f32.mrb[0].mxu0
    %v2840 = vadd.f32 %v1640, %v2839
    %v2841 = vpop.f32.mrb[0].mxu0
    %v2842 = vadd.f32 %v1642, %v2841
    %v2843 = vpop.f32.mrb[0].mxu0
    %v2844 = vpop.f32.mrb[0].mxu0
    %2845 = vdwg.mxu0
    %2846 = vmatprep.subr.bf16.mxu0 %v2486
    %2847 = vmatpush1.bf16.msra.mxu0 %v2485
    %2848 = vmatprep.subr.bf16.mxu0 %v2490
    %2849 = vmatpush1.bf16.msra.mxu0 %v2489
    %2850 = vmatprep.subr.bf16.mxu0 %v2494
    %2851 = vmatpush1.bf16.msra.mxu0 %v2493
    %2852 = vmatprep.subr.bf16.mxu0 %v2498
    %2853 = vmatpush1.bf16.msra.mxu0 %v2497
    %2854 = vmatprep.subr.bf16.mxu0 %v2502
    %2855 = vmatpush1.bf16.msra.mxu0 %v2501
    %2856 = vmatprep.subr.bf16.mxu0 %v2506
    %2857 = vmatpush1.bf16.msra.mxu0 %v2505
    %2858 = vmatprep.subr.bf16.mxu0 %v2510
    %2859 = vmatpush1.bf16.msra.mxu0 %v2509
    %2860 = vmatprep.subr.bf16.mxu0 %v2514
    %2861 = vmatpush1.bf16.msra.mxu0 %v2513
    %2862 = vmatprep.subr.bf16.mxu0 %v2518
    %2863 = vmatpush1.bf16.msra.mxu0 %v2517
    %2864 = vmatprep.subr.bf16.mxu0 %v2522
    %2865 = vmatpush1.bf16.msra.mxu0 %v2521
    %2866 = vmatprep.subr.bf16.mxu0 %v2526
    %2867 = vmatpush1.bf16.msra.mxu0 %v2525
    %2868 = vmatprep.subr.bf16.mxu0 %v2530
    %2869 = vmatpush1.bf16.msra.mxu0 %v2529
    %2870 = vmatprep.subr.bf16.mxu0 %v2534
    %2871 = vmatpush1.bf16.msra.mxu0 %v2533
    %2872 = vmatprep.subr.bf16.mxu0 %v2538
    %2873 = vmatpush1.bf16.msra.mxu0 %v2537
    %2874 = vmatprep.subr.bf16.mxu0 %v2542
    %2875 = vmatpush1.bf16.msra.mxu0 %v2541
    %2876 = vmatprep.subr.bf16.mxu0 %v2546
    %2877 = vmatpush1.bf16.msra.mxu0 %v2545
    %2878 = vmatprep.mubr.bf16.mxu0 %v1838
    %2879 = vmatmul.mubr.bf16.gmra.mrb[0].mxu0 %v1837
    %v2880 = vpop.f32.mrb[0].mxu0
    %v2881 = vadd.f32 %v2840, %v2880
    %v2882 = vpop.f32.mrb[0].mxu0
    %v2883 = vadd.f32 %v2842, %v2882
    %v2884 = vpop.f32.mrb[0].mxu0
    %v2885 = vpop.f32.mrb[0].mxu0
    %2886 = vdwg.mxu0
    %2887 = vmatprep.subr.bf16.mxu0 %v2550
    %2888 = vmatpush1.bf16.msra.mxu0 %v2549
    %2889 = vmatprep.subr.bf16.mxu0 %v2554
    %2890 = vmatpush1.bf16.msra.mxu0 %v2553
    %2891 = vmatprep.subr.bf16.mxu0 %v2558
    %2892 = vmatpush1.bf16.msra.mxu0 %v2557
    %2893 = vmatprep.subr.bf16.mxu0 %v2562
    %2894 = vmatpush1.bf16.msra.mxu0 %v2561
    %2895 = vmatprep.subr.bf16.mxu0 %v2566
    %2896 = vmatpush1.bf16.msra.mxu0 %v2565
    %2897 = vmatprep.subr.bf16.mxu0 %v2570
    %2898 = vmatpush1.bf16.msra.mxu0 %v2569
    %2899 = vmatprep.subr.bf16.mxu0 %v2574
    %2900 = vmatpush1.bf16.msra.mxu0 %v2573
    %2901 = vmatprep.subr.bf16.mxu0 %v2578
    %2902 = vmatpush1.bf16.msra.mxu0 %v2577
    %2903 = vmatprep.subr.bf16.mxu0 %v2582
    %2904 = vmatpush1.bf16.msra.mxu0 %v2581
    %2905 = vmatprep.subr.bf16.mxu0 %v2586
    %2906 = vmatpush1.bf16.msra.mxu0 %v2585
    %2907 = vmatprep.subr.bf16.mxu0 %v2590
    %2908 = vmatpush1.bf16.msra.mxu0 %v2589
    %2909 = vmatprep.subr.bf16.mxu0 %v2594
    %2910 = vmatpush1.bf16.msra.mxu0 %v2593
    %2911 = vmatprep.subr.bf16.mxu0 %v2598
    %2912 = vmatpush1.bf16.msra.mxu0 %v2597
    %2913 = vmatprep.subr.bf16.mxu0 %v2602
    %2914 = vmatpush1.bf16.msra.mxu0 %v2601
    %2915 = vmatprep.subr.bf16.mxu0 %v2606
    %2916 = vmatpush1.bf16.msra.mxu0 %v2605
    %2917 = vmatprep.subr.bf16.mxu0 %v2610
    %2918 = vmatpush1.bf16.msra.mxu0 %v2609
    %2919 = vmatprep.mubr.bf16.mxu0 %v1836
    %2920 = vmatmul.mubr.bf16.gmra.mrb[0].mxu0 %v1822
    %v2921 = vpop.f32.mrb[0].mxu0
    %v2922 = vadd.f32 %v2881, %v2921
    %v2923 = vpop.f32.mrb[0].mxu0
    %v2924 = vadd.f32 %v2883, %v2923
    %v2925 = vpop.f32.mrb[0].mxu0
    %v2926 = vpop.f32.mrb[0].mxu0
    %2927 = vdwg.mxu0
    %2928 = vmatprep.subr.bf16.mxu0 %v2424
    %2929 = vmatpush1.bf16.msra.mxu0 %v2423
    %2930 = vmatprep.subr.bf16.mxu0 %v2428
    %2931 = vmatpush1.bf16.msra.mxu0 %v2427
    %2932 = vmatprep.subr.bf16.mxu0 %v2432
    %2933 = vmatpush1.bf16.msra.mxu0 %v2431
    %2934 = vmatprep.subr.bf16.mxu0 %v2436
    %2935 = vmatpush1.bf16.msra.mxu0 %v2435
    %2936 = vmatprep.subr.bf16.mxu0 %v2440
    %2937 = vmatpush1.bf16.msra.mxu0 %v2439
    %2938 = vmatprep.subr.bf16.mxu0 %v2444
    %2939 = vmatpush1.bf16.msra.mxu0 %v2443
    %2940 = vmatprep.subr.bf16.mxu0 %v2448
    %2941 = vmatpush1.bf16.msra.mxu0 %v2447
    %2942 = vmatprep.subr.bf16.mxu0 %v2452
    %2943 = vmatpush1.bf16.msra.mxu0 %v2451
    %2944 = vmatprep.subr.bf16.mxu0 %v2456
    %2945 = vmatpush1.bf16.msra.mxu0 %v2455
    %2946 = vmatprep.subr.bf16.mxu0 %v2460
    %2947 = vmatpush1.bf16.msra.mxu0 %v2459
    %2948 = vmatprep.subr.bf16.mxu0 %v2464
    %2949 = vmatpush1.bf16.msra.mxu0 %v2463
    %2950 = vmatprep.subr.bf16.mxu0 %v2468
    %2951 = vmatpush1.bf16.msra.mxu0 %v2467
    %2952 = vmatprep.subr.bf16.mxu0 %v2472
    %2953 = vmatpush1.bf16.msra.mxu0 %v2471
    %2954 = vmatprep.subr.bf16.mxu0 %v2476
    %2955 = vmatpush1.bf16.msra.mxu0 %v2475
    %2956 = vmatprep.subr.bf16.mxu0 %v2480
    %2957 = vmatpush1.bf16.msra.mxu0 %v2479
    %2958 = vmatprep.subr.bf16.mxu0 %v2484
    %2959 = vmatpush1.bf16.msra.mxu0 %v2483
    %2960 = vmatprep.mubr.bf16.mxu0 %v1829
    %2961 = vmatmul.mubr.bf16.gmra.mrb[0].mxu0 %v1815
    %v2962 = vpop.f32.mrb[0].mxu0
    %v2963 = vadd.f32 %v1763, %v2962
    %v2964 = vpop.f32.mrb[0].mxu0
    %v2965 = vadd.f32 %v1765, %v2964
    %v2966 = vpop.f32.mrb[0].mxu0
    %v2967 = vpop.f32.mrb[0].mxu0
    %2968 = vdwg.mxu0
    %2969 = vmatprep.subr.bf16.mxu0 %v2488
    %2970 = vmatpush1.bf16.msra.mxu0 %v2487
    %2971 = vmatprep.subr.bf16.mxu0 %v2492
    %2972 = vmatpush1.bf16.msra.mxu0 %v2491
    %2973 = vmatprep.subr.bf16.mxu0 %v2496
    %2974 = vmatpush1.bf16.msra.mxu0 %v2495
    %2975 = vmatprep.subr.bf16.mxu0 %v2500
    %2976 = vmatpush1.bf16.msra.mxu0 %v2499
    %2977 = vmatprep.subr.bf16.mxu0 %v2504
    %2978 = vmatpush1.bf16.msra.mxu0 %v2503
    %2979 = vmatprep.subr.bf16.mxu0 %v2508
    %2980 = vmatpush1.bf16.msra.mxu0 %v2507
    %2981 = vmatprep.subr.bf16.mxu0 %v2512
    %2982 = vmatpush1.bf16.msra.mxu0 %v2511
    %2983 = vmatprep.subr.bf16.mxu0 %v2516
    %2984 = vmatpush1.bf16.msra.mxu0 %v2515
    %2985 = vmatprep.subr.bf16.mxu0 %v2520
    %2986 = vmatpush1.bf16.msra.mxu0 %v2519
    %2987 = vmatprep.subr.bf16.mxu0 %v2524
    %2988 = vmatpush1.bf16.msra.mxu0 %v2523
    %2989 = vmatprep.subr.bf16.mxu0 %v2528
    %2990 = vmatpush1.bf16.msra.mxu0 %v2527
    %2991 = vmatprep.subr.bf16.mxu0 %v2532
    %2992 = vmatpush1.bf16.msra.mxu0 %v2531
    %2993 = vmatprep.subr.bf16.mxu0 %v2536
    %2994 = vmatpush1.bf16.msra.mxu0 %v2535
    %2995 = vmatprep.subr.bf16.mxu0 %v2540
    %2996 = vmatpush1.bf16.msra.mxu0 %v2539
    %2997 = vmatprep.subr.bf16.mxu0 %v2544
    %2998 = vmatpush1.bf16.msra.mxu0 %v2543
    %2999 = vmatprep.subr.bf16.mxu0 %v2548
    %3000 = vmatpush1.bf16.msra.mxu0 %v2547
    %3001 = vmatprep.mubr.bf16.mxu0 %v1838
    %3002 = vmatmul.mubr.bf16.gmra.mrb[0].mxu0 %v1837
    %v3003 = vpop.f32.mrb[0].mxu0
    %v3004 = vadd.f32 %v2963, %v3003
    %v3005 = vpop.f32.mrb[0].mxu0
    %v3006 = vadd.f32 %v2965, %v3005
    %v3007 = vpop.f32.mrb[0].mxu0
    %v3008 = vpop.f32.mrb[0].mxu0
    %3009 = vdwg.mxu0
    %3010 = vmatprep.subr.bf16.mxu0 %v2552
    %3011 = vmatpush1.bf16.msra.mxu0 %v2551
    %3012 = vmatprep.subr.bf16.mxu0 %v2556
    %3013 = vmatpush1.bf16.msra.mxu0 %v2555
    %3014 = vmatprep.subr.bf16.mxu0 %v2560
    %3015 = vmatpush1.bf16.msra.mxu0 %v2559
    %3016 = vmatprep.subr.bf16.mxu0 %v2564
    %3017 = vmatpush1.bf16.msra.mxu0 %v2563
    %3018 = vmatprep.subr.bf16.mxu0 %v2568
    %3019 = vmatpush1.bf16.msra.mxu0 %v2567
    %3020 = vmatprep.subr.bf16.mxu0 %v2572
    %3021 = vmatpush1.bf16.msra.mxu0 %v2571
    %3022 = vmatprep.subr.bf16.mxu0 %v2576
    %3023 = vmatpush1.bf16.msra.mxu0 %v2575
    %3024 = vmatprep.subr.bf16.mxu0 %v2580
    %3025 = vmatpush1.bf16.msra.mxu0 %v2579
    %3026 = vmatprep.subr.bf16.mxu0 %v2584
    %3027 = vmatpush1.bf16.msra.mxu0 %v2583
    %3028 = vmatprep.subr.bf16.mxu0 %v2588
    %3029 = vmatpush1.bf16.msra.mxu0 %v2587
    %3030 = vmatprep.subr.bf16.mxu0 %v2592
    %3031 = vmatpush1.bf16.msra.mxu0 %v2591
    %3032 = vmatprep.subr.bf16.mxu0 %v2596
    %3033 = vmatpush1.bf16.msra.mxu0 %v2595
    %3034 = vmatprep.subr.bf16.mxu0 %v2600
    %3035 = vmatpush1.bf16.msra.mxu0 %v2599
    %3036 = vmatprep.subr.bf16.mxu0 %v2604
    %3037 = vmatpush1.bf16.msra.mxu0 %v2603
    %3038 = vmatprep.subr.bf16.mxu0 %v2608
    %3039 = vmatpush1.bf16.msra.mxu0 %v2607
    %3040 = vmatprep.subr.bf16.mxu0 %v2612
    %3041 = vmatpush1.bf16.msra.mxu0 %v2611
    %3042 = vmatprep.mubr.bf16.mxu0 %v1836
    %3043 = vmatmul.mubr.bf16.gmra.mrb[0].mxu0 %v1822
    %v3044 = vpop.f32.mrb[0].mxu0
    %v3045 = vadd.f32 %v3004, %v3044
    %v3046 = vpop.f32.mrb[0].mxu0
    %v3047 = vadd.f32 %v3006, %v3046
    %v3048 = vpop.f32.mrb[0].mxu0
    %v3049 = vpop.f32.mrb[0].mxu0
    %3050 = vdwg.mxu0
    %v3051 = vld [vmem:[%s4] sm:$0xf]
    %v3053 = vlaneseq
    %v3054 = vshrl.u32 %v3053, 7
    %v3055 = vsub.s32 0, %v3054
    %v3056 = vrot.slane %v3051, %v3055
    %v3057 = vlaneseq
    %v3058 = vshrl.u32 %v3057, 7
    %v3059 = vsub.s32 1, %v3058
    %v3060 = vrot.slane %v3051, %v3059
    %v3061 = vlaneseq
    %v3062 = vshrl.u32 %v3061, 7
    %v3063 = vsub.s32 2, %v3062
    %v3064 = vrot.slane %v3051, %v3063
    %v3065 = vlaneseq
    %v3066 = vshrl.u32 %v3065, 7
    %v3067 = vsub.s32 3, %v3066
    %v3068 = vrot.slane %v3051, %v3067
    %v3073 = vadd.f32 %v2922, %v3056
    %v3074 = vadd.f32 %v2924, %v3060
    %v3075 = vadd.f32 %v3045, %v3064
    %v3076 = vadd.f32 %v3047, %v3068
    %v3077 = vmax.f32 %v3073, 0.0
    %v3078 = vmax.f32 %v3074, 0.0
    %v3079 = vmax.f32 %v3075, 0.0
    %v3080 = vmax.f32 %v3076, 0.0
    %v3081 = vpack.c.bf16 %v3077, %v3077
    %v3082 = vpack.c.bf16 %v3078, %v3078
    %v3083 = vpack.c.bf16 %v3079, %v3079
    %v3084 = vpack.c.bf16 %v3080, %v3080
    %v3085 = vld [vmem:[#allocation10] sm:$0xff]
    %v3086 = vld [vmem:[#allocation10 + $0x8] sm:$0xff]
    %v3087 = vld [vmem:[#allocation10 + $0x10] sm:$0xff]
    %v3088 = vld [vmem:[#allocation10 + $0x18] sm:$0xff]
    %v3089 = vld [vmem:[#allocation10 + $0x20] sm:$0xff]
    %v3090 = vld [vmem:[#allocation10 + $0x28] sm:$0xff]
    %v3091 = vld [vmem:[#allocation10 + $0x30] sm:$0xff]
    %v3092 = vld [vmem:[#allocation10 + $0x38] sm:$0xff]
    %v3093 = vld [vmem:[#allocation10 + $0x40] sm:$0xff]
    %v3094 = vld [vmem:[#allocation10 + $0x48] sm:$0xff]
    %v3095 = vld [vmem:[#allocation10 + $0x50] sm:$0xff]
    %v3096 = vld [vmem:[#allocation10 + $0x58] sm:$0xff]
    %v3097 = vld [vmem:[#allocation10 + $0x60] sm:$0xff]
    %v3098 = vld [vmem:[#allocation10 + $0x68] sm:$0xff]
    %v3099 = vld [vmem:[#allocation10 + $0x70] sm:$0xff]
    %v3100 = vld [vmem:[#allocation10 + $0x78] sm:$0xff]
    %v3101 = vld [vmem:[#allocation10 + $0x80] sm:$0xff]
    %v3102 = vld [vmem:[#allocation10 + $0x88] sm:$0xff]
    %v3103 = vld [vmem:[#allocation10 + $0x90] sm:$0xff]
    %v3104 = vld [vmem:[#allocation10 + $0x98] sm:$0xff]
    %v3105 = vld [vmem:[#allocation10 + $0xa0] sm:$0xff]
    %v3106 = vld [vmem:[#allocation10 + $0xa8] sm:$0xff]
    %v3107 = vld [vmem:[#allocation10 + $0xb0] sm:$0xff]
    %v3108 = vld [vmem:[#allocation10 + $0xb8] sm:$0xff]
    %v3109 = vld [vmem:[#allocation10 + $0xc0] sm:$0xff]
    %v3110 = vld [vmem:[#allocation10 + $0xc8] sm:$0xff]
    %v3111 = vld [vmem:[#allocation10 + $0xd0] sm:$0xff]
    %v3112 = vld [vmem:[#allocation10 + $0xd8] sm:$0xff]
    %v3113 = vld [vmem:[#allocation10 + $0xe0] sm:$0xff]
    %v3114 = vld [vmem:[#allocation10 + $0xe8] sm:$0xff]
    %v3115 = vld [vmem:[#allocation10 + $0xf0] sm:$0xff]
    %v3116 = vld [vmem:[#allocation10 + $0xf8] sm:$0xff]
    %v3117 = vld [vmem:[#allocation10 + $0x100] sm:$0xff]
    %v3118 = vld [vmem:[#allocation10 + $0x108] sm:$0xff]
    %v3119 = vld [vmem:[#allocation10 + $0x110] sm:$0xff]
    %v3120 = vld [vmem:[#allocation10 + $0x118] sm:$0xff]
    %v3121 = vld [vmem:[#allocation10 + $0x120] sm:$0xff]
    %v3122 = vld [vmem:[#allocation10 + $0x128] sm:$0xff]
    %v3123 = vld [vmem:[#allocation10 + $0x130] sm:$0xff]
    %v3124 = vld [vmem:[#allocation10 + $0x138] sm:$0xff]
    %v3125 = vld [vmem:[#allocation10 + $0x140] sm:$0xff]
    %v3126 = vld [vmem:[#allocation10 + $0x148] sm:$0xff]
    %v3127 = vld [vmem:[#allocation10 + $0x150] sm:$0xff]
    %v3128 = vld [vmem:[#allocation10 + $0x158] sm:$0xff]
    %v3129 = vld [vmem:[#allocation10 + $0x160] sm:$0xff]
    %v3130 = vld [vmem:[#allocation10 + $0x168] sm:$0xff]
    %v3131 = vld [vmem:[#allocation10 + $0x170] sm:$0xff]
    %v3132 = vld [vmem:[#allocation10 + $0x178] sm:$0xff]
    %v3133 = vld [vmem:[#allocation10 + $0x180] sm:$0xff]
    %v3134 = vld [vmem:[#allocation10 + $0x188] sm:$0xff]
    %v3135 = vld [vmem:[#allocation10 + $0x190] sm:$0xff]
    %v3136 = vld [vmem:[#allocation10 + $0x198] sm:$0xff]
    %v3137 = vld [vmem:[#allocation10 + $0x1a0] sm:$0xff]
    %v3138 = vld [vmem:[#allocation10 + $0x1a8] sm:$0xff]
    %v3139 = vld [vmem:[#allocation10 + $0x1b0] sm:$0xff]
    %v3140 = vld [vmem:[#allocation10 + $0x1b8] sm:$0xff]
    %v3141 = vld [vmem:[#allocation10 + $0x1c0] sm:$0xff]
    %v3142 = vld [vmem:[#allocation10 + $0x1c8] sm:$0xff]
    %v3143 = vld [vmem:[#allocation10 + $0x1d0] sm:$0xff]
    %v3144 = vld [vmem:[#allocation10 + $0x1d8] sm:$0xff]
    %v3145 = vld [vmem:[#allocation10 + $0x1e0] sm:$0xff]
    %v3146 = vld [vmem:[#allocation10 + $0x1e8] sm:$0xff]
    %v3147 = vld [vmem:[#allocation10 + $0x1f0] sm:$0xff]
    %v3148 = vld [vmem:[#allocation10 + $0x1f8] sm:$0xff]
    %v3149 = vld [vmem:[%s6] sm:$0x3]
    %v3151 = vlaneseq
    %v3152 = vshrl.u32 %v3151, 7
    %v3153 = vsub.s32 0, %v3152
    %v3154 = vrot.slane %v3149, %v3153
    %v3155 = vlaneseq
    %v3156 = vshrl.u32 %v3155, 7
    %v3157 = vsub.s32 1, %v3156
    %v3158 = vrot.slane %v3149, %v3157
    %v3225 = vunpack.c.l.b16 %v3085
    %v3226 = vunpack.c.h.b16 %v3085
    %v3227 = vunpack.c.l.b16 %v3086
    %v3228 = vunpack.c.h.b16 %v3086
    %v3229 = vunpack.c.l.b16 %v3087
    %v3230 = vunpack.c.h.b16 %v3087
    %v3231 = vunpack.c.l.b16 %v3088
    %v3232 = vunpack.c.h.b16 %v3088
    %v3233 = vunpack.c.l.b16 %v3089
    %v3234 = vunpack.c.h.b16 %v3089
    %v3235 = vunpack.c.l.b16 %v3090
    %v3236 = vunpack.c.h.b16 %v3090
    %v3237 = vunpack.c.l.b16 %v3091
    %v3238 = vunpack.c.h.b16 %v3091
    %v3239 = vunpack.c.l.b16 %v3092
    %v3240 = vunpack.c.h.b16 %v3092
    %v3241 = vunpack.c.l.b16 %v3093
    %v3242 = vunpack.c.h.b16 %v3093
    %v3243 = vunpack.c.l.b16 %v3094
    %v3244 = vunpack.c.h.b16 %v3094
    %v3245 = vunpack.c.l.b16 %v3095
    %v3246 = vunpack.c.h.b16 %v3095
    %v3247 = vunpack.c.l.b16 %v3096
    %v3248 = vunpack.c.h.b16 %v3096
    %v3249 = vunpack.c.l.b16 %v3097
    %v3250 = vunpack.c.h.b16 %v3097
    %v3251 = vunpack.c.l.b16 %v3098
    %v3252 = vunpack.c.h.b16 %v3098
    %v3253 = vunpack.c.l.b16 %v3099
    %v3254 = vunpack.c.h.b16 %v3099
    %v3255 = vunpack.c.l.b16 %v3100
    %v3256 = vunpack.c.h.b16 %v3100
    %v3257 = vunpack.c.l.b16 %v3101
    %v3258 = vunpack.c.h.b16 %v3101
    %v3259 = vunpack.c.l.b16 %v3102
    %v3260 = vunpack.c.h.b16 %v3102
    %v3261 = vunpack.c.l.b16 %v3103
    %v3262 = vunpack.c.h.b16 %v3103
    %v3263 = vunpack.c.l.b16 %v3104
    %v3264 = vunpack.c.h.b16 %v3104
    %v3265 = vunpack.c.l.b16 %v3105
    %v3266 = vunpack.c.h.b16 %v3105
    %v3267 = vunpack.c.l.b16 %v3106
    %v3268 = vunpack.c.h.b16 %v3106
    %v3269 = vunpack.c.l.b16 %v3107
    %v3270 = vunpack.c.h.b16 %v3107
    %v3271 = vunpack.c.l.b16 %v3108
    %v3272 = vunpack.c.h.b16 %v3108
    %v3273 = vunpack.c.l.b16 %v3109
    %v3274 = vunpack.c.h.b16 %v3109
    %v3275 = vunpack.c.l.b16 %v3110
    %v3276 = vunpack.c.h.b16 %v3110
    %v3277 = vunpack.c.l.b16 %v3111
    %v3278 = vunpack.c.h.b16 %v3111
    %v3279 = vunpack.c.l.b16 %v3112
    %v3280 = vunpack.c.h.b16 %v3112
    %v3281 = vunpack.c.l.b16 %v3113
    %v3282 = vunpack.c.h.b16 %v3113
    %v3283 = vunpack.c.l.b16 %v3114
    %v3284 = vunpack.c.h.b16 %v3114
    %v3285 = vunpack.c.l.b16 %v3115
    %v3286 = vunpack.c.h.b16 %v3115
    %v3287 = vunpack.c.l.b16 %v3116
    %v3288 = vunpack.c.h.b16 %v3116
    %v3289 = vunpack.c.l.b16 %v3117
    %v3290 = vunpack.c.h.b16 %v3117
    %v3291 = vunpack.c.l.b16 %v3118
    %v3292 = vunpack.c.h.b16 %v3118
    %v3293 = vunpack.c.l.b16 %v3119
    %v3294 = vunpack.c.h.b16 %v3119
    %v3295 = vunpack.c.l.b16 %v3120
    %v3296 = vunpack.c.h.b16 %v3120
    %v3297 = vunpack.c.l.b16 %v3121
    %v3298 = vunpack.c.h.b16 %v3121
    %v3299 = vunpack.c.l.b16 %v3122
    %v3300 = vunpack.c.h.b16 %v3122
    %v3301 = vunpack.c.l.b16 %v3123
    %v3302 = vunpack.c.h.b16 %v3123
    %v3303 = vunpack.c.l.b16 %v3124
    %v3304 = vunpack.c.h.b16 %v3124
    %v3305 = vunpack.c.l.b16 %v3125
    %v3306 = vunpack.c.h.b16 %v3125
    %v3307 = vunpack.c.l.b16 %v3126
    %v3308 = vunpack.c.h.b16 %v3126
    %v3309 = vunpack.c.l.b16 %v3127
    %v3310 = vunpack.c.h.b16 %v3127
    %v3311 = vunpack.c.l.b16 %v3128
    %v3312 = vunpack.c.h.b16 %v3128
    %v3313 = vunpack.c.l.b16 %v3129
    %v3314 = vunpack.c.h.b16 %v3129
    %v3315 = vunpack.c.l.b16 %v3130
    %v3316 = vunpack.c.h.b16 %v3130
    %v3317 = vunpack.c.l.b16 %v3131
    %v3318 = vunpack.c.h.b16 %v3131
    %v3319 = vunpack.c.l.b16 %v3132
    %v3320 = vunpack.c.h.b16 %v3132
    %v3321 = vunpack.c.l.b16 %v3133
    %v3322 = vunpack.c.h.b16 %v3133
    %v3323 = vunpack.c.l.b16 %v3134
    %v3324 = vunpack.c.h.b16 %v3134
    %v3325 = vunpack.c.l.b16 %v3135
    %v3326 = vunpack.c.h.b16 %v3135
    %v3327 = vunpack.c.l.b16 %v3136
    %v3328 = vunpack.c.h.b16 %v3136
    %v3329 = vunpack.c.l.b16 %v3137
    %v3330 = vunpack.c.h.b16 %v3137
    %v3331 = vunpack.c.l.b16 %v3138
    %v3332 = vunpack.c.h.b16 %v3138
    %v3333 = vunpack.c.l.b16 %v3139
    %v3334 = vunpack.c.h.b16 %v3139
    %v3335 = vunpack.c.l.b16 %v3140
    %v3336 = vunpack.c.h.b16 %v3140
    %v3337 = vunpack.c.l.b16 %v3141
    %v3338 = vunpack.c.h.b16 %v3141
    %v3339 = vunpack.c.l.b16 %v3142
    %v3340 = vunpack.c.h.b16 %v3142
    %v3341 = vunpack.c.l.b16 %v3143
    %v3342 = vunpack.c.h.b16 %v3143
    %v3343 = vunpack.c.l.b16 %v3144
    %v3344 = vunpack.c.h.b16 %v3144
    %v3345 = vunpack.c.l.b16 %v3145
    %v3346 = vunpack.c.h.b16 %v3145
    %v3347 = vunpack.c.l.b16 %v3146
    %v3348 = vunpack.c.h.b16 %v3146
    %v3349 = vunpack.c.l.b16 %v3147
    %v3350 = vunpack.c.h.b16 %v3147
    %v3351 = vunpack.c.l.b16 %v3148
    %v3352 = vunpack.c.h.b16 %v3148
    %v3353 = vpack.c.b16 %v3227, %v3225
    %v3354 = vpack.c.b16 %v3228, %v3226
    %v3355 = vpack.c.b16 %v3231, %v3229
    %v3356 = vpack.c.b16 %v3232, %v3230
    %v3357 = vpack.c.b16 %v3235, %v3233
    %v3358 = vpack.c.b16 %v3236, %v3234
    %v3359 = vpack.c.b16 %v3239, %v3237
    %v3360 = vpack.c.b16 %v3240, %v3238
    %v3361 = vpack.c.b16 %v3243, %v3241
    %v3362 = vpack.c.b16 %v3244, %v3242
    %v3363 = vpack.c.b16 %v3247, %v3245
    %v3364 = vpack.c.b16 %v3248, %v3246
    %v3365 = vpack.c.b16 %v3251, %v3249
    %v3366 = vpack.c.b16 %v3252, %v3250
    %v3367 = vpack.c.b16 %v3255, %v3253
    %v3368 = vpack.c.b16 %v3256, %v3254
    %v3369 = vpack.c.b16 %v3259, %v3257
    %v3370 = vpack.c.b16 %v3260, %v3258
    %v3371 = vpack.c.b16 %v3263, %v3261
    %v3372 = vpack.c.b16 %v3264, %v3262
    %v3373 = vpack.c.b16 %v3267, %v3265
    %v3374 = vpack.c.b16 %v3268, %v3266
    %v3375 = vpack.c.b16 %v3271, %v3269
    %v3376 = vpack.c.b16 %v3272, %v3270
    %v3377 = vpack.c.b16 %v3275, %v3273
    %v3378 = vpack.c.b16 %v3276, %v3274
    %v3379 = vpack.c.b16 %v3279, %v3277
    %v3380 = vpack.c.b16 %v3280, %v3278
    %v3381 = vpack.c.b16 %v3283, %v3281
    %v3382 = vpack.c.b16 %v3284, %v3282
    %v3383 = vpack.c.b16 %v3287, %v3285
    %v3384 = vpack.c.b16 %v3288, %v3286
    %v3385 = vpack.c.b16 %v3291, %v3289
    %v3386 = vpack.c.b16 %v3292, %v3290
    %v3387 = vpack.c.b16 %v3295, %v3293
    %v3388 = vpack.c.b16 %v3296, %v3294
    %v3389 = vpack.c.b16 %v3299, %v3297
    %v3390 = vpack.c.b16 %v3300, %v3298
    %v3391 = vpack.c.b16 %v3303, %v3301
    %v3392 = vpack.c.b16 %v3304, %v3302
    %v3393 = vpack.c.b16 %v3307, %v3305
    %v3394 = vpack.c.b16 %v3308, %v3306
    %v3395 = vpack.c.b16 %v3311, %v3309
    %v3396 = vpack.c.b16 %v3312, %v3310
    %v3397 = vpack.c.b16 %v3315, %v3313
    %v3398 = vpack.c.b16 %v3316, %v3314
    %v3399 = vpack.c.b16 %v3319, %v3317
    %v3400 = vpack.c.b16 %v3320, %v3318
    %v3401 = vpack.c.b16 %v3323, %v3321
    %v3402 = vpack.c.b16 %v3324, %v3322
    %v3403 = vpack.c.b16 %v3327, %v3325
    %v3404 = vpack.c.b16 %v3328, %v3326
    %v3405 = vpack.c.b16 %v3331, %v3329
    %v3406 = vpack.c.b16 %v3332, %v3330
    %v3407 = vpack.c.b16 %v3335, %v3333
    %v3408 = vpack.c.b16 %v3336, %v3334
    %v3409 = vpack.c.b16 %v3339, %v3337
    %v3410 = vpack.c.b16 %v3340, %v3338
    %v3411 = vpack.c.b16 %v3343, %v3341
    %v3412 = vpack.c.b16 %v3344, %v3342
    %v3413 = vpack.c.b16 %v3347, %v3345
    %v3414 = vpack.c.b16 %v3348, %v3346
    %v3415 = vpack.c.b16 %v3351, %v3349
    %v3416 = vpack.c.b16 %v3352, %v3350
    %3481 = vmatprep.subr.bf16.mxu0 %v3354
    %3482 = vmatpush1.bf16.msra.mxu0 %v3353
    %3483 = vmatprep.subr.bf16.mxu0 %v3356
    %3484 = vmatpush1.bf16.msra.mxu0 %v3355
    %3485 = vmatprep.subr.bf16.mxu0 %v3358
    %3486 = vmatpush1.bf16.msra.mxu0 %v3357
    %3487 = vmatprep.subr.bf16.mxu0 %v3360
    %3488 = vmatpush1.bf16.msra.mxu0 %v3359
    %3489 = vmatprep.subr.bf16.mxu0 %v3362
    %3490 = vmatpush1.bf16.msra.mxu0 %v3361
    %3491 = vmatprep.subr.bf16.mxu0 %v3364
    %3492 = vmatpush1.bf16.msra.mxu0 %v3363
    %3493 = vmatprep.subr.bf16.mxu0 %v3366
    %3494 = vmatpush1.bf16.msra.mxu0 %v3365
    %3495 = vmatprep.subr.bf16.mxu0 %v3368
    %3496 = vmatpush1.bf16.msra.mxu0 %v3367
    %3497 = vmatprep.subr.bf16.mxu0 %v3370
    %3498 = vmatpush1.bf16.msra.mxu0 %v3369
    %3499 = vmatprep.subr.bf16.mxu0 %v3372
    %3500 = vmatpush1.bf16.msra.mxu0 %v3371
    %3501 = vmatprep.subr.bf16.mxu0 %v3374
    %3502 = vmatpush1.bf16.msra.mxu0 %v3373
    %3503 = vmatprep.subr.bf16.mxu0 %v3376
    %3504 = vmatpush1.bf16.msra.mxu0 %v3375
    %3505 = vmatprep.subr.bf16.mxu0 %v3378
    %3506 = vmatpush1.bf16.msra.mxu0 %v3377
    %3507 = vmatprep.subr.bf16.mxu0 %v3380
    %3508 = vmatpush1.bf16.msra.mxu0 %v3379
    %3509 = vmatprep.subr.bf16.mxu0 %v3382
    %3510 = vmatpush1.bf16.msra.mxu0 %v3381
    %3511 = vmatprep.subr.bf16.mxu0 %v3384
    %3512 = vmatpush1.bf16.msra.mxu0 %v3383
    %3513 = vmatprep.mubr.bf16.mxu0 %v3082
    %3514 = vmatmul.mubr.bf16.gmra.mrb[0].mxu0 %v3081
    %v3515 = vpop.f32.mrb[0].mxu0
    %v3516 = vadd.f32 %v3154, %v3515
    %v3517 = vpop.f32.mrb[0].mxu0
    %v3518 = vadd.f32 %v3158, %v3517
    %v3519 = vpop.f32.mrb[0].mxu0
    %v3520 = vpop.f32.mrb[0].mxu0
    %3521 = vdwg.mxu0
    %3522 = vmatprep.subr.bf16.mxu0 %v3386
    %3523 = vmatpush1.bf16.msra.mxu0 %v3385
    %3524 = vmatprep.subr.bf16.mxu0 %v3388
    %3525 = vmatpush1.bf16.msra.mxu0 %v3387
    %3526 = vmatprep.subr.bf16.mxu0 %v3390
    %3527 = vmatpush1.bf16.msra.mxu0 %v3389
    %3528 = vmatprep.subr.bf16.mxu0 %v3392
    %3529 = vmatpush1.bf16.msra.mxu0 %v3391
    %3530 = vmatprep.subr.bf16.mxu0 %v3394
    %3531 = vmatpush1.bf16.msra.mxu0 %v3393
    %3532 = vmatprep.subr.bf16.mxu0 %v3396
    %3533 = vmatpush1.bf16.msra.mxu0 %v3395
    %3534 = vmatprep.subr.bf16.mxu0 %v3398
    %3535 = vmatpush1.bf16.msra.mxu0 %v3397
    %3536 = vmatprep.subr.bf16.mxu0 %v3400
    %3537 = vmatpush1.bf16.msra.mxu0 %v3399
    %3538 = vmatprep.subr.bf16.mxu0 %v3402
    %3539 = vmatpush1.bf16.msra.mxu0 %v3401
    %3540 = vmatprep.subr.bf16.mxu0 %v3404
    %3541 = vmatpush1.bf16.msra.mxu0 %v3403
    %3542 = vmatprep.subr.bf16.mxu0 %v3406
    %3543 = vmatpush1.bf16.msra.mxu0 %v3405
    %3544 = vmatprep.subr.bf16.mxu0 %v3408
    %3545 = vmatpush1.bf16.msra.mxu0 %v3407
    %3546 = vmatprep.subr.bf16.mxu0 %v3410
    %3547 = vmatpush1.bf16.msra.mxu0 %v3409
    %3548 = vmatprep.subr.bf16.mxu0 %v3412
    %3549 = vmatpush1.bf16.msra.mxu0 %v3411
    %3550 = vmatprep.subr.bf16.mxu0 %v3414
    %3551 = vmatpush1.bf16.msra.mxu0 %v3413
    %3552 = vmatprep.subr.bf16.mxu0 %v3416
    %3553 = vmatpush1.bf16.msra.mxu0 %v3415
    %3554 = vmatprep.mubr.bf16.mxu0 %v3084
    %3555 = vmatmul.mubr.bf16.gmra.mrb[0].mxu0 %v3083
    %v3556 = vpop.f32.mrb[0].mxu0
    %v3557 = vadd.f32 %v3516, %v3556
    %v3558 = vpop.f32.mrb[0].mxu0
    %v3559 = vadd.f32 %v3518, %v3558
    %v3560 = vpop.f32.mrb[0].mxu0
    %v3561 = vpop.f32.mrb[0].mxu0
    %3562 = vdwg.mxu0
    %v3565 = vcombine.low %v3557, %v3559
    %v3566 = vcombine.high %v3557, %v3559
    %v3568 = vunpack.c.l.s4 1983009808
    %v3569 = vunpack.c.0.s8 %v3568
    %v3570 = vlaneseq
    %v3571 = vshrl.u32 %v3570, 7
    %v3572 = vsub.s32 %v3569, %v3571
    %v3573 = vrot.slane %v3565, %v3572
    %v3575 = vunpack.c.l.s4 1983009808
    %v3576 = vunpack.c.0.s8 %v3575
    %v3577 = vlaneseq
    %v3578 = vshrl.u32 %v3577, 7
    %v3579 = vsub.s32 %v3576, %v3578
    %v3580 = vrot.slane %v3566, %v3579
    %v3581 = vcombine.high %v3573, %v3573
    %v3582 = vcombine.high %v3580, %v3580
    %3587 = vst [vmem:[#allocation11] sm:$0xf] %v3573
    %3588 = vst [vmem:[#allocation11 + $0x4] sm:$0xf] %v3581
    %3589 = vst [vmem:[#allocation11 + $0x8] sm:$0xf] %v3580
    %3590 = vst [vmem:[#allocation11 + $0xc] sm:$0xf] %v3582
    // Predicated region
    $region50: #{tpu_custom_call.1} parent=1 // pred_check
      _
    $region51: #{tpu_custom_call.1} parent=1 // pred_check_branch
      %3592 = sbr.rel (0) target = $region53
    $region52: #{tpu_custom_call.1} parent=1 // pred_region
      %s3594 = ssub.s32 256, 64
      %3595 = vsyncadd [#allocation4], %s3594
      %s3596 = sshll.u32 [#allocation11], 4
      %s3597 = int_to_ptr.vmem [resolvable:$true] %s3596
      %3602 = dma.vmem_to_hbm [thread:$0]  %s3597, 64, %s7, [#allocation4], 64, 64, 4
    $region53: #{tpu_custom_call.1} parent=1 // pred_fallthru
      _
    // Predicated region
    $region54: #{tpu_custom_call.1} parent=1 // pred_check
      _
    $region55: #{tpu_custom_call.1} parent=1 // pred_check_branch
      %3604 = sbr.rel (0) target = $region57
    $region56: #{tpu_custom_call.1} parent=1 // pred_region
      %3605 = dma.done [#allocation4], 256
    $region57: #{tpu_custom_call.1} parent=1 // pred_fallthru
      _
    %3606 = vsyncpa [#allocation3], 1
    %3607 = vsyncpa [#allocation6], 1
    %3608 = vsyncpa [#allocation9], 1
    %3609 = vsyncpa [#allocation4], 1

</llo_original>
